<compile_context>
chip_gen: v7x
topology: tpu7x:2x2x1
jax: 0.10.0
libtpu: 0.0.40
codegen_flags: <defaults>
</compile_context>

<pallas_src>
import functools

import jax
import jax.numpy as jnp
from jax.experimental import pallas as pl
from jax.experimental.pallas import tpu as pltpu

_LANE = 128


def _round_up(x, m):
    return (x + m - 1) // m * m


def _choose_tl(L, min_tl, target=512):
    """Largest divisor of L that is a multiple of 8, >= min_tl and <= target;
    else the smallest such divisor; else the full sequence (always safe)."""
    divs = [t for t in range(8, L, 8) if L % t == 0 and t >= min_tl]
    if not divs:
        return L
    small = [t for t in divs if t <= target]
    return max(small) if small else min(divs)


# ----------------------------------------------------------------------------
# Kernels
# ----------------------------------------------------------------------------
def _temporal_block_kernel(xp_ref, xc_ref, w1_ref, b1_ref, w2_ref, b2_ref,
                           *rest, k, d, tl, lt_off, has_ds):
    """Fused TemporalBlock on one (batch, L-tile):
         xp_ref : (1, tl, Cin)  previous L-tile of x (clamped at the start)
         xc_ref : (1, tl, Cin)  current L-tile of x
         w1     : (k, Cin, Cmid)   b1: (1, Cmid)
         w2     : (k, Cmid, Cmid)  b2: (1, Cmid)
         [wd    : (1, Cin, Cmid)   bd: (1, Cmid)]   (1x1 downsample, optional)
         o_ref  : (1, tl, Cmid)
    """
    if has_ds:
        wd_ref, bd_ref, o_ref = rest
    else:
        (o_ref,) = rest

    halo = (k - 1) * d                      # causal halo of one conv
    pad_front = max(0, 2 * halo - tl)       # extra explicit zeros if tile < halo
    cin = xc_ref.shape[-1]
    cmid = w1_ref.shape[-1]

    t0 = (pl.program_id(1) + lt_off) * tl   # absolute start time of this tile

    xp = xp_ref[0]                          # covers times [t0 - tl, t0)
    xc = xc_ref[0]                          # covers times [t0, t0 + tl)
    parts = [xp, xc]
    if pad_front > 0:
        parts = [jnp.zeros((pad_front, cin), xc.dtype)] + parts
    xcat = jnp.concatenate(parts, axis=0)   # covers [t0 - tl - pad_front, t0 + tl)

    # causal zero padding: zero every position with absolute time < 0
    n_cat = 2 * tl + pad_front
    q = jax.lax.broadcasted_iota(jnp.int32, (n_cat, 1), 0)
    xcat = jnp.where(q + (t0 - tl - pad_front) >= 0, xcat, 0.0)

    # ---- conv1 + bias + ReLU over the halo-extended range [t0 - halo, t0 + tl)
    h_len = tl + halo
    acc1 = jnp.zeros((h_len, cmid), jnp.float32)
    for j in range(k):                      # static tap loop
        start = pad_front + tl - halo - (k - 1 - j) * d
        acc1 = acc1 + jnp.dot(xcat[start:start + h_len], w1_ref[j],
                              preferred_element_type=jnp.float32)
    h = jnp.maximum(acc1 + b1_ref[...], 0.0)
    # conv2 sees *zero* padding (not relu(bias)) for times < 0
    ph = jax.lax.broadcasted_iota(jnp.int32, (h_len, 1), 0)
    h = jnp.where(ph + (t0 - halo) >= 0, h, 0.0)

    # ---- conv2 + bias + ReLU over [t0, t0 + tl)
    acc2 = jnp.zeros((tl, cmid), jnp.float32)
    for j in range(k):
        acc2 = acc2 + jnp.dot(h[j * d:j * d + tl], w2_ref[j],
                              preferred_element_type=jnp.float32)
    out = jnp.maximum(acc2 + b2_ref[...], 0.0)

    # ---- residual (identity or fused 1x1 downsample) + final ReLU
    if has_ds:
        res = jnp.dot(xc, wd_ref[0], preferred_element_type=jnp.float32) + bd_ref[...]
    else:
        res = xc
    o_ref[0] = jnp.maximum(out + res, 0.0).astype(o_ref.dtype)


def _linear_kernel(x_ref, w_ref, b_ref, o_ref):
    """x: (N, C), w: (C, Out), b: (1, Out) -- tiny head, single block."""
    o_ref[...] = (jnp.dot(x_ref[...], w_ref[...],
                          preferred_element_type=jnp.float32)
                  + b_ref[...]).astype(o_ref.dtype)


# ----------------------------------------------------------------------------
# Wrappers
# ----------------------------------------------------------------------------
def temporal_block(x, bp, *, k, d, last_tile_only=False):
    """x: (N, L, Cin_p) channels-last, lane-padded.  bp: prepared block params."""
    N, L, cin_p = x.shape
    cout_p = bp["w1"].shape[-1]
    has_ds = "wd" in bp

    halo2 = 2 * (k - 1) * d
    tl = _choose_tl(L, max(halo2, 8))
    n_lt = L // tl
    lt_off = (n_lt - 1) if last_tile_only else 0
    grid_lt = 1 if last_tile_only else n_lt

    def cur_map(n, lt):
        return (n, lt + lt_off, 0)

    def prev_map(n, lt):
        return (n, jnp.maximum(lt + lt_off - 1, 0), 0)

    def resident(a):          # full-array block, VMEM-resident across the grid
        return pl.BlockSpec(a.shape, lambda n, lt, _nd=a.ndim: (0,) * _nd)

    in_specs = [
        pl.BlockSpec((1, tl, cin_p), prev_map),
        pl.BlockSpec((1, tl, cin_p), cur_map),
        resident(bp["w1"]), resident(bp["b1"]),
        resident(bp["w2"]), resident(bp["b2"]),
    ]
    args = [x, x, bp["w1"], bp["b1"], bp["w2"], bp["b2"]]
    if has_ds:
        in_specs += [resident(bp["wd"]), resident(bp["bd"])]
        args += [bp["wd"], bp["bd"]]

    out_L = tl if last_tile_only else L
    out_specs = pl.BlockSpec((1, tl, cout_p), lambda n, lt: (n, lt, 0))

    kern = functools.partial(_temporal_block_kernel, k=k, d=d, tl=tl,
                             lt_off=lt_off, has_ds=has_ds)

    rows = N * grid_lt * tl
    flops = 2 * rows * cout_p * (cin_p * k + cout_p * k + (cin_p if has_ds else 0))
    bytes_acc = 4 * (2 * rows * cin_p + rows * cout_p
                     + bp["w1"].size + bp["w2"].size
                     + (bp["wd"].size if has_ds else 0))

    return pl.pallas_call(
        kern,
        grid=(N, grid_lt),
        in_specs=in_specs,
        out_specs=out_specs,
        out_shape=jax.ShapeDtypeStruct((N, out_L, cout_p), jnp.float32),
        compiler_params=pltpu.CompilerParams(
            dimension_semantics=("parallel", "parallel")),
        cost_estimate=pl.CostEstimate(flops=int(flops), transcendentals=0,
                                      bytes_accessed=int(bytes_acc)),
    )(*args)


def linear(x, w, b):
    """Tiny head: (N, C_p) x (C_p, Out_p) -- fits trivially in VMEM."""
    vm = pl.BlockSpec(memory_space=pltpu.MemorySpace.VMEM)
    return pl.pallas_call(
        _linear_kernel,
        out_shape=jax.ShapeDtypeStruct((x.shape[0], w.shape[1]), jnp.float32),
        in_specs=[vm, vm, vm],
        out_specs=vm,
    )(x, w, b)


def tcn_forward(x_ncl, prepped, *, kernel_size, output_size):
    """x_ncl: (N, C_in, L) -> (N, output_size), matching TCN.forward."""
    N, cin, L = x_ncl.shape
    x = jnp.transpose(x_ncl, (0, 2, 1))                      # NCL -> NLC
    cin_p = prepped["blocks"][0]["w1"].shape[1]
    x = jnp.pad(x, ((0, 0), (0, 0), (0, cin_p - cin)))       # lane-align channels once
    nb = len(prepped["blocks"])
    for i, bp in enumerate(prepped["blocks"]):
        x = temporal_block(x, bp, k=kernel_size, d=2 ** i,
                           last_tile_only=(i == nb - 1))
    last = x[:, -1, :]                                       # y1[:, :, -1]
    out_p = linear(last, prepped["lin_w"], prepped["lin_b"])
    return out_p[:, :output_size]


# ----------------------------------------------------------------------------
# Parameter init (torch layout) + Pallas-side preparation (transpose + lane pad)
# ----------------------------------------------------------------------------
def init_params(key, input_size, output_size, num_channels, kernel_size):
    params = {"blocks": []}
    in_ch = input_size
    for out_ch in num_channels:
        key, k0, k1, k2, k3, k4, k5 = jax.random.split(key, 7)
        bp = {
            "w1": 0.01 * jax.random.normal(k0, (out_ch, in_ch, kernel_size), jnp.float32),
            "b1": 0.01 * jax.random.normal(k1, (out_ch,), jnp.float32),
            "w2": 0.01 * jax.random.normal(k2, (out_ch, out_ch, kernel_size), jnp.float32),
            "b2": 0.01 * jax.random.normal(k3, (out_ch,), jnp.float32),
        }
        if in_ch != out_ch:
            bp["wd"] = 0.01 * jax.random.normal(k4, (out_ch, in_ch, 1), jnp.float32)
            bp["bd"] = 0.01 * jax.random.normal(k5, (out_ch,), jnp.float32)
        params["blocks"].append(bp)
        in_ch = out_ch
    key, ka, kb = jax.random.split(key, 3)
    params["lin_w"] = 0.01 * jax.random.normal(ka, (output_size, in_ch), jnp.float32)
    params["lin_b"] = 0.01 * jax.random.normal(kb, (output_size,), jnp.float32)
    return params


def _prep_conv_w(w):
    """torch (Cout, Cin, k) -> (k, Cin_p, Cout_p), zero lane-padded."""
    co, ci, _ = w.shape
    wt = jnp.transpose(w, (2, 1, 0))
    return jnp.pad(wt, ((0, 0),
                        (0, _round_up(ci, _LANE) - ci),
                        (0, _round_up(co, _LANE) - co)))


def _prep_bias(b):
    c = b.shape[0]
    return jnp.pad(b, (0, _round_up(c, _LANE) - c)).reshape(1, -1)


def prepare_params(params):
    prepped = {"blocks": []}
    for bp in params["blocks"]:
        pb = {"w1": _prep_conv_w(bp["w1"]), "b1": _prep_bias(bp["b1"]),
              "w2": _prep_conv_w(bp["w2"]), "b2": _prep_bias(bp["b2"])}
        if "wd" in bp:
            pb["wd"] = _prep_conv_w(bp["wd"])
            pb["bd"] = _prep_bias(bp["bd"])
        prepped["blocks"].append(pb)
    out_f, in_f = params["lin_w"].shape
    lw = jnp.transpose(params["lin_w"], (1, 0))              # (C, Out)
    prepped["lin_w"] = jnp.pad(lw, ((0, _round_up(in_f, _LANE) - in_f),
                                    (0, _round_up(out_f, _LANE) - out_f)))
    prepped["lin_b"] = _prep_bias(params["lin_b"])
    return prepped


# ----------------------------------------------------------------------------
# Pure-JAX reference (independent: lax.conv_general_dilated, NCL layout)
# ----------------------------------------------------------------------------
def ref_forward(x_ncl, params, kernel_size):
    def conv(inp, w, b, dil, p):
        out = jax.lax.conv_general_dilated(
            inp, w, window_strides=(1,), padding=[(p, p)],
            rhs_dilation=(dil,), dimension_numbers=("NCH", "OIH", "NCH"))
        return out + b[None, :, None]

    x = x_ncl
    L = x.shape[2]
    for i, bp in enumerate(params["blocks"]):
        d = 2 ** i
        pad = (kernel_size - 1) * d
        o = jnp.maximum(conv(x, bp["w1"], bp["b1"], d, pad)[:, :, :L], 0.0)
        o = jnp.maximum(conv(o, bp["w2"], bp["b2"], d, pad)[:, :, :L], 0.0)
        res = conv(x, bp["wd"], bp["bd"], 1, 0) if "wd" in bp else x
        x = jnp.maximum(o + res, 0.0)
    last = x[:, :, -1]
    return last @ params["lin_w"].T + params["lin_b"]


# ----------------------------------------------------------------------------
if __name__ == "__main__":
    N, input_size, L = 2, 4, 16
    num_channels = [8, 16, 16]          # exercises downsample + identity residual
    kernel_size = 2
    output_size = 4
    dropout = 0.2                       # identity at inference

    key = jax.random.PRNGKey(0)
    key, kx, kp = jax.random.split(key, 3)
    x = jax.random.normal(kx, (N, input_size, L), jnp.float32)
    params = init_params(kp, input_size, output_size, num_channels, kernel_size)
    prepped = prepare_params(params)

    fwd = jax.jit(functools.partial(tcn_forward, kernel_size=kernel_size,
                                    output_size=output_size))
    out = jax.block_until_ready(fwd(x, prepped))

    ref = jax.block_until_ready(ref_forward(x, params, kernel_size))
    assert out.shape == (N, output_size), out.shape
    assert jnp.allclose(out, ref, rtol=1e-4, atol=1e-5), (out, ref)

    print("KERNEL_OK")
</pallas_src>

<mosaic_0001>
module attributes {stable_mosaic.version = 11 : i64} {
  func.func @_temporal_block_kernel(%arg0: i32, %arg1: i32, %arg2: memref<1x8x128xf32, #tpu.memory_space<vmem>>, %arg3: memref<1x8x128xf32, #tpu.memory_space<vmem>>, %arg4: memref<2x128x128xf32, #tpu.memory_space<vmem>>, %arg5: memref<1x128xf32, #tpu.memory_space<vmem>>, %arg6: memref<2x128x128xf32, #tpu.memory_space<vmem>>, %arg7: memref<1x128xf32, #tpu.memory_space<vmem>>, %arg8: memref<1x128x128xf32, #tpu.memory_space<vmem>>, %arg9: memref<1x128xf32, #tpu.memory_space<vmem>>, %arg10: memref<1x8x128xf32, #tpu.memory_space<vmem>>) attributes {dimension_semantics = [#tpu.dimension_semantics<parallel>, #tpu.dimension_semantics<parallel>], iteration_bounds = array<i64: 2, 2>, scalar_prefetch = 0 : i64, scratch_operands = 0 : i64, tpu.core_type = #tpu.core_type<tc>, window_params = [{transform_indices = @transform_0, window_bounds = array<i64: 1, 8, 128>}, {transform_indices = @transform_1, window_bounds = array<i64: 1, 8, 128>}, {pipeline_mode = #tpu.pipeline_mode<synchronous>, transform_indices = @transform_2, window_bounds = array<i64: 2, 128, 128>}, {pipeline_mode = #tpu.pipeline_mode<synchronous>, transform_indices = @transform_3, window_bounds = array<i64: 1, 128>}, {pipeline_mode = #tpu.pipeline_mode<synchronous>, transform_indices = @transform_4, window_bounds = array<i64: 2, 128, 128>}, {pipeline_mode = #tpu.pipeline_mode<synchronous>, transform_indices = @transform_5, window_bounds = array<i64: 1, 128>}, {pipeline_mode = #tpu.pipeline_mode<synchronous>, transform_indices = @transform_6, window_bounds = array<i64: 1, 128, 128>}, {pipeline_mode = #tpu.pipeline_mode<synchronous>, transform_indices = @transform_7, window_bounds = array<i64: 1, 128>}, {transform_indices = @transform_8, window_bounds = array<i64: 1, 8, 128>}]} {
    %c0_i32 = arith.constant 0 : i32
    %0 = arith.addi %arg1, %c0_i32 : i32
    %c8_i32 = arith.constant 8 : i32
    %1 = arith.muli %0, %c8_i32 : i32
    %c0 = arith.constant 0 : index
    %c0_0 = arith.constant 0 : index
    %c0_1 = arith.constant 0 : index
    %2 = vector.load %arg2[%c0, %c0_0, %c0_1] : memref<1x8x128xf32, #tpu.memory_space<vmem>>, vector<1x8x128xf32>
    %3 = vector.shape_cast %2 : vector<1x8x128xf32> to vector<8x128xf32>
    %c0_2 = arith.constant 0 : index
    %c0_3 = arith.constant 0 : index
    %c0_4 = arith.constant 0 : index
    %4 = vector.load %arg3[%c0_2, %c0_3, %c0_4] : memref<1x8x128xf32, #tpu.memory_space<vmem>>, vector<1x8x128xf32>
    %5 = vector.shape_cast %4 : vector<1x8x128xf32> to vector<8x128xf32>
    %6 = tpu.concatenate %3, %5 in 0 : vector<8x128xf32>, vector<8x128xf32> -> vector<16x128xf32>
    %7 = tpu.iota {dimensions = array<i32: 0>} : vector<16x1xi32>
    %c8_i32_5 = arith.constant 8 : i32
    %8 = arith.subi %1, %c8_i32_5 : i32
    %c0_i32_6 = arith.constant 0 : i32
    %9 = arith.subi %8, %c0_i32_6 : i32
    %10 = vector.broadcast %9 : i32 to vector<16x1xi32>
    %11 = arith.addi %7, %10 : vector<16x1xi32>
    %c0_i32_7 = arith.constant 0 : i32
    %12 = vector.broadcast %c0_i32_7 : i32 to vector<16x1xi32>
    %13 = arith.cmpi sge, %11, %12 : vector<16x1xi32>
    %cst = arith.constant 0.000000e+00 : f32
    %14 = vector.shape_cast %13 : vector<16x1xi1> to vector<16x1xi1>
    %15 = vector.broadcast %14 : vector<16x1xi1> to vector<16x128xi1>
    %16 = vector.broadcast %cst : f32 to vector<16x128xf32>
    %17 = arith.select %15, %6, %16 : vector<16x128xi1>, vector<16x128xf32>
    %cst_8 = arith.constant 0.000000e+00 : f32
    %18 = vector.broadcast %cst_8 : f32 to vector<9x128xf32>
    %19 = vector.extract_strided_slice %17 {offsets = [6, 0], sizes = [9, 128], strides = [1, 1]} : vector<16x128xf32> to vector<9x128xf32>
    %c0_9 = arith.constant 0 : index
    %c0_10 = arith.constant 0 : index
    %c0_11 = arith.constant 0 : index
    %20 = vector.load %arg4[%c0_9, %c0_10, %c0_11] : memref<2x128x128xf32, #tpu.memory_space<vmem>>, vector<1x128x128xf32>
    %21 = vector.shape_cast %20 : vector<1x128x128xf32> to vector<128x128xf32>
    %cst_12 = arith.constant dense<0.000000e+00> : vector<9x128xf32>
    %22 = tpu.matmul %19, %21, %cst_12 {dimension_numbers = #tpu.dot_dimension_numbers<[1], [0], [0], [1], [0, 0, 1, 1], [], []>} : vector<9x128xf32>, vector<128x128xf32>, vector<9x128xf32> -> vector<9x128xf32>
    %23 = arith.addf %18, %22 : vector<9x128xf32>
    %24 = vector.extract_strided_slice %17 {offsets = [7, 0], sizes = [9, 128], strides = [1, 1]} : vector<16x128xf32> to vector<9x128xf32>
    %c1 = arith.constant 1 : index
    %c0_13 = arith.constant 0 : index
    %c0_14 = arith.constant 0 : index
    %25 = vector.load %arg4[%c1, %c0_13, %c0_14] : memref<2x128x128xf32, #tpu.memory_space<vmem>>, vector<1x128x128xf32>
    %26 = vector.shape_cast %25 : vector<1x128x128xf32> to vector<128x128xf32>
    %cst_15 = arith.constant dense<0.000000e+00> : vector<9x128xf32>
    %27 = tpu.matmul %24, %26, %cst_15 {dimension_numbers = #tpu.dot_dimension_numbers<[1], [0], [0], [1], [0, 0, 1, 1], [], []>} : vector<9x128xf32>, vector<128x128xf32>, vector<9x128xf32> -> vector<9x128xf32>
    %28 = arith.addf %23, %27 : vector<9x128xf32>
    %c0_16 = arith.constant 0 : index
    %c0_17 = arith.constant 0 : index
    %29 = vector.load %arg5[%c0_16, %c0_17] : memref<1x128xf32, #tpu.memory_space<vmem>>, vector<1x128xf32>
    %30 = vector.broadcast %29 : vector<1x128xf32> to vector<9x128xf32>
    %31 = arith.addf %28, %30 : vector<9x128xf32>
    %cst_18 = arith.constant 0.000000e+00 : f32
    %32 = vector.broadcast %cst_18 : f32 to vector<9x128xf32>
    %33 = arith.maximumf %31, %32 : vector<9x128xf32>
    %34 = tpu.iota {dimensions = array<i32: 0>} : vector<9x1xi32>
    %c1_i32 = arith.constant 1 : i32
    %35 = arith.subi %1, %c1_i32 : i32
    %36 = vector.broadcast %35 : i32 to vector<9x1xi32>
    %37 = arith.addi %34, %36 : vector<9x1xi32>
    %c0_i32_19 = arith.constant 0 : i32
    %38 = vector.broadcast %c0_i32_19 : i32 to vector<9x1xi32>
    %39 = arith.cmpi sge, %37, %38 : vector<9x1xi32>
    %cst_20 = arith.constant 0.000000e+00 : f32
    %40 = vector.shape_cast %39 : vector<9x1xi1> to vector<9x1xi1>
    %41 = vector.broadcast %40 : vector<9x1xi1> to vector<9x128xi1>
    %42 = vector.broadcast %cst_20 : f32 to vector<9x128xf32>
    %43 = arith.select %41, %33, %42 : vector<9x128xi1>, vector<9x128xf32>
    %cst_21 = arith.constant 0.000000e+00 : f32
    %44 = vector.broadcast %cst_21 : f32 to vector<8x128xf32>
    %45 = vector.extract_strided_slice %43 {offsets = [0, 0], sizes = [8, 128], strides = [1, 1]} : vector<9x128xf32> to vector<8x128xf32>
    %c0_22 = arith.constant 0 : index
    %c0_23 = arith.constant 0 : index
    %c0_24 = arith.constant 0 : index
    %46 = vector.load %arg6[%c0_22, %c0_23, %c0_24] : memref<2x128x128xf32, #tpu.memory_space<vmem>>, vector<1x128x128xf32>
    %47 = vector.shape_cast %46 : vector<1x128x128xf32> to vector<128x128xf32>
    %cst_25 = arith.constant dense<0.000000e+00> : vector<8x128xf32>
    %48 = tpu.matmul %45, %47, %cst_25 {dimension_numbers = #tpu.dot_dimension_numbers<[1], [0], [0], [1], [0, 0, 1, 1], [], []>} : vector<8x128xf32>, vector<128x128xf32>, vector<8x128xf32> -> vector<8x128xf32>
    %49 = arith.addf %44, %48 : vector<8x128xf32>
    %50 = vector.extract_strided_slice %43 {offsets = [1, 0], sizes = [8, 128], strides = [1, 1]} : vector<9x128xf32> to vector<8x128xf32>
    %c1_26 = arith.constant 1 : index
    %c0_27 = arith.constant 0 : index
    %c0_28 = arith.constant 0 : index
    %51 = vector.load %arg6[%c1_26, %c0_27, %c0_28] : memref<2x128x128xf32, #tpu.memory_space<vmem>>, vector<1x128x128xf32>
    %52 = vector.shape_cast %51 : vector<1x128x128xf32> to vector<128x128xf32>
    %cst_29 = arith.constant dense<0.000000e+00> : vector<8x128xf32>
    %53 = tpu.matmul %50, %52, %cst_29 {dimension_numbers = #tpu.dot_dimension_numbers<[1], [0], [0], [1], [0, 0, 1, 1], [], []>} : vector<8x128xf32>, vector<128x128xf32>, vector<8x128xf32> -> vector<8x128xf32>
    %54 = arith.addf %49, %53 : vector<8x128xf32>
    %c0_30 = arith.constant 0 : index
    %c0_31 = arith.constant 0 : index
    %55 = vector.load %arg7[%c0_30, %c0_31] : memref<1x128xf32, #tpu.memory_space<vmem>>, vector<1x128xf32>
    %56 = vector.broadcast %55 : vector<1x128xf32> to vector<8x128xf32>
    %57 = arith.addf %54, %56 : vector<8x128xf32>
    %cst_32 = arith.constant 0.000000e+00 : f32
    %58 = vector.broadcast %cst_32 : f32 to vector<8x128xf32>
    %59 = arith.maximumf %57, %58 : vector<8x128xf32>
    %c0_33 = arith.constant 0 : index
    %c0_34 = arith.constant 0 : index
    %c0_35 = arith.constant 0 : index
    %60 = vector.load %arg8[%c0_33, %c0_34, %c0_35] : memref<1x128x128xf32, #tpu.memory_space<vmem>>, vector<1x128x128xf32>
    %61 = vector.shape_cast %60 : vector<1x128x128xf32> to vector<128x128xf32>
    %cst_36 = arith.constant dense<0.000000e+00> : vector<8x128xf32>
    %62 = tpu.matmul %5, %61, %cst_36 {dimension_numbers = #tpu.dot_dimension_numbers<[1], [0], [0], [1], [0, 0, 1, 1], [], []>} : vector<8x128xf32>, vector<128x128xf32>, vector<8x128xf32> -> vector<8x128xf32>
    %c0_37 = arith.constant 0 : index
    %c0_38 = arith.constant 0 : index
    %63 = vector.load %arg9[%c0_37, %c0_38] : memref<1x128xf32, #tpu.memory_space<vmem>>, vector<1x128xf32>
    %64 = vector.broadcast %63 : vector<1x128xf32> to vector<8x128xf32>
    %65 = arith.addf %62, %64 : vector<8x128xf32>
    %66 = arith.addf %59, %65 : vector<8x128xf32>
    %cst_39 = arith.constant 0.000000e+00 : f32
    %67 = vector.broadcast %cst_39 : f32 to vector<8x128xf32>
    %68 = arith.maximumf %66, %67 : vector<8x128xf32>
    %c0_40 = arith.constant 0 : index
    %c0_41 = arith.constant 0 : index
    %c0_42 = arith.constant 0 : index
    %69 = vector.load %arg10[%c0_40, %c0_41, %c0_42] : memref<1x8x128xf32, #tpu.memory_space<vmem>>, vector<1x8x128xf32>
    %70 = vector.shape_cast %69 : vector<1x8x128xf32> to vector<8x128xf32>
    %71 = vector.shape_cast %68 : vector<8x128xf32> to vector<1x8x128xf32>
    tpu.vector_store %arg10[%c0_40, %c0_41, %c0_42], %71 {strides = array<i32>} : memref<1x8x128xf32, #tpu.memory_space<vmem>>, vector<1x8x128xf32>,
    return
  }
  func.func @transform_0(%arg0: i32, %arg1: i32) -> (i32, i32, i32) {
    %c0_i32 = arith.constant 0 : i32
    %0 = arith.addi %arg1, %c0_i32 : i32
    %c1_i32 = arith.constant 1 : i32
    %1 = arith.subi %0, %c1_i32 : i32
    %c0_i32_0 = arith.constant 0 : i32
    %2 = arith.maxsi %1, %c0_i32_0 : i32
    %c0_i32_1 = arith.constant 0 : i32
    %c0_i32_2 = arith.constant 0 : i32
    return %arg0, %2, %c0_i32_1 : i32, i32, i32
  }
  func.func @transform_1(%arg0: i32, %arg1: i32) -> (i32, i32, i32) {
    %c0_i32 = arith.constant 0 : i32
    %0 = arith.addi %arg1, %c0_i32 : i32
    %c0_i32_0 = arith.constant 0 : i32
    %c0_i32_1 = arith.constant 0 : i32
    return %arg0, %0, %c0_i32_0 : i32, i32, i32
  }
  func.func @transform_2(%arg0: i32, %arg1: i32) -> (i32, i32, i32) {
    %c0_i32 = arith.constant 0 : i32
    %c0_i32_0 = arith.constant 0 : i32
    %c0_i32_1 = arith.constant 0 : i32
    %c0_i32_2 = arith.constant 0 : i32
    return %c0_i32, %c0_i32_0, %c0_i32_1 : i32, i32, i32
  }
  func.func @transform_3(%arg0: i32, %arg1: i32) -> (i32, i32) {
    %c0_i32 = arith.constant 0 : i32
    %c0_i32_0 = arith.constant 0 : i32
    %c0_i32_1 = arith.constant 0 : i32
    return %c0_i32, %c0_i32_0 : i32, i32
  }
  func.func @transform_4(%arg0: i32, %arg1: i32) -> (i32, i32, i32) {
    %c0_i32 = arith.constant 0 : i32
    %c0_i32_0 = arith.constant 0 : i32
    %c0_i32_1 = arith.constant 0 : i32
    %c0_i32_2 = arith.constant 0 : i32
    return %c0_i32, %c0_i32_0, %c0_i32_1 : i32, i32, i32
  }
  func.func @transform_5(%arg0: i32, %arg1: i32) -> (i32, i32) {
    %c0_i32 = arith.constant 0 : i32
    %c0_i32_0 = arith.constant 0 : i32
    %c0_i32_1 = arith.constant 0 : i32
    return %c0_i32, %c0_i32_0 : i32, i32
  }
  func.func @transform_6(%arg0: i32, %arg1: i32) -> (i32, i32, i32) {
    %c0_i32 = arith.constant 0 : i32
    %c0_i32_0 = arith.constant 0 : i32
    %c0_i32_1 = arith.constant 0 : i32
    %c0_i32_2 = arith.constant 0 : i32
    return %c0_i32, %c0_i32_0, %c0_i32_1 : i32, i32, i32
  }
  func.func @transform_7(%arg0: i32, %arg1: i32) -> (i32, i32) {
    %c0_i32 = arith.constant 0 : i32
    %c0_i32_0 = arith.constant 0 : i32
    %c0_i32_1 = arith.constant 0 : i32
    return %c0_i32, %c0_i32_0 : i32, i32
  }
  func.func @transform_8(%arg0: i32, %arg1: i32) -> (i32, i32, i32) {
    %c0_i32 = arith.constant 0 : i32
    %c0_i32_0 = arith.constant 0 : i32
    return %arg0, %arg1, %c0_i32 : i32, i32, i32
  }
}

module attributes {stable_mosaic.version = 11 : i64} {
  func.func @_temporal_block_kernel(%arg0: i32, %arg1: i32, %arg2: memref<1x8x128xf32, #tpu.memory_space<vmem>>, %arg3: memref<1x8x128xf32, #tpu.memory_space<vmem>>, %arg4: memref<2x128x128xf32, #tpu.memory_space<vmem>>, %arg5: memref<1x128xf32, #tpu.memory_space<vmem>>, %arg6: memref<2x128x128xf32, #tpu.memory_space<vmem>>, %arg7: memref<1x128xf32, #tpu.memory_space<vmem>>, %arg8: memref<1x128x128xf32, #tpu.memory_space<vmem>>, %arg9: memref<1x128xf32, #tpu.memory_space<vmem>>, %arg10: memref<1x8x128xf32, #tpu.memory_space<vmem>>) attributes {dimension_semantics = [#tpu.dimension_semantics<parallel>, #tpu.dimension_semantics<parallel>], iteration_bounds = array<i64: 2, 2>, scalar_prefetch = 0 : i64, scratch_operands = 0 : i64, tpu.core_type = #tpu.core_type<tc>, window_params = [{transform_indices = @transform_0, window_bounds = array<i64: 1, 8, 128>}, {transform_indices = @transform_1, window_bounds = array<i64: 1, 8, 128>}, {pipeline_mode = #tpu.pipeline_mode<synchronous>, transform_indices = @transform_2, window_bounds = array<i64: 2, 128, 128>}, {pipeline_mode = #tpu.pipeline_mode<synchronous>, transform_indices = @transform_3, window_bounds = array<i64: 1, 128>}, {pipeline_mode = #tpu.pipeline_mode<synchronous>, transform_indices = @transform_4, window_bounds = array<i64: 2, 128, 128>}, {pipeline_mode = #tpu.pipeline_mode<synchronous>, transform_indices = @transform_5, window_bounds = array<i64: 1, 128>}, {pipeline_mode = #tpu.pipeline_mode<synchronous>, transform_indices = @transform_6, window_bounds = array<i64: 1, 128, 128>}, {pipeline_mode = #tpu.pipeline_mode<synchronous>, transform_indices = @transform_7, window_bounds = array<i64: 1, 128>}, {transform_indices = @transform_8, window_bounds = array<i64: 1, 8, 128>}]} {
    %c0_i32 = arith.constant 0 : i32
    %0 = arith.addi %arg1, %c0_i32 : i32
    %c8_i32 = arith.constant 8 : i32
    %1 = arith.muli %0, %c8_i32 : i32
    %c0 = arith.constant 0 : index
    %c0_0 = arith.constant 0 : index
    %c0_1 = arith.constant 0 : index
    %2 = vector.load %arg2[%c0, %c0_0, %c0_1] : memref<1x8x128xf32, #tpu.memory_space<vmem>>, vector<1x8x128xf32>
    %3 = vector.shape_cast %2 : vector<1x8x128xf32> to vector<8x128xf32>
    %c0_2 = arith.constant 0 : index
    %c0_3 = arith.constant 0 : index
    %c0_4 = arith.constant 0 : index
    %4 = vector.load %arg3[%c0_2, %c0_3, %c0_4] : memref<1x8x128xf32, #tpu.memory_space<vmem>>, vector<1x8x128xf32>
    %5 = vector.shape_cast %4 : vector<1x8x128xf32> to vector<8x128xf32>
    %6 = tpu.concatenate %3, %5 in 0 : vector<8x128xf32>, vector<8x128xf32> -> vector<16x128xf32>
    %7 = tpu.iota {dimensions = array<i32: 0>} : vector<16x1xi32>
    %c8_i32_5 = arith.constant 8 : i32
    %8 = arith.subi %1, %c8_i32_5 : i32
    %c0_i32_6 = arith.constant 0 : i32
    %9 = arith.subi %8, %c0_i32_6 : i32
    %10 = vector.broadcast %9 : i32 to vector<16x1xi32>
    %11 = arith.addi %7, %10 : vector<16x1xi32>
    %c0_i32_7 = arith.constant 0 : i32
    %12 = vector.broadcast %c0_i32_7 : i32 to vector<16x1xi32>
    %13 = arith.cmpi sge, %11, %12 : vector<16x1xi32>
    %cst = arith.constant 0.000000e+00 : f32
    %14 = vector.shape_cast %13 : vector<16x1xi1> to vector<16x1xi1>
    %15 = vector.broadcast %14 : vector<16x1xi1> to vector<16x128xi1>
    %16 = vector.broadcast %cst : f32 to vector<16x128xf32>
    %17 = arith.select %15, %6, %16 : vector<16x128xi1>, vector<16x128xf32>
    %cst_8 = arith.constant 0.000000e+00 : f32
    %18 = vector.broadcast %cst_8 : f32 to vector<10x128xf32>
    %19 = vector.extract_strided_slice %17 {offsets = [4, 0], sizes = [10, 128], strides = [1, 1]} : vector<16x128xf32> to vector<10x128xf32>
    %c0_9 = arith.constant 0 : index
    %c0_10 = arith.constant 0 : index
    %c0_11 = arith.constant 0 : index
    %20 = vector.load %arg4[%c0_9, %c0_10, %c0_11] : memref<2x128x128xf32, #tpu.memory_space<vmem>>, vector<1x128x128xf32>
    %21 = vector.shape_cast %20 : vector<1x128x128xf32> to vector<128x128xf32>
    %cst_12 = arith.constant dense<0.000000e+00> : vector<10x128xf32>
    %22 = tpu.matmul %19, %21, %cst_12 {dimension_numbers = #tpu.dot_dimension_numbers<[1], [0], [0], [1], [0, 0, 1, 1], [], []>} : vector<10x128xf32>, vector<128x128xf32>, vector<10x128xf32> -> vector<10x128xf32>
    %23 = arith.addf %18, %22 : vector<10x128xf32>
    %24 = vector.extract_strided_slice %17 {offsets = [6, 0], sizes = [10, 128], strides = [1, 1]} : vector<16x128xf32> to vector<10x128xf32>
    %c1 = arith.constant 1 : index
    %c0_13 = arith.constant 0 : index
    %c0_14 = arith.constant 0 : index
    %25 = vector.load %arg4[%c1, %c0_13, %c0_14] : memref<2x128x128xf32, #tpu.memory_space<vmem>>, vector<1x128x128xf32>
    %26 = vector.shape_cast %25 : vector<1x128x128xf32> to vector<128x128xf32>
    %cst_15 = arith.constant dense<0.000000e+00> : vector<10x128xf32>
    %27 = tpu.matmul %24, %26, %cst_15 {dimension_numbers = #tpu.dot_dimension_numbers<[1], [0], [0], [1], [0, 0, 1, 1], [], []>} : vector<10x128xf32>, vector<128x128xf32>, vector<10x128xf32> -> vector<10x128xf32>
    %28 = arith.addf %23, %27 : vector<10x128xf32>
    %c0_16 = arith.constant 0 : index
    %c0_17 = arith.constant 0 : index
    %29 = vector.load %arg5[%c0_16, %c0_17] : memref<1x128xf32, #tpu.memory_space<vmem>>, vector<1x128xf32>
    %30 = vector.broadcast %29 : vector<1x128xf32> to vector<10x128xf32>
    %31 = arith.addf %28, %30 : vector<10x128xf32>
    %cst_18 = arith.constant 0.000000e+00 : f32
    %32 = vector.broadcast %cst_18 : f32 to vector<10x128xf32>
    %33 = arith.maximumf %31, %32 : vector<10x128xf32>
    %34 = tpu.iota {dimensions = array<i32: 0>} : vector<10x1xi32>
    %c2_i32 = arith.constant 2 : i32
    %35 = arith.subi %1, %c2_i32 : i32
    %36 = vector.broadcast %35 : i32 to vector<10x1xi32>
    %37 = arith.addi %34, %36 : vector<10x1xi32>
    %c0_i32_19 = arith.constant 0 : i32
    %38 = vector.broadcast %c0_i32_19 : i32 to vector<10x1xi32>
    %39 = arith.cmpi sge, %37, %38 : vector<10x1xi32>
    %cst_20 = arith.constant 0.000000e+00 : f32
    %40 = vector.shape_cast %39 : vector<10x1xi1> to vector<10x1xi1>
    %41 = vector.broadcast %40 : vector<10x1xi1> to vector<10x128xi1>
    %42 = vector.broadcast %cst_20 : f32 to vector<10x128xf32>
    %43 = arith.select %41, %33, %42 : vector<10x128xi1>, vector<10x128xf32>
    %cst_21 = arith.constant 0.000000e+00 : f32
    %44 = vector.broadcast %cst_21 : f32 to vector<8x128xf32>
    %45 = vector.extract_strided_slice %43 {offsets = [0, 0], sizes = [8, 128], strides = [1, 1]} : vector<10x128xf32> to vector<8x128xf32>
    %c0_22 = arith.constant 0 : index
    %c0_23 = arith.constant 0 : index
    %c0_24 = arith.constant 0 : index
    %46 = vector.load %arg6[%c0_22, %c0_23, %c0_24] : memref<2x128x128xf32, #tpu.memory_space<vmem>>, vector<1x128x128xf32>
    %47 = vector.shape_cast %46 : vector<1x128x128xf32> to vector<128x128xf32>
    %cst_25 = arith.constant dense<0.000000e+00> : vector<8x128xf32>
    %48 = tpu.matmul %45, %47, %cst_25 {dimension_numbers = #tpu.dot_dimension_numbers<[1], [0], [0], [1], [0, 0, 1, 1], [], []>} : vector<8x128xf32>, vector<128x128xf32>, vector<8x128xf32> -> vector<8x128xf32>
    %49 = arith.addf %44, %48 : vector<8x128xf32>
    %50 = vector.extract_strided_slice %43 {offsets = [2, 0], sizes = [8, 128], strides = [1, 1]} : vector<10x128xf32> to vector<8x128xf32>
    %c1_26 = arith.constant 1 : index
    %c0_27 = arith.constant 0 : index
    %c0_28 = arith.constant 0 : index
    %51 = vector.load %arg6[%c1_26, %c0_27, %c0_28] : memref<2x128x128xf32, #tpu.memory_space<vmem>>, vector<1x128x128xf32>
    %52 = vector.shape_cast %51 : vector<1x128x128xf32> to vector<128x128xf32>
    %cst_29 = arith.constant dense<0.000000e+00> : vector<8x128xf32>
    %53 = tpu.matmul %50, %52, %cst_29 {dimension_numbers = #tpu.dot_dimension_numbers<[1], [0], [0], [1], [0, 0, 1, 1], [], []>} : vector<8x128xf32>, vector<128x128xf32>, vector<8x128xf32> -> vector<8x128xf32>
    %54 = arith.addf %49, %53 : vector<8x128xf32>
    %c0_30 = arith.constant 0 : index
    %c0_31 = arith.constant 0 : index
    %55 = vector.load %arg7[%c0_30, %c0_31] : memref<1x128xf32, #tpu.memory_space<vmem>>, vector<1x128xf32>
    %56 = vector.broadcast %55 : vector<1x128xf32> to vector<8x128xf32>
    %57 = arith.addf %54, %56 : vector<8x128xf32>
    %cst_32 = arith.constant 0.000000e+00 : f32
    %58 = vector.broadcast %cst_32 : f32 to vector<8x128xf32>
    %59 = arith.maximumf %57, %58 : vector<8x128xf32>
    %c0_33 = arith.constant 0 : index
    %c0_34 = arith.constant 0 : index
    %c0_35 = arith.constant 0 : index
    %60 = vector.load %arg8[%c0_33, %c0_34, %c0_35] : memref<1x128x128xf32, #tpu.memory_space<vmem>>, vector<1x128x128xf32>
    %61 = vector.shape_cast %60 : vector<1x128x128xf32> to vector<128x128xf32>
    %cst_36 = arith.constant dense<0.000000e+00> : vector<8x128xf32>
    %62 = tpu.matmul %5, %61, %cst_36 {dimension_numbers = #tpu.dot_dimension_numbers<[1], [0], [0], [1], [0, 0, 1, 1], [], []>} : vector<8x128xf32>, vector<128x128xf32>, vector<8x128xf32> -> vector<8x128xf32>
    %c0_37 = arith.constant 0 : index
    %c0_38 = arith.constant 0 : index
    %63 = vector.load %arg9[%c0_37, %c0_38] : memref<1x128xf32, #tpu.memory_space<vmem>>, vector<1x128xf32>
    %64 = vector.broadcast %63 : vector<1x128xf32> to vector<8x128xf32>
    %65 = arith.addf %62, %64 : vector<8x128xf32>
    %66 = arith.addf %59, %65 : vector<8x128xf32>
    %cst_39 = arith.constant 0.000000e+00 : f32
    %67 = vector.broadcast %cst_39 : f32 to vector<8x128xf32>
    %68 = arith.maximumf %66, %67 : vector<8x128xf32>
    %c0_40 = arith.constant 0 : index
    %c0_41 = arith.constant 0 : index
    %c0_42 = arith.constant 0 : index
    %69 = vector.load %arg10[%c0_40, %c0_41, %c0_42] : memref<1x8x128xf32, #tpu.memory_space<vmem>>, vector<1x8x128xf32>
    %70 = vector.shape_cast %69 : vector<1x8x128xf32> to vector<8x128xf32>
    %71 = vector.shape_cast %68 : vector<8x128xf32> to vector<1x8x128xf32>
    tpu.vector_store %arg10[%c0_40, %c0_41, %c0_42], %71 {strides = array<i32>} : memref<1x8x128xf32, #tpu.memory_space<vmem>>, vector<1x8x128xf32>,
    return
  }
  func.func @transform_0(%arg0: i32, %arg1: i32) -> (i32, i32, i32) {
    %c0_i32 = arith.constant 0 : i32
    %0 = arith.addi %arg1, %c0_i32 : i32
    %c1_i32 = arith.constant 1 : i32
    %1 = arith.subi %0, %c1_i32 : i32
    %c0_i32_0 = arith.constant 0 : i32
    %2 = arith.maxsi %1, %c0_i32_0 : i32
    %c0_i32_1 = arith.constant 0 : i32
    %c0_i32_2 = arith.constant 0 : i32
    return %arg0, %2, %c0_i32_1 : i32, i32, i32
  }
  func.func @transform_1(%arg0: i32, %arg1: i32) -> (i32, i32, i32) {
    %c0_i32 = arith.constant 0 : i32
    %0 = arith.addi %arg1, %c0_i32 : i32
    %c0_i32_0 = arith.constant 0 : i32
    %c0_i32_1 = arith.constant 0 : i32
    return %arg0, %0, %c0_i32_0 : i32, i32, i32
  }
  func.func @transform_2(%arg0: i32, %arg1: i32) -> (i32, i32, i32) {
    %c0_i32 = arith.constant 0 : i32
    %c0_i32_0 = arith.constant 0 : i32
    %c0_i32_1 = arith.constant 0 : i32
    %c0_i32_2 = arith.constant 0 : i32
    return %c0_i32, %c0_i32_0, %c0_i32_1 : i32, i32, i32
  }
  func.func @transform_3(%arg0: i32, %arg1: i32) -> (i32, i32) {
    %c0_i32 = arith.constant 0 : i32
    %c0_i32_0 = arith.constant 0 : i32
    %c0_i32_1 = arith.constant 0 : i32
    return %c0_i32, %c0_i32_0 : i32, i32
  }
  func.func @transform_4(%arg0: i32, %arg1: i32) -> (i32, i32, i32) {
    %c0_i32 = arith.constant 0 : i32
    %c0_i32_0 = arith.constant 0 : i32
    %c0_i32_1 = arith.constant 0 : i32
    %c0_i32_2 = arith.constant 0 : i32
    return %c0_i32, %c0_i32_0, %c0_i32_1 : i32, i32, i32
  }
  func.func @transform_5(%arg0: i32, %arg1: i32) -> (i32, i32) {
    %c0_i32 = arith.constant 0 : i32
    %c0_i32_0 = arith.constant 0 : i32
    %c0_i32_1 = arith.constant 0 : i32
    return %c0_i32, %c0_i32_0 : i32, i32
  }
  func.func @transform_6(%arg0: i32, %arg1: i32) -> (i32, i32, i32) {
    %c0_i32 = arith.constant 0 : i32
    %c0_i32_0 = arith.constant 0 : i32
    %c0_i32_1 = arith.constant 0 : i32
    %c0_i32_2 = arith.constant 0 : i32
    return %c0_i32, %c0_i32_0, %c0_i32_1 : i32, i32, i32
  }
  func.func @transform_7(%arg0: i32, %arg1: i32) -> (i32, i32) {
    %c0_i32 = arith.constant 0 : i32
    %c0_i32_0 = arith.constant 0 : i32
    %c0_i32_1 = arith.constant 0 : i32
    return %c0_i32, %c0_i32_0 : i32, i32
  }
  func.func @transform_8(%arg0: i32, %arg1: i32) -> (i32, i32, i32) {
    %c0_i32 = arith.constant 0 : i32
    %c0_i32_0 = arith.constant 0 : i32
    return %arg0, %arg1, %c0_i32 : i32, i32, i32
  }
}

module attributes {stable_mosaic.version = 11 : i64} {
  func.func @_linear_kernel(%arg0: memref<2x128xf32, #tpu.memory_space<vmem>>, %arg1: memref<128x128xf32, #tpu.memory_space<vmem>>, %arg2: memref<1x128xf32, #tpu.memory_space<vmem>>, %arg3: memref<2x128xf32, #tpu.memory_space<vmem>>) attributes {dimension_semantics = [], scalar_prefetch = 0 : i64, scratch_operands = 0 : i64, tpu.core_type = #tpu.core_type<tc>} {
    %c0 = arith.constant 0 : index
    %c0_0 = arith.constant 0 : index
    %0 = vector.load %arg0[%c0, %c0_0] : memref<2x128xf32, #tpu.memory_space<vmem>>, vector<2x128xf32>
    %c0_1 = arith.constant 0 : index
    %c0_2 = arith.constant 0 : index
    %1 = vector.load %arg1[%c0_1, %c0_2] : memref<128x128xf32, #tpu.memory_space<vmem>>, vector<128x128xf32>
    %cst = arith.constant dense<0.000000e+00> : vector<2x128xf32>
    %2 = tpu.matmul %0, %1, %cst {dimension_numbers = #tpu.dot_dimension_numbers<[1], [0], [0], [1], [0, 0, 1, 1], [], []>} : vector<2x128xf32>, vector<128x128xf32>, vector<2x128xf32> -> vector<2x128xf32>
    %c0_3 = arith.constant 0 : index
    %c0_4 = arith.constant 0 : index
    %3 = vector.load %arg2[%c0_3, %c0_4] : memref<1x128xf32, #tpu.memory_space<vmem>>, vector<1x128xf32>
    %4 = vector.broadcast %3 : vector<1x128xf32> to vector<2x128xf32>
    %5 = arith.addf %2, %4 : vector<2x128xf32>
    %c0_5 = arith.constant 0 : index
    %c0_6 = arith.constant 0 : index
    %6 = vector.load %arg3[%c0_5, %c0_6] : memref<2x128xf32, #tpu.memory_space<vmem>>, vector<2x128xf32>
    tpu.vector_store %arg3[%c0_5, %c0_6], %5 {strides = array<i32>} : memref<2x128xf32, #tpu.memory_space<vmem>>, vector<2x128xf32>,
    return
  }
}

module attributes {stable_mosaic.version = 11 : i64} {
  func.func @_temporal_block_kernel(%arg0: i32, %arg1: i32, %arg2: memref<1x8x128xf32, #tpu.memory_space<vmem>>, %arg3: memref<1x8x128xf32, #tpu.memory_space<vmem>>, %arg4: memref<2x128x128xf32, #tpu.memory_space<vmem>>, %arg5: memref<1x128xf32, #tpu.memory_space<vmem>>, %arg6: memref<2x128x128xf32, #tpu.memory_space<vmem>>, %arg7: memref<1x128xf32, #tpu.memory_space<vmem>>, %arg8: memref<1x8x128xf32, #tpu.memory_space<vmem>>) attributes {dimension_semantics = [#tpu.dimension_semantics<parallel>, #tpu.dimension_semantics<parallel>], iteration_bounds = array<i64: 2, 1>, scalar_prefetch = 0 : i64, scratch_operands = 0 : i64, tpu.core_type = #tpu.core_type<tc>, window_params = [{transform_indices = @transform_0, window_bounds = array<i64: 1, 8, 128>}, {transform_indices = @transform_1, window_bounds = array<i64: 1, 8, 128>}, {pipeline_mode = #tpu.pipeline_mode<synchronous>, transform_indices = @transform_2, window_bounds = array<i64: 2, 128, 128>}, {pipeline_mode = #tpu.pipeline_mode<synchronous>, transform_indices = @transform_3, window_bounds = array<i64: 1, 128>}, {pipeline_mode = #tpu.pipeline_mode<synchronous>, transform_indices = @transform_4, window_bounds = array<i64: 2, 128, 128>}, {pipeline_mode = #tpu.pipeline_mode<synchronous>, transform_indices = @transform_5, window_bounds = array<i64: 1, 128>}, {transform_indices = @transform_6, window_bounds = array<i64: 1, 8, 128>}]} {
    %c1_i32 = arith.constant 1 : i32
    %0 = arith.addi %arg1, %c1_i32 : i32
    %c8_i32 = arith.constant 8 : i32
    %1 = arith.muli %0, %c8_i32 : i32
    %c0 = arith.constant 0 : index
    %c0_0 = arith.constant 0 : index
    %c0_1 = arith.constant 0 : index
    %2 = vector.load %arg2[%c0, %c0_0, %c0_1] : memref<1x8x128xf32, #tpu.memory_space<vmem>>, vector<1x8x128xf32>
    %3 = vector.shape_cast %2 : vector<1x8x128xf32> to vector<8x128xf32>
    %c0_2 = arith.constant 0 : index
    %c0_3 = arith.constant 0 : index
    %c0_4 = arith.constant 0 : index
    %4 = vector.load %arg3[%c0_2, %c0_3, %c0_4] : memref<1x8x128xf32, #tpu.memory_space<vmem>>, vector<1x8x128xf32>
    %5 = vector.shape_cast %4 : vector<1x8x128xf32> to vector<8x128xf32>
    %6 = tpu.concatenate %3, %5 in 0 : vector<8x128xf32>, vector<8x128xf32> -> vector<16x128xf32>
    %7 = tpu.iota {dimensions = array<i32: 0>} : vector<16x1xi32>
    %c8_i32_5 = arith.constant 8 : i32
    %8 = arith.subi %1, %c8_i32_5 : i32
    %c0_i32 = arith.constant 0 : i32
    %9 = arith.subi %8, %c0_i32 : i32
    %10 = vector.broadcast %9 : i32 to vector<16x1xi32>
    %11 = arith.addi %7, %10 : vector<16x1xi32>
    %c0_i32_6 = arith.constant 0 : i32
    %12 = vector.broadcast %c0_i32_6 : i32 to vector<16x1xi32>
    %13 = arith.cmpi sge, %11, %12 : vector<16x1xi32>
    %cst = arith.constant 0.000000e+00 : f32
    %14 = vector.shape_cast %13 : vector<16x1xi1> to vector<16x1xi1>
    %15 = vector.broadcast %14 : vector<16x1xi1> to vector<16x128xi1>
    %16 = vector.broadcast %cst : f32 to vector<16x128xf32>
    %17 = arith.select %15, %6, %16 : vector<16x128xi1>, vector<16x128xf32>
    %cst_7 = arith.constant 0.000000e+00 : f32
    %18 = vector.broadcast %cst_7 : f32 to vector<12x128xf32>
    %19 = vector.extract_strided_slice %17 {offsets = [0, 0], sizes = [12, 128], strides = [1, 1]} : vector<16x128xf32> to vector<12x128xf32>
    %c0_8 = arith.constant 0 : index
    %c0_9 = arith.constant 0 : index
    %c0_10 = arith.constant 0 : index
    %20 = vector.load %arg4[%c0_8, %c0_9, %c0_10] : memref<2x128x128xf32, #tpu.memory_space<vmem>>, vector<1x128x128xf32>
    %21 = vector.shape_cast %20 : vector<1x128x128xf32> to vector<128x128xf32>
    %cst_11 = arith.constant dense<0.000000e+00> : vector<12x128xf32>
    %22 = tpu.matmul %19, %21, %cst_11 {dimension_numbers = #tpu.dot_dimension_numbers<[1], [0], [0], [1], [0, 0, 1, 1], [], []>} : vector<12x128xf32>, vector<128x128xf32>, vector<12x128xf32> -> vector<12x128xf32>
    %23 = arith.addf %18, %22 : vector<12x128xf32>
    %24 = vector.extract_strided_slice %17 {offsets = [4, 0], sizes = [12, 128], strides = [1, 1]} : vector<16x128xf32> to vector<12x128xf32>
    %c1 = arith.constant 1 : index
    %c0_12 = arith.constant 0 : index
    %c0_13 = arith.constant 0 : index
    %25 = vector.load %arg4[%c1, %c0_12, %c0_13] : memref<2x128x128xf32, #tpu.memory_space<vmem>>, vector<1x128x128xf32>
    %26 = vector.shape_cast %25 : vector<1x128x128xf32> to vector<128x128xf32>
    %cst_14 = arith.constant dense<0.000000e+00> : vector<12x128xf32>
    %27 = tpu.matmul %24, %26, %cst_14 {dimension_numbers = #tpu.dot_dimension_numbers<[1], [0], [0], [1], [0, 0, 1, 1], [], []>} : vector<12x128xf32>, vector<128x128xf32>, vector<12x128xf32> -> vector<12x128xf32>
    %28 = arith.addf %23, %27 : vector<12x128xf32>
    %c0_15 = arith.constant 0 : index
    %c0_16 = arith.constant 0 : index
    %29 = vector.load %arg5[%c0_15, %c0_16] : memref<1x128xf32, #tpu.memory_space<vmem>>, vector<1x128xf32>
    %30 = vector.broadcast %29 : vector<1x128xf32> to vector<12x128xf32>
    %31 = arith.addf %28, %30 : vector<12x128xf32>
    %cst_17 = arith.constant 0.000000e+00 : f32
    %32 = vector.broadcast %cst_17 : f32 to vector<12x128xf32>
    %33 = arith.maximumf %31, %32 : vector<12x128xf32>
    %34 = tpu.iota {dimensions = array<i32: 0>} : vector<12x1xi32>
    %c4_i32 = arith.constant 4 : i32
    %35 = arith.subi %1, %c4_i32 : i32
    %36 = vector.broadcast %35 : i32 to vector<12x1xi32>
    %37 = arith.addi %34, %36 : vector<12x1xi32>
    %c0_i32_18 = arith.constant 0 : i32
    %38 = vector.broadcast %c0_i32_18 : i32 to vector<12x1xi32>
    %39 = arith.cmpi sge, %37, %38 : vector<12x1xi32>
    %cst_19 = arith.constant 0.000000e+00 : f32
    %40 = vector.shape_cast %39 : vector<12x1xi1> to vector<12x1xi1>
    %41 = vector.broadcast %40 : vector<12x1xi1> to vector<12x128xi1>
    %42 = vector.broadcast %cst_19 : f32 to vector<12x128xf32>
    %43 = arith.select %41, %33, %42 : vector<12x128xi1>, vector<12x128xf32>
    %cst_20 = arith.constant 0.000000e+00 : f32
    %44 = vector.broadcast %cst_20 : f32 to vector<8x128xf32>
    %45 = vector.extract_strided_slice %43 {offsets = [0, 0], sizes = [8, 128], strides = [1, 1]} : vector<12x128xf32> to vector<8x128xf32>
    %c0_21 = arith.constant 0 : index
    %c0_22 = arith.constant 0 : index
    %c0_23 = arith.constant 0 : index
    %46 = vector.load %arg6[%c0_21, %c0_22, %c0_23] : memref<2x128x128xf32, #tpu.memory_space<vmem>>, vector<1x128x128xf32>
    %47 = vector.shape_cast %46 : vector<1x128x128xf32> to vector<128x128xf32>
    %cst_24 = arith.constant dense<0.000000e+00> : vector<8x128xf32>
    %48 = tpu.matmul %45, %47, %cst_24 {dimension_numbers = #tpu.dot_dimension_numbers<[1], [0], [0], [1], [0, 0, 1, 1], [], []>} : vector<8x128xf32>, vector<128x128xf32>, vector<8x128xf32> -> vector<8x128xf32>
    %49 = arith.addf %44, %48 : vector<8x128xf32>
    %50 = vector.extract_strided_slice %43 {offsets = [4, 0], sizes = [8, 128], strides = [1, 1]} : vector<12x128xf32> to vector<8x128xf32>
    %c1_25 = arith.constant 1 : index
    %c0_26 = arith.constant 0 : index
    %c0_27 = arith.constant 0 : index
    %51 = vector.load %arg6[%c1_25, %c0_26, %c0_27] : memref<2x128x128xf32, #tpu.memory_space<vmem>>, vector<1x128x128xf32>
    %52 = vector.shape_cast %51 : vector<1x128x128xf32> to vector<128x128xf32>
    %cst_28 = arith.constant dense<0.000000e+00> : vector<8x128xf32>
    %53 = tpu.matmul %50, %52, %cst_28 {dimension_numbers = #tpu.dot_dimension_numbers<[1], [0], [0], [1], [0, 0, 1, 1], [], []>} : vector<8x128xf32>, vector<128x128xf32>, vector<8x128xf32> -> vector<8x128xf32>
    %54 = arith.addf %49, %53 : vector<8x128xf32>
    %c0_29 = arith.constant 0 : index
    %c0_30 = arith.constant 0 : index
    %55 = vector.load %arg7[%c0_29, %c0_30] : memref<1x128xf32, #tpu.memory_space<vmem>>, vector<1x128xf32>
    %56 = vector.broadcast %55 : vector<1x128xf32> to vector<8x128xf32>
    %57 = arith.addf %54, %56 : vector<8x128xf32>
    %cst_31 = arith.constant 0.000000e+00 : f32
    %58 = vector.broadcast %cst_31 : f32 to vector<8x128xf32>
    %59 = arith.maximumf %57, %58 : vector<8x128xf32>
    %60 = arith.addf %59, %5 : vector<8x128xf32>
    %cst_32 = arith.constant 0.000000e+00 : f32
    %61 = vector.broadcast %cst_32 : f32 to vector<8x128xf32>
    %62 = arith.maximumf %60, %61 : vector<8x128xf32>
    %c0_33 = arith.constant 0 : index
    %c0_34 = arith.constant 0 : index
    %c0_35 = arith.constant 0 : index
    %63 = vector.load %arg8[%c0_33, %c0_34, %c0_35] : memref<1x8x128xf32, #tpu.memory_space<vmem>>, vector<1x8x128xf32>
    %64 = vector.shape_cast %63 : vector<1x8x128xf32> to vector<8x128xf32>
    %65 = vector.shape_cast %62 : vector<8x128xf32> to vector<1x8x128xf32>
    tpu.vector_store %arg8[%c0_33, %c0_34, %c0_35], %65 {strides = array<i32>} : memref<1x8x128xf32, #tpu.memory_space<vmem>>, vector<1x8x128xf32>,
    return
  }
  func.func @transform_0(%arg0: i32, %arg1: i32) -> (i32, i32, i32) {
    %c1_i32 = arith.constant 1 : i32
    %0 = arith.addi %arg1, %c1_i32 : i32
    %c1_i32_0 = arith.constant 1 : i32
    %1 = arith.subi %0, %c1_i32_0 : i32
    %c0_i32 = arith.constant 0 : i32
    %2 = arith.maxsi %1, %c0_i32 : i32
    %c0_i32_1 = arith.constant 0 : i32
    %c0_i32_2 = arith.constant 0 : i32
    return %arg0, %2, %c0_i32_1 : i32, i32, i32
  }
  func.func @transform_1(%arg0: i32, %arg1: i32) -> (i32, i32, i32) {
    %c1_i32 = arith.constant 1 : i32
    %0 = arith.addi %arg1, %c1_i32 : i32
    %c0_i32 = arith.constant 0 : i32
    %c0_i32_0 = arith.constant 0 : i32
    return %arg0, %0, %c0_i32 : i32, i32, i32
  }
  func.func @transform_2(%arg0: i32, %arg1: i32) -> (i32, i32, i32) {
    %c0_i32 = arith.constant 0 : i32
    %c0_i32_0 = arith.constant 0 : i32
    %c0_i32_1 = arith.constant 0 : i32
    %c0_i32_2 = arith.constant 0 : i32
    return %c0_i32, %c0_i32_0, %c0_i32_1 : i32, i32, i32
  }
  func.func @transform_3(%arg0: i32, %arg1: i32) -> (i32, i32) {
    %c0_i32 = arith.constant 0 : i32
    %c0_i32_0 = arith.constant 0 : i32
    %c0_i32_1 = arith.constant 0 : i32
    return %c0_i32, %c0_i32_0 : i32, i32
  }
  func.func @transform_4(%arg0: i32, %arg1: i32) -> (i32, i32, i32) {
    %c0_i32 = arith.constant 0 : i32
    %c0_i32_0 = arith.constant 0 : i32
    %c0_i32_1 = arith.constant 0 : i32
    %c0_i32_2 = arith.constant 0 : i32
    return %c0_i32, %c0_i32_0, %c0_i32_1 : i32, i32, i32
  }
  func.func @transform_5(%arg0: i32, %arg1: i32) -> (i32, i32) {
    %c0_i32 = arith.constant 0 : i32
    %c0_i32_0 = arith.constant 0 : i32
    %c0_i32_1 = arith.constant 0 : i32
    return %c0_i32, %c0_i32_0 : i32, i32
  }
  func.func @transform_6(%arg0: i32, %arg1: i32) -> (i32, i32, i32) {
    %c0_i32 = arith.constant 0 : i32
    %c0_i32_0 = arith.constant 0 : i32
    return %arg0, %arg1, %c0_i32 : i32, i32, i32
  }
}

</mosaic_0001>

<llo_original>
// kernel: tcn_forward.7
$region0: #{tcn_forward.7}
  #allocation0 [shape = 'u32[]', space=smem, size = 0x4, offset = 0x4, fixed_abs, tag = 'smem constant byte address 0x4 - core index']
  #allocation1 [shape = 'u32[144,128]{1,0:T(1,128)}', space=vmem, size = 0x12000, scoped, tag = 'internal scratch']
  %s0 = inlined_call_operand.vmem [shape: f32[2,128], index: 0, kind: input, shape index: {}]
  %s1 = inlined_call_operand.vmem [shape: f32[128,128], index: 1, kind: input, shape index: {}]
  %s2 = inlined_call_operand.vmem [shape: f32[1,128], index: 2, kind: input, shape index: {}]
  %s3 = inlined_call_operand.hbm [shape: f32[2,128], index: 3, kind: output, shape index: {}]
  %s4 = sld [smem:[#allocation0]]
  $region22: #{tcn_forward.7} parent=0
    _
  %s6 = ssub.s32 1, %s4
  %s7 = scalar_select 0, %s6, %s4
  $region1: #{tcn_forward.7} parent=0
    #allocation2 [shape = 'u8[1024]{0}', space=vmem, size = 0x400, scoped, tag = 'output window, operand 0, single buffered']
    #allocation3 [shape = 's32[1]{0}', space=sflag, size = 0x4, scoped, tag = 'scoped memory for tcn_forward.7']
    %8 = vsyncpa [#allocation3], 0
    // Predicated region
    $region2: #{tcn_forward.7} parent=1 // pred_check
      _
    $region3: #{tcn_forward.7} parent=1 // pred_check_branch
      %10 = sbr.rel (0) target = $region5
    $region4: #{tcn_forward.7} parent=1 // pred_region
      _
    $region5: #{tcn_forward.7} parent=1 // pred_fallthru
      _
    // Predicated region
    $region6: #{tcn_forward.7} parent=1 // pred_check
      _
    $region7: #{tcn_forward.7} parent=1 // pred_check_branch
      %12 = sbr.rel (0) target = $region9
    $region8: #{tcn_forward.7} parent=1 // pred_region
      _
    $region9: #{tcn_forward.7} parent=1 // pred_fallthru
      _
    // Predicated region
    $region10: #{tcn_forward.7} parent=1 // pred_check
      _
    $region11: #{tcn_forward.7} parent=1 // pred_check_branch
      %14 = sbr.rel (0) target = $region13
    $region12: #{tcn_forward.7} parent=1 // pred_region
      _
    $region13: #{tcn_forward.7} parent=1 // pred_fallthru
      _
    %v15 = vld [vmem:[%s0] sm:$0x3]
    %v16 = vld [vmem:[%s1] sm:$0xff]
    %v17 = vld [vmem:[%s1 + $0x8] sm:$0xff]
    %v18 = vld [vmem:[%s1 + $0x10] sm:$0xff]
    %v19 = vld [vmem:[%s1 + $0x18] sm:$0xff]
    %v20 = vld [vmem:[%s1 + $0x20] sm:$0xff]
    %v21 = vld [vmem:[%s1 + $0x28] sm:$0xff]
    %v22 = vld [vmem:[%s1 + $0x30] sm:$0xff]
    %v23 = vld [vmem:[%s1 + $0x38] sm:$0xff]
    %v24 = vld [vmem:[%s1 + $0x40] sm:$0xff]
    %v25 = vld [vmem:[%s1 + $0x48] sm:$0xff]
    %v26 = vld [vmem:[%s1 + $0x50] sm:$0xff]
    %v27 = vld [vmem:[%s1 + $0x58] sm:$0xff]
    %v28 = vld [vmem:[%s1 + $0x60] sm:$0xff]
    %v29 = vld [vmem:[%s1 + $0x68] sm:$0xff]
    %v30 = vld [vmem:[%s1 + $0x70] sm:$0xff]
    %v31 = vld [vmem:[%s1 + $0x78] sm:$0xff]
    %v32 = vld [vmem:[%s2] sm:$0x1]
    %v34 = vlaneseq
    %v35 = vshrl.u32 %v34, 7
    %v36 = vsub.s32 0, %v35
    %v37 = vrot.slane %v32, %v36
    %39 = vmatprep.subr.mxu0 0.0
    %40 = vmatpush1.msra.mxu0 %v16
    %41 = vmatprep.subr.mxu0 0.0
    %42 = vmatpush1.msra.mxu0 %v17
    %43 = vmatprep.subr.mxu0 0.0
    %44 = vmatpush1.msra.mxu0 %v18
    %45 = vmatprep.subr.mxu0 0.0
    %46 = vmatpush1.msra.mxu0 %v19
    %47 = vmatprep.subr.mxu0 0.0
    %48 = vmatpush1.msra.mxu0 %v20
    %49 = vmatprep.subr.mxu0 0.0
    %50 = vmatpush1.msra.mxu0 %v21
    %51 = vmatprep.subr.mxu0 0.0
    %52 = vmatpush1.msra.mxu0 %v22
    %53 = vmatprep.subr.mxu0 0.0
    %54 = vmatpush1.msra.mxu0 %v23
    %55 = vmatprep.subr.mxu0 0.0
    %56 = vmatpush1.msra.mxu0 %v24
    %57 = vmatprep.subr.mxu0 0.0
    %58 = vmatpush1.msra.mxu0 %v25
    %59 = vmatprep.subr.mxu0 0.0
    %60 = vmatpush1.msra.mxu0 %v26
    %61 = vmatprep.subr.mxu0 0.0
    %62 = vmatpush1.msra.mxu0 %v27
    %63 = vmatprep.subr.mxu0 0.0
    %64 = vmatpush1.msra.mxu0 %v28
    %65 = vmatprep.subr.mxu0 0.0
    %66 = vmatpush1.msra.mxu0 %v29
    %67 = vmatprep.subr.mxu0 0.0
    %68 = vmatpush1.msra.mxu0 %v30
    %69 = vmatprep.subr.mxu0 0.0
    %70 = vmatpush1.msra.mxu0 %v31
    %71 = vmatprep.subr.mxu0 0.0
    %72 = vmatpush1.msra.mxu0 0.0
    %73 = vmatprep.subr.mxu0 0.0
    %74 = vmatpush1.msra.mxu0 0.0
    %75 = vmatprep.subr.mxu0 0.0
    %76 = vmatpush1.msra.mxu0 0.0
    %77 = vmatprep.subr.mxu0 0.0
    %78 = vmatpush1.msra.mxu0 0.0
    %79 = vmatprep.subr.mxu0 0.0
    %80 = vmatpush1.msra.mxu0 0.0
    %81 = vmatprep.subr.mxu0 0.0
    %82 = vmatpush1.msra.mxu0 0.0
    %83 = vmatprep.subr.mxu0 0.0
    %84 = vmatpush1.msra.mxu0 0.0
    %85 = vmatprep.subr.mxu0 0.0
    %86 = vmatpush1.msra.mxu0 0.0
    %87 = vmatprep.subr.mxu0 0.0
    %88 = vmatpush1.msra.mxu0 0.0
    %89 = vmatprep.subr.mxu0 0.0
    %90 = vmatpush1.msra.mxu0 0.0
    %91 = vmatprep.subr.mxu0 0.0
    %92 = vmatpush1.msra.mxu0 0.0
    %93 = vmatprep.subr.mxu0 0.0
    %94 = vmatpush1.msra.mxu0 0.0
    %95 = vmatprep.subr.mxu0 0.0
    %96 = vmatpush1.msra.mxu0 0.0
    %97 = vmatprep.subr.mxu0 0.0
    %98 = vmatpush1.msra.mxu0 0.0
    %99 = vmatprep.subr.mxu0 0.0
    %100 = vmatpush1.msra.mxu0 0.0
    %101 = vmatprep.subr.mxu0 0.0
    %102 = vmatpush1.msra.mxu0 0.0
    %103 = vmatprep.mubr.f32.mxu0 0.0
    %104 = vmatmul.mubr.f32.gmra.mrb[0].mxu0 %v15
    %v105 = vpop.f32.mrb[0].mxu0
    %v106 = vadd.f32 %v37, %v105
    %v107 = vpop.f32.mrb[0].mxu0
    %108 = vdwg.mxu0
    %109 = vst [vmem:[#allocation2] sm:$0x3] %v106
    // Predicated region
    $region14: #{tcn_forward.7} parent=1 // pred_check
      _
    $region15: #{tcn_forward.7} parent=1 // pred_check_branch
      %111 = sbr.rel (0) target = $region17
    $region16: #{tcn_forward.7} parent=1 // pred_region
      %s113 = ssub.s32 32, 32
      %114 = vsyncadd [#allocation3], %s113
      %s116 = sshll.u32 [#allocation2], 4
      %s117 = int_to_ptr.vmem [resolvable:$true] %s116
      %119 = dma.vmem_to_hbm [thread:$0]  %s117, 32, %s3, [#allocation3]
    $region17: #{tcn_forward.7} parent=1 // pred_fallthru
      _
    // Predicated region
    $region18: #{tcn_forward.7} parent=1 // pred_check
      _
    $region19: #{tcn_forward.7} parent=1 // pred_check_branch
      %121 = sbr.rel (0) target = $region21
    $region20: #{tcn_forward.7} parent=1 // pred_region
      %122 = dma.done [#allocation3], 32
    $region21: #{tcn_forward.7} parent=1 // pred_fallthru
      _
    %123 = vsyncpa [#allocation3], 1

// kernel: tcn_forward.4
$region0: #{tcn_forward.4}
  #allocation0 [shape = 'u32[]', space=smem, size = 0x4, offset = 0x4, fixed_abs, tag = 'smem constant byte address 0x4 - core index']
  #allocation1 [shape = 'u32[144,128]{1,0:T(1,128)}', space=vmem, size = 0x12000, scoped, tag = 'internal scratch']
  %s0 = inlined_call_operand.vmem [shape: f32[2,16,128], index: 0, kind: input, shape index: {}, may-alias: {0,1}]
  %s1 = inlined_call_operand.vmem [shape: f32[2,16,128], index: 1, kind: input, shape index: {}, may-alias: {0,1}]
  %s2 = inlined_call_operand.hbm [shape: f32[2,128,128], index: 2, kind: input, shape index: {}]
  %s3 = inlined_call_operand.vmem [shape: f32[1,128], index: 3, kind: input, shape index: {}]
  %s4 = inlined_call_operand.hbm [shape: f32[2,128,128], index: 4, kind: input, shape index: {}]
  %s5 = inlined_call_operand.vmem [shape: f32[1,128], index: 5, kind: input, shape index: {}]
  %s6 = inlined_call_operand.vmem [shape: f32[1,128,128], index: 6, kind: input, shape index: {}]
  %s7 = inlined_call_operand.vmem [shape: f32[1,128], index: 7, kind: input, shape index: {}]
  %s8 = inlined_call_operand.vmem [shape: f32[2,16,128], index: 8, kind: output, shape index: {}]
  %s9 = sld [smem:[#allocation0]]
  $region73: #{tcn_forward.4} parent=0
    _
  %s11 = ssub.s32 1, %s9
  %s12 = scalar_select 0, %s11, %s9
  $region1: #{tcn_forward.4} parent=0
    #allocation2 [shape = 'u8[131072]{0}', space=vmem, size = 0x20000, scoped, tag = 'input window, operand 2, single buffered']
    #allocation3 [shape = 's32[2]{0}', space=sflag, size = 0x8, scoped, tag = 'scoped memory for tcn_forward.4']
    #allocation4 [shape = 'u8[131072]{0}', space=vmem, size = 0x20000, scoped, tag = 'input window, operand 4, single buffered']
    #allocation5 [shape = 's32[1]{0}', space=sflag, size = 0x4, scoped, tag = 'scoped memory for tcn_forward.4']
    %13 = vsyncpa [#allocation3], 0
    %14 = vsyncpa [#allocation5], 0
    loop: start=0, step=1, limit=6
    $region2: #{tcn_forward.4} parent=1 // loop_pre_header
      _
    $region3: #{tcn_forward.4} parent=1 // loop_header
      %s16 = sphi 0, %s20
      %p17 = scmp.ge.s32.totalorder %s16, 6
      %s23 = sphi 0, %s35
      %s24 = sphi 0, %s31
      %s25 = sphi 0, %s23
      %s26 = sphi 0, %s24
      %s27 = sphi 0, %s25
      %s28 = sphi 0, %s26
      %s46 = sphi 0, %s48
      %s49 = sphi 0, %s46
      %s50 = sphi 0, %s49
      %s66 = sphi 0, %s50
      %s74 = sphi 0, %s76
      %s77 = sphi 0, %s74
      %s78 = sphi 0, %s77
      %s94 = sphi 0, %s78
      %s98 = sphi 0, %s98
      %s100 = sphi 0, %s98
      %s101 = sphi 0, %s100
      %s115 = sphi 0, %s101
      %s119 = sphi 0, %s119
      %s121 = sphi 0, %s119
      %s122 = sphi 0, %s121
      %s136 = sphi 0, %s122
      %s140 = sphi 0, %s140
      %s142 = sphi 0, %s140
      %s143 = sphi 0, %s142
      %s157 = sphi 0, %s143
      %s161 = sphi 0, %s161
      %s163 = sphi 0, %s161
      %s164 = sphi 0, %s163
      %s178 = sphi 0, %s164
      %s182 = sphi 0, %s182
      %s184 = sphi 0, %s182
      %s185 = sphi 0, %s184
      %s199 = sphi 0, %s185
      %s203 = sphi 0, %s203
      %s205 = sphi 0, %s203
      %s206 = sphi 0, %s205
      %s220 = sphi 0, %s206
      %s228 = sphi 0, %s230
      %s231 = sphi 0, %s228
      %s232 = sphi 0, %s231
      %s248 = sphi 0, %s232
    $region4: #{tcn_forward.4} parent=1 // loop_header_branch
      %19 = sbr.rel (%p17) target = $region8
    $region5: #{tcn_forward.4} parent=1 // loop_body
      %s21 = ssub.s32 %s16, 1
      %s22 = ssub.s32 %s16, 2
      %s29 = sadd.s32 1, %s24
      %p30 = scmp.ge.s32.totalorder %s29, 2
      %s31 = scalar_select %p30, 0, %s29
      %s32 = sadd.s32 1, %s23
      %s33 = scalar_select %p30, %s32, %s23
      %p34 = scmp.ge.s32.totalorder %s33, 2
      %s35 = scalar_select %p34, 0, %s33
      %s36 = sadd.s32 %s24, 4294967295
      %p37 = scmp.gt.s32.totalorder %s36, 0
      %s38 = scalar_select %p37, %s36, 0
      %s39 = sadd.s32 %s31, 4294967295
      %p40 = scmp.gt.s32.totalorder %s39, 0
      %s41 = scalar_select %p40, %s39, 0
      %s42 = ssub.s32 %s23, %s35
      %s43 = ssub.s32 %s38, %s41
      %s44 = sor.u32 %s42, %s43
      %p45 = scmp.eq.s32.totalorder %s44, 0
      %s47 = sadd.s32 %s46, 1
      %s48 = scalar_select %p45, %s46, %s47
      %p51 = pneg %p45
      %p52 = scmp.eq.s32.totalorder %s16, 3
      %p53 = por %p51, %p52
      %p54 = scmp.ne.s32.totalorder %s46, %s49
      %p55 = scmp.eq.s32.totalorder %s16, 0
      %p56 = por %p54, %p55
      %p57 = scmp.ne.s32.totalorder %s46, %s49
      %p58 = scmp.eq.s32.totalorder %s21, 3
      %p59 = por %p57, %p58
      %p60 = scmp.ne.s32.totalorder %s49, %s50
      %p61 = scmp.eq.s32.totalorder %s21, 0
      %p62 = por %p60, %p61
      %p63 = scmp.ne.s32.totalorder %s49, %s50
      %p64 = scmp.eq.s32.totalorder %s22, 3
      %p65 = por %p63, %p64
      %p67 = scmp.ne.s32.totalorder %s50, %s66
      %p68 = scmp.eq.s32.totalorder %s22, 0
      %p69 = por %p67, %p68
      %s70 = ssub.s32 %s23, %s35
      %s71 = ssub.s32 %s24, %s31
      %s72 = sor.u32 %s70, %s71
      %p73 = scmp.eq.s32.totalorder %s72, 0
      %s75 = sadd.s32 %s74, 1
      %s76 = scalar_select %p73, %s74, %s75
      %p79 = pneg %p73
      %p80 = scmp.eq.s32.totalorder %s16, 3
      %p81 = por %p79, %p80
      %p82 = scmp.ne.s32.totalorder %s74, %s77
      %p83 = scmp.eq.s32.totalorder %s16, 0
      %p84 = por %p82, %p83
      %p85 = scmp.ne.s32.totalorder %s74, %s77
      %p86 = scmp.eq.s32.totalorder %s21, 3
      %p87 = por %p85, %p86
      %p88 = scmp.ne.s32.totalorder %s77, %s78
      %p89 = scmp.eq.s32.totalorder %s21, 0
      %p90 = por %p88, %p89
      %p91 = scmp.ne.s32.totalorder %s77, %s78
      %p92 = scmp.eq.s32.totalorder %s22, 3
      %p93 = por %p91, %p92
      %p95 = scmp.ne.s32.totalorder %s78, %s94
      %p96 = scmp.eq.s32.totalorder %s22, 0
      %p97 = por %p95, %p96
      %s99 = sadd.s32 %s98, 1
      %p102 = scmp.eq.s32.totalorder %s16, 3
      %p103 = scmp.ne.s32.totalorder %s98, %s100
      %p104 = scmp.eq.s32.totalorder %s16, 0
      %p105 = por %p103, %p104
      %p106 = scmp.ne.s32.totalorder %s98, %s100
      %p107 = scmp.eq.s32.totalorder %s21, 3
      %p108 = por %p106, %p107
      %p109 = scmp.ne.s32.totalorder %s100, %s101
      %p110 = scmp.eq.s32.totalorder %s21, 0
      %p111 = por %p109, %p110
      %p112 = scmp.ne.s32.totalorder %s100, %s101
      %p113 = scmp.eq.s32.totalorder %s22, 3
      %p114 = por %p112, %p113
      %p116 = scmp.ne.s32.totalorder %s101, %s115
      %p117 = scmp.eq.s32.totalorder %s22, 0
      %p118 = por %p116, %p117
      %s120 = sadd.s32 %s119, 1
      %p123 = scmp.eq.s32.totalorder %s16, 3
      %p124 = scmp.ne.s32.totalorder %s119, %s121
      %p125 = scmp.eq.s32.totalorder %s16, 0
      %p126 = por %p124, %p125
      %p127 = scmp.ne.s32.totalorder %s119, %s121
      %p128 = scmp.eq.s32.totalorder %s21, 3
      %p129 = por %p127, %p128
      %p130 = scmp.ne.s32.totalorder %s121, %s122
      %p131 = scmp.eq.s32.totalorder %s21, 0
      %p132 = por %p130, %p131
      %p133 = scmp.ne.s32.totalorder %s121, %s122
      %p134 = scmp.eq.s32.totalorder %s22, 3
      %p135 = por %p133, %p134
      %p137 = scmp.ne.s32.totalorder %s122, %s136
      %p138 = scmp.eq.s32.totalorder %s22, 0
      %p139 = por %p137, %p138
      %s141 = sadd.s32 %s140, 1
      %p144 = scmp.eq.s32.totalorder %s16, 3
      %p145 = scmp.ne.s32.totalorder %s140, %s142
      %p146 = scmp.eq.s32.totalorder %s16, 0
      %p147 = por %p145, %p146
      %p148 = scmp.ne.s32.totalorder %s140, %s142
      %p149 = scmp.eq.s32.totalorder %s21, 3
      %p150 = por %p148, %p149
      %p151 = scmp.ne.s32.totalorder %s142, %s143
      %p152 = scmp.eq.s32.totalorder %s21, 0
      %p153 = por %p151, %p152
      %p154 = scmp.ne.s32.totalorder %s142, %s143
      %p155 = scmp.eq.s32.totalorder %s22, 3
      %p156 = por %p154, %p155
      %p158 = scmp.ne.s32.totalorder %s143, %s157
      %p159 = scmp.eq.s32.totalorder %s22, 0
      %p160 = por %p158, %p159
      %s162 = sadd.s32 %s161, 1
      %p165 = scmp.eq.s32.totalorder %s16, 3
      %p166 = scmp.ne.s32.totalorder %s161, %s163
      %p167 = scmp.eq.s32.totalorder %s16, 0
      %p168 = por %p166, %p167
      %p169 = scmp.ne.s32.totalorder %s161, %s163
      %p170 = scmp.eq.s32.totalorder %s21, 3
      %p171 = por %p169, %p170
      %p172 = scmp.ne.s32.totalorder %s163, %s164
      %p173 = scmp.eq.s32.totalorder %s21, 0
      %p174 = por %p172, %p173
      %p175 = scmp.ne.s32.totalorder %s163, %s164
      %p176 = scmp.eq.s32.totalorder %s22, 3
      %p177 = por %p175, %p176
      %p179 = scmp.ne.s32.totalorder %s164, %s178
      %p180 = scmp.eq.s32.totalorder %s22, 0
      %p181 = por %p179, %p180
      %s183 = sadd.s32 %s182, 1
      %p186 = scmp.eq.s32.totalorder %s16, 3
      %p187 = scmp.ne.s32.totalorder %s182, %s184
      %p188 = scmp.eq.s32.totalorder %s16, 0
      %p189 = por %p187, %p188
      %p190 = scmp.ne.s32.totalorder %s182, %s184
      %p191 = scmp.eq.s32.totalorder %s21, 3
      %p192 = por %p190, %p191
      %p193 = scmp.ne.s32.totalorder %s184, %s185
      %p194 = scmp.eq.s32.totalorder %s21, 0
      %p195 = por %p193, %p194
      %p196 = scmp.ne.s32.totalorder %s184, %s185
      %p197 = scmp.eq.s32.totalorder %s22, 3
      %p198 = por %p196, %p197
      %p200 = scmp.ne.s32.totalorder %s185, %s199
      %p201 = scmp.eq.s32.totalorder %s22, 0
      %p202 = por %p200, %p201
      %s204 = sadd.s32 %s203, 1
      %p207 = scmp.eq.s32.totalorder %s16, 3
      %p208 = scmp.ne.s32.totalorder %s203, %s205
      %p209 = scmp.eq.s32.totalorder %s16, 0
      %p210 = por %p208, %p209
      %p211 = scmp.ne.s32.totalorder %s203, %s205
      %p212 = scmp.eq.s32.totalorder %s21, 3
      %p213 = por %p211, %p212
      %p214 = scmp.ne.s32.totalorder %s205, %s206
      %p215 = scmp.eq.s32.totalorder %s21, 0
      %p216 = por %p214, %p215
      %p217 = scmp.ne.s32.totalorder %s205, %s206
      %p218 = scmp.eq.s32.totalorder %s22, 3
      %p219 = por %p217, %p218
      %p221 = scmp.ne.s32.totalorder %s206, %s220
      %p222 = scmp.eq.s32.totalorder %s22, 0
      %p223 = por %p221, %p222
      %s224 = ssub.s32 %s23, %s35
      %s225 = ssub.s32 %s24, %s31
      %s226 = sor.u32 %s224, %s225
      %p227 = scmp.eq.s32.totalorder %s226, 0
      %s229 = sadd.s32 %s228, 1
      %s230 = scalar_select %p227, %s228, %s229
      %p233 = pneg %p227
      %p234 = scmp.eq.s32.totalorder %s16, 3
      %p235 = por %p233, %p234
      %p236 = scmp.ne.s32.totalorder %s228, %s231
      %p237 = scmp.eq.s32.totalorder %s16, 0
      %p238 = por %p236, %p237
      %p239 = scmp.ne.s32.totalorder %s228, %s231
      %p240 = scmp.eq.s32.totalorder %s21, 3
      %p241 = por %p239, %p240
      %p242 = scmp.ne.s32.totalorder %s231, %s232
      %p243 = scmp.eq.s32.totalorder %s21, 0
      %p244 = por %p242, %p243
      %p245 = scmp.ne.s32.totalorder %s231, %s232
      %p246 = scmp.eq.s32.totalorder %s22, 3
      %p247 = por %p245, %p246
      %p249 = scmp.ne.s32.totalorder %s232, %s248
      %p250 = scmp.eq.s32.totalorder %s22, 0
      %p251 = por %p249, %p250
      %p252 = scmp.le.s32.totalorder 1, %s16
      %p253 = scmp.lt.s32.totalorder %s16, 5
      %p254 = pnand %p252, %p253
      %p255 = pneg %p254
      // Predicated region
      $region9: #{tcn_forward.4} parent=5 // pred_check
        _
      $region10: #{tcn_forward.4} parent=5 // pred_check_branch
        %257 = sbr.rel (%p254) target = $region12
      $region11: #{tcn_forward.4} parent=5 // pred_region
        %s258 = ssub.s32 %s16, 1
        // Predicated region
        $region13: #{tcn_forward.4} parent=11 // pred_check
          %p259 = pneg %p111
        $region14: #{tcn_forward.4} parent=11 // pred_check_branch
          %261 = sbr.rel (%p259) target = $region16
        $region15: #{tcn_forward.4} parent=11 // pred_region
          %s263 = ssub.s32 4096, 4096
          %264 = vsyncadd [#allocation3], %s263
          %s265 = sshll.u32 [#allocation2], 4
          %s266 = int_to_ptr.vmem [resolvable:$true] %s265
          %271 = dma.hbm_to_vmem [thread:$0]  %s2, 4096, %s266, [#allocation3], 128, 128, 8
        $region16: #{tcn_forward.4} parent=11 // pred_fallthru
          _
        // Predicated region
        $region17: #{tcn_forward.4} parent=11 // pred_check
          %p272 = pneg %p132
        $region18: #{tcn_forward.4} parent=11 // pred_check_branch
          %274 = sbr.rel (%p272) target = $region20
        $region19: #{tcn_forward.4} parent=11 // pred_region
          _
        $region20: #{tcn_forward.4} parent=11 // pred_fallthru
          _
        // Predicated region
        $region21: #{tcn_forward.4} parent=11 // pred_check
          %p275 = pneg %p153
        $region22: #{tcn_forward.4} parent=11 // pred_check_branch
          %277 = sbr.rel (%p275) target = $region24
        $region23: #{tcn_forward.4} parent=11 // pred_region
          %s279 = ssub.s32 4096, 4096
          %280 = vsyncadd [#allocation5], %s279
          %s281 = sshll.u32 [#allocation4], 4
          %s282 = int_to_ptr.vmem [resolvable:$true] %s281
          %287 = dma.hbm_to_vmem [thread:$0]  %s4, 4096, %s282, [#allocation5], 128, 128, 8
        $region24: #{tcn_forward.4} parent=11 // pred_fallthru
          _
        // Predicated region
        $region25: #{tcn_forward.4} parent=11 // pred_check
          %p288 = pneg %p174
        $region26: #{tcn_forward.4} parent=11 // pred_check_branch
          %290 = sbr.rel (%p288) target = $region28
        $region27: #{tcn_forward.4} parent=11 // pred_region
          _
        $region28: #{tcn_forward.4} parent=11 // pred_fallthru
          _
        // Predicated region
        $region29: #{tcn_forward.4} parent=11 // pred_check
          %p291 = pneg %p195
        $region30: #{tcn_forward.4} parent=11 // pred_check_branch
          %293 = sbr.rel (%p291) target = $region32
        $region31: #{tcn_forward.4} parent=11 // pred_region
          _
        $region32: #{tcn_forward.4} parent=11 // pred_fallthru
          _
        // Predicated region
        $region33: #{tcn_forward.4} parent=11 // pred_check
          %p294 = pneg %p216
        $region34: #{tcn_forward.4} parent=11 // pred_check_branch
          %296 = sbr.rel (%p294) target = $region36
        $region35: #{tcn_forward.4} parent=11 // pred_region
          _
        $region36: #{tcn_forward.4} parent=11 // pred_fallthru
          _
      $region12: #{tcn_forward.4} parent=5 // pred_fallthru
        _
      %p297 = scmp.lt.s32.totalorder %s16, 4
      // Predicated region
      $region37: #{tcn_forward.4} parent=5 // pred_check
        %p298 = pneg %p297
      $region38: #{tcn_forward.4} parent=5 // pred_check_branch
        %300 = sbr.rel (%p298) target = $region40
      $region39: #{tcn_forward.4} parent=5 // pred_region
        // Predicated region
        $region41: #{tcn_forward.4} parent=39 // pred_check
          %p301 = pneg %p56
        $region42: #{tcn_forward.4} parent=39 // pred_check_branch
          %303 = sbr.rel (%p301) target = $region44
        $region43: #{tcn_forward.4} parent=39 // pred_region
          %s304 = sadd.s32 %s24, 4294967295
          %p305 = scmp.gt.s32.totalorder %s304, 0
          %s306 = scalar_select %p305, %s304, 0
          %p307 = scmp.lt.s32.totalorder %s23, 1
          %s308 = scalar_select %p307, %s23, 1
          %p309 = scmp.lt.s32.totalorder %s306, 1
          %s310 = scalar_select %p309, %s306, 1
          %s311 = smul.addr %s308, 2
          %s312 = sadd.s32 %s310, %s311
          %s313 = smul.addr %s312, 8
          %s314 = scalar_lea.vmem %s0, %s313
          %s315 = sadd.s32 %s24, 4294967295
          %p316 = scmp.gt.s32.totalorder %s315, 0
          %s317 = scalar_select %p316, %s315, 0
        $region44: #{tcn_forward.4} parent=39 // pred_fallthru
          _
        // Predicated region
        $region45: #{tcn_forward.4} parent=39 // pred_check
          %p318 = pneg %p84
        $region46: #{tcn_forward.4} parent=39 // pred_check_branch
          %320 = sbr.rel (%p318) target = $region48
        $region47: #{tcn_forward.4} parent=39 // pred_region
          %p321 = scmp.lt.s32.totalorder %s23, 1
          %s322 = scalar_select %p321, %s23, 1
          %p323 = scmp.lt.s32.totalorder %s24, 1
          %s324 = scalar_select %p323, %s24, 1
          %s325 = smul.addr %s322, 2
          %s326 = sadd.s32 %s324, %s325
          %s327 = smul.addr %s326, 8
          %s328 = scalar_lea.vmem %s1, %s327
        $region48: #{tcn_forward.4} parent=39 // pred_fallthru
          _
      $region40: #{tcn_forward.4} parent=5 // pred_fallthru
        _
      %p329 = scmp.le.s32.totalorder 1, %s16
      %p330 = scmp.lt.s32.totalorder %s16, 5
      %p331 = pnand %p329, %p330
      %p332 = pneg %p331
      // Predicated region
      $region49: #{tcn_forward.4} parent=5 // pred_check
        _
      $region50: #{tcn_forward.4} parent=5 // pred_check_branch
        %334 = sbr.rel (%p331) target = $region52
      $region51: #{tcn_forward.4} parent=5 // pred_region
        %s335 = ssub.s32 %s16, 1
        // Predicated region
        $region53: #{tcn_forward.4} parent=51 // pred_check
          %p336 = pneg %p111
        $region54: #{tcn_forward.4} parent=51 // pred_check_branch
          %338 = sbr.rel (%p336) target = $region56
        $region55: #{tcn_forward.4} parent=51 // pred_region
          %339 = dma.done [#allocation3], 4096
        $region56: #{tcn_forward.4} parent=51 // pred_fallthru
          _
        // Predicated region
        $region57: #{tcn_forward.4} parent=51 // pred_check
          %p340 = pneg %p153
        $region58: #{tcn_forward.4} parent=51 // pred_check_branch
          %342 = sbr.rel (%p340) target = $region60
        $region59: #{tcn_forward.4} parent=51 // pred_region
          %343 = dma.done [#allocation5], 4096
        $region60: #{tcn_forward.4} parent=51 // pred_fallthru
          _
        %s344 = sadd.s32 %s26, 4294967295
        %p345 = scmp.gt.s32.totalorder %s344, 0
        %s346 = scalar_select %p345, %s344, 0
        %p347 = scmp.lt.s32.totalorder %s25, 1
        %s348 = scalar_select %p347, %s25, 1
        %p349 = scmp.lt.s32.totalorder %s346, 1
        %s350 = scalar_select %p349, %s346, 1
        %s351 = smul.addr %s348, 2
        %s352 = sadd.s32 %s350, %s351
        %s353 = smul.addr %s352, 8
        %s354 = scalar_lea.vmem %s0, %s353
        %p355 = pneg %p62
        %p356 = pneg %p59
        %p357 = scmp.lt.s32.totalorder %s25, 1
        %s358 = scalar_select %p357, %s25, 1
        %p359 = scmp.lt.s32.totalorder %s26, 1
        %s360 = scalar_select %p359, %s26, 1
        %s361 = smul.addr %s358, 2
        %s362 = sadd.s32 %s360, %s361
        %s363 = smul.addr %s362, 8
        %s364 = scalar_lea.vmem %s1, %s363
        %p365 = pneg %p90
        %p366 = pneg %p87
        %p367 = pneg %p111
        %p368 = pneg %p108
        %p369 = pneg %p132
        %p370 = pneg %p129
        %p371 = pneg %p153
        %p372 = pneg %p150
        %p373 = pneg %p174
        %p374 = pneg %p171
        %p375 = pneg %p195
        %p376 = pneg %p192
        %p377 = pneg %p216
        %p378 = pneg %p213
        %p379 = pneg %p244
        %p380 = pneg %p241
        %p381 = scmp.lt.s32.totalorder %s25, 1
        %s382 = scalar_select %p381, %s25, 1
        %p383 = scmp.lt.s32.totalorder %s26, 1
        %s384 = scalar_select %p383, %s26, 1
        %s385 = smul.addr %s382, 2
        %s386 = sadd.s32 %s384, %s385
        %s387 = smul.addr %s386, 8
        %s388 = scalar_lea.vmem %s8, %s387
        %s389 = sadd.s32 %s26, 4294967295
        %p390 = scmp.gt.s32.totalorder %s389, 0
        %s391 = scalar_select %p390, %s389, 0
        %p392 = scmp.lt.s32.totalorder %s25, 1
        %s393 = scalar_select %p392, %s25, 1
        %p394 = scmp.lt.s32.totalorder %s391, 1
        %s395 = scalar_select %p394, %s391, 1
        %s396 = smul.addr %s393, 2
        %s397 = sadd.s32 %s395, %s396
        %s398 = smul.addr %s397, 8
        %s399 = scalar_lea.vmem %s0, %s398
        %s400 = sadd.s32 %s26, 4294967295
        %p401 = scmp.gt.s32.totalorder %s400, 0
        %s402 = scalar_select %p401, %s400, 0
        %p403 = scmp.lt.s32.totalorder %s25, 1
        %s404 = scalar_select %p403, %s25, 1
        %p405 = scmp.lt.s32.totalorder %s26, 1
        %s406 = scalar_select %p405, %s26, 1
        %s407 = smul.addr %s404, 2
        %s408 = sadd.s32 %s406, %s407
        %s409 = smul.addr %s408, 8
        %s410 = scalar_lea.vmem %s1, %s409
        %p411 = scmp.lt.s32.totalorder %s25, 1
        %s412 = scalar_select %p411, %s25, 1
        %p413 = scmp.lt.s32.totalorder %s26, 1
        %s414 = scalar_select %p413, %s26, 1
        %s415 = smul.addr %s412, 2
        %s416 = sadd.s32 %s414, %s415
        %s417 = smul.addr %s416, 8
        %s418 = scalar_lea.vmem %s8, %s417
        %s419 = smul.u32 %s26, 8
        %v420 = vld [vmem:[%s399] sm:$0xff]
        %v421 = vld [vmem:[%s410] sm:$0xff]
        %v422 = vlaneseq
        %v423 = vshrl.u32 %v422, 7
        %v424 = vadd.s32 %v423, 8
        %s425 = ssub.s32 %s419, 8
        %v426 = vstv %s425
        %v427 = vadd.s32 %v423, %v426
        %v428 = vadd.s32 %v424, %v426
        %vm429 = vcmp.ge.s32.totalorder %v427, 0
        %vm430 = vcmp.ge.s32.totalorder %v428, 0
        %v431 = vsel %vm429, 1, 0
        %v432 = vsel %vm430, 1, 0
        %vm433 = vcmp.eq.s32.totalorder %v431, 1
        %vm434 = vcmp.eq.s32.totalorder %v432, 1
        %v435 = vsel %vm433, %v420, 0.0
        %v436 = vsel %vm434, %v421, 0.0
        %v437 = vld [vmem:[#allocation2] sm:$0xff]
        %v438 = vld [vmem:[#allocation2 + $0x8] sm:$0xff]
        %v439 = vld [vmem:[#allocation2 + $0x10] sm:$0xff]
        %v440 = vld [vmem:[#allocation2 + $0x18] sm:$0xff]
        %v441 = vld [vmem:[#allocation2 + $0x20] sm:$0xff]
        %v442 = vld [vmem:[#allocation2 + $0x28] sm:$0xff]
        %v443 = vld [vmem:[#allocation2 + $0x30] sm:$0xff]
        %v444 = vld [vmem:[#allocation2 + $0x38] sm:$0xff]
        %v445 = vld [vmem:[#allocation2 + $0x40] sm:$0xff]
        %v446 = vld [vmem:[#allocation2 + $0x48] sm:$0xff]
        %v447 = vld [vmem:[#allocation2 + $0x50] sm:$0xff]
        %v448 = vld [vmem:[#allocation2 + $0x58] sm:$0xff]
        %v449 = vld [vmem:[#allocation2 + $0x60] sm:$0xff]
        %v450 = vld [vmem:[#allocation2 + $0x68] sm:$0xff]
        %v451 = vld [vmem:[#allocation2 + $0x70] sm:$0xff]
        %v452 = vld [vmem:[#allocation2 + $0x78] sm:$0xff]
        %s453 = scalar_lea.vmem [#allocation2], 128
        %v454 = vld [vmem:[%s453] sm:$0xff]
        %v455 = vld [vmem:[%s453 + $0x8] sm:$0xff]
        %v456 = vld [vmem:[%s453 + $0x10] sm:$0xff]
        %v457 = vld [vmem:[%s453 + $0x18] sm:$0xff]
        %v458 = vld [vmem:[%s453 + $0x20] sm:$0xff]
        %v459 = vld [vmem:[%s453 + $0x28] sm:$0xff]
        %v460 = vld [vmem:[%s453 + $0x30] sm:$0xff]
        %v461 = vld [vmem:[%s453 + $0x38] sm:$0xff]
        %v462 = vld [vmem:[%s453 + $0x40] sm:$0xff]
        %v463 = vld [vmem:[%s453 + $0x48] sm:$0xff]
        %v464 = vld [vmem:[%s453 + $0x50] sm:$0xff]
        %v465 = vld [vmem:[%s453 + $0x58] sm:$0xff]
        %v466 = vld [vmem:[%s453 + $0x60] sm:$0xff]
        %v467 = vld [vmem:[%s453 + $0x68] sm:$0xff]
        %v468 = vld [vmem:[%s453 + $0x70] sm:$0xff]
        %v469 = vld [vmem:[%s453 + $0x78] sm:$0xff]
        %vm472 = vcmask 1040384
        %v473 = vrot.slane %v435, 7
        %v474 = vrot.slane %v436, 7
        %v475 = vsel %vm472, %v473, %v474
        %478 = vmatprep.subr.mxu0 0.0
        %479 = vmatpush1.msra.mxu0 %v454
        %480 = vmatprep.subr.mxu0 0.0
        %481 = vmatpush1.msra.mxu0 %v455
        %482 = vmatprep.subr.mxu0 0.0
        %483 = vmatpush1.msra.mxu0 %v456
        %484 = vmatprep.subr.mxu0 0.0
        %485 = vmatpush1.msra.mxu0 %v457
        %486 = vmatprep.subr.mxu0 0.0
        %487 = vmatpush1.msra.mxu0 %v458
        %488 = vmatprep.subr.mxu0 0.0
        %489 = vmatpush1.msra.mxu0 %v459
        %490 = vmatprep.subr.mxu0 0.0
        %491 = vmatpush1.msra.mxu0 %v460
        %492 = vmatprep.subr.mxu0 0.0
        %493 = vmatpush1.msra.mxu0 %v461
        %494 = vmatprep.subr.mxu0 0.0
        %495 = vmatpush1.msra.mxu0 %v462
        %496 = vmatprep.subr.mxu0 0.0
        %497 = vmatpush1.msra.mxu0 %v463
        %498 = vmatprep.subr.mxu0 0.0
        %499 = vmatpush1.msra.mxu0 %v464
        %500 = vmatprep.subr.mxu0 0.0
        %501 = vmatpush1.msra.mxu0 %v465
        %502 = vmatprep.subr.mxu0 0.0
        %503 = vmatpush1.msra.mxu0 %v466
        %504 = vmatprep.subr.mxu0 0.0
        %505 = vmatpush1.msra.mxu0 %v467
        %506 = vmatprep.subr.mxu0 0.0
        %507 = vmatpush1.msra.mxu0 %v468
        %508 = vmatprep.subr.mxu0 0.0
        %509 = vmatpush1.msra.mxu0 %v469
        %510 = vmatprep.subr.mxu0 0.0
        %511 = vmatpush1.msra.mxu0 0.0
        %512 = vmatprep.subr.mxu0 0.0
        %513 = vmatpush1.msra.mxu0 0.0
        %514 = vmatprep.subr.mxu0 0.0
        %515 = vmatpush1.msra.mxu0 0.0
        %516 = vmatprep.subr.mxu0 0.0
        %517 = vmatpush1.msra.mxu0 0.0
        %518 = vmatprep.subr.mxu0 0.0
        %519 = vmatpush1.msra.mxu0 0.0
        %520 = vmatprep.subr.mxu0 0.0
        %521 = vmatpush1.msra.mxu0 0.0
        %522 = vmatprep.subr.mxu0 0.0
        %523 = vmatpush1.msra.mxu0 0.0
        %524 = vmatprep.subr.mxu0 0.0
        %525 = vmatpush1.msra.mxu0 0.0
        %526 = vmatprep.subr.mxu0 0.0
        %527 = vmatpush1.msra.mxu0 0.0
        %528 = vmatprep.subr.mxu0 0.0
        %529 = vmatpush1.msra.mxu0 0.0
        %530 = vmatprep.subr.mxu0 0.0
        %531 = vmatpush1.msra.mxu0 0.0
        %532 = vmatprep.subr.mxu0 0.0
        %533 = vmatpush1.msra.mxu0 0.0
        %534 = vmatprep.subr.mxu0 0.0
        %535 = vmatpush1.msra.mxu0 0.0
        %536 = vmatprep.subr.mxu0 0.0
        %537 = vmatpush1.msra.mxu0 0.0
        %538 = vmatprep.subr.mxu0 0.0
        %539 = vmatpush1.msra.mxu0 0.0
        %540 = vmatprep.subr.mxu0 0.0
        %541 = vmatpush1.msra.mxu0 0.0
        %542 = vmatprep.mubr.f32.mxu0 0.0
        %543 = vmatmul.mubr.f32.gmra.mrb[0].mxu0 %v475
        %v544 = vpop.f32.mrb[0].mxu0
        %v545 = vadd.f32 0.0, %v544
        %v546 = vpop.f32.mrb[0].mxu0
        %547 = vmatprep.mubr.f32.mxu0 0.0
        %548 = vmatmul.mubr.f32.gmra.mrb[0].mxu0 %v474
        %v549 = vpop.f32.mrb[0].mxu0
        %v550 = vadd.f32 0.0, %v549
        %v551 = vpop.f32.mrb[0].mxu0
        %552 = vdwg.mxu0
        %vm553 = vcmask 1041408
        %v554 = vrot.slane %v435, 6
        %v555 = vrot.slane %v436, 6
        %v556 = vsel %vm553, %v554, %v555
        %559 = vmatprep.subr.mxu0 0.0
        %560 = vmatpush1.msra.mxu0 %v437
        %561 = vmatprep.subr.mxu0 0.0
        %562 = vmatpush1.msra.mxu0 %v438
        %563 = vmatprep.subr.mxu0 0.0
        %564 = vmatpush1.msra.mxu0 %v439
        %565 = vmatprep.subr.mxu0 0.0
        %566 = vmatpush1.msra.mxu0 %v440
        %567 = vmatprep.subr.mxu0 0.0
        %568 = vmatpush1.msra.mxu0 %v441
        %569 = vmatprep.subr.mxu0 0.0
        %570 = vmatpush1.msra.mxu0 %v442
        %571 = vmatprep.subr.mxu0 0.0
        %572 = vmatpush1.msra.mxu0 %v443
        %573 = vmatprep.subr.mxu0 0.0
        %574 = vmatpush1.msra.mxu0 %v444
        %575 = vmatprep.subr.mxu0 0.0
        %576 = vmatpush1.msra.mxu0 %v445
        %577 = vmatprep.subr.mxu0 0.0
        %578 = vmatpush1.msra.mxu0 %v446
        %579 = vmatprep.subr.mxu0 0.0
        %580 = vmatpush1.msra.mxu0 %v447
        %581 = vmatprep.subr.mxu0 0.0
        %582 = vmatpush1.msra.mxu0 %v448
        %583 = vmatprep.subr.mxu0 0.0
        %584 = vmatpush1.msra.mxu0 %v449
        %585 = vmatprep.subr.mxu0 0.0
        %586 = vmatpush1.msra.mxu0 %v450
        %587 = vmatprep.subr.mxu0 0.0
        %588 = vmatpush1.msra.mxu0 %v451
        %589 = vmatprep.subr.mxu0 0.0
        %590 = vmatpush1.msra.mxu0 %v452
        %591 = vmatprep.subr.mxu0 0.0
        %592 = vmatpush1.msra.mxu0 0.0
        %593 = vmatprep.subr.mxu0 0.0
        %594 = vmatpush1.msra.mxu0 0.0
        %595 = vmatprep.subr.mxu0 0.0
        %596 = vmatpush1.msra.mxu0 0.0
        %597 = vmatprep.subr.mxu0 0.0
        %598 = vmatpush1.msra.mxu0 0.0
        %599 = vmatprep.subr.mxu0 0.0
        %600 = vmatpush1.msra.mxu0 0.0
        %601 = vmatprep.subr.mxu0 0.0
        %602 = vmatpush1.msra.mxu0 0.0
        %603 = vmatprep.subr.mxu0 0.0
        %604 = vmatpush1.msra.mxu0 0.0
        %605 = vmatprep.subr.mxu0 0.0
        %606 = vmatpush1.msra.mxu0 0.0
        %607 = vmatprep.subr.mxu0 0.0
        %608 = vmatpush1.msra.mxu0 0.0
        %609 = vmatprep.subr.mxu0 0.0
        %610 = vmatpush1.msra.mxu0 0.0
        %611 = vmatprep.subr.mxu0 0.0
        %612 = vmatpush1.msra.mxu0 0.0
        %613 = vmatprep.subr.mxu0 0.0
        %614 = vmatpush1.msra.mxu0 0.0
        %615 = vmatprep.subr.mxu0 0.0
        %616 = vmatpush1.msra.mxu0 0.0
        %617 = vmatprep.subr.mxu0 0.0
        %618 = vmatpush1.msra.mxu0 0.0
        %619 = vmatprep.subr.mxu0 0.0
        %620 = vmatpush1.msra.mxu0 0.0
        %621 = vmatprep.subr.mxu0 0.0
        %622 = vmatpush1.msra.mxu0 0.0
        %623 = vmatprep.mubr.f32.mxu0 0.0
        %624 = vmatmul.mubr.f32.gmra.mrb[0].mxu0 %v556
        %v625 = vpop.f32.mrb[0].mxu0
        %v626 = vadd.f32 %v545, %v625
        %v627 = vpop.f32.mrb[0].mxu0
        %628 = vmatprep.mubr.f32.mxu0 0.0
        %629 = vmatmul.mubr.f32.gmra.mrb[0].mxu0 %v555
        %v630 = vpop.f32.mrb[0].mxu0
        %v631 = vadd.f32 %v550, %v630
        %v632 = vpop.f32.mrb[0].mxu0
        %633 = vdwg.mxu0
        %v634 = vld [vmem:[%s3] sm:$0x1]
        %v636 = vlaneseq
        %v637 = vshrl.u32 %v636, 7
        %v638 = vsub.s32 0, %v637
        %v639 = vrot.slane %v634, %v638
        %v641 = vadd.f32 %v626, %v639
        %v642 = vadd.f32 %v631, %v639
        %v643 = vmax.f32 %v641, 0.0
        %v644 = vmax.f32 %v642, 0.0
        %s645 = ssub.s32 %s419, 1
        %v646 = vstv %s645
        %v647 = vadd.s32 %v423, %v646
        %v648 = vadd.s32 %v424, %v646
        %vm649 = vcmp.ge.s32.totalorder %v647, 0
        %vm650 = vcmp.ge.s32.totalorder %v648, 0
        %v651 = vsel %vm649, 1, 0
        %v652 = vsel %vm650, 1, 0
        %vm653 = vcmp.eq.s32.totalorder %v651, 1
        %vm654 = vcmp.eq.s32.totalorder %v652, 1
        %v655 = vsel %vm653, %v643, 0.0
        %v656 = vsel %vm654, %v644, 0.0
        %v657 = vld [vmem:[#allocation4] sm:$0xff]
        %v658 = vld [vmem:[#allocation4 + $0x8] sm:$0xff]
        %v659 = vld [vmem:[#allocation4 + $0x10] sm:$0xff]
        %v660 = vld [vmem:[#allocation4 + $0x18] sm:$0xff]
        %v661 = vld [vmem:[#allocation4 + $0x20] sm:$0xff]
        %v662 = vld [vmem:[#allocation4 + $0x28] sm:$0xff]
        %v663 = vld [vmem:[#allocation4 + $0x30] sm:$0xff]
        %v664 = vld [vmem:[#allocation4 + $0x38] sm:$0xff]
        %v665 = vld [vmem:[#allocation4 + $0x40] sm:$0xff]
        %v666 = vld [vmem:[#allocation4 + $0x48] sm:$0xff]
        %v667 = vld [vmem:[#allocation4 + $0x50] sm:$0xff]
        %v668 = vld [vmem:[#allocation4 + $0x58] sm:$0xff]
        %v669 = vld [vmem:[#allocation4 + $0x60] sm:$0xff]
        %v670 = vld [vmem:[#allocation4 + $0x68] sm:$0xff]
        %v671 = vld [vmem:[#allocation4 + $0x70] sm:$0xff]
        %v672 = vld [vmem:[#allocation4 + $0x78] sm:$0xff]
        %s673 = scalar_lea.vmem [#allocation4], 128
        %v674 = vld [vmem:[%s673] sm:$0xff]
        %v675 = vld [vmem:[%s673 + $0x8] sm:$0xff]
        %v676 = vld [vmem:[%s673 + $0x10] sm:$0xff]
        %v677 = vld [vmem:[%s673 + $0x18] sm:$0xff]
        %v678 = vld [vmem:[%s673 + $0x20] sm:$0xff]
        %v679 = vld [vmem:[%s673 + $0x28] sm:$0xff]
        %v680 = vld [vmem:[%s673 + $0x30] sm:$0xff]
        %v681 = vld [vmem:[%s673 + $0x38] sm:$0xff]
        %v682 = vld [vmem:[%s673 + $0x40] sm:$0xff]
        %v683 = vld [vmem:[%s673 + $0x48] sm:$0xff]
        %v684 = vld [vmem:[%s673 + $0x50] sm:$0xff]
        %v685 = vld [vmem:[%s673 + $0x58] sm:$0xff]
        %v686 = vld [vmem:[%s673 + $0x60] sm:$0xff]
        %v687 = vld [vmem:[%s673 + $0x68] sm:$0xff]
        %v688 = vld [vmem:[%s673 + $0x70] sm:$0xff]
        %v689 = vld [vmem:[%s673 + $0x78] sm:$0xff]
        %vm692 = vcmask 1046528
        %v693 = vrot.slane %v655, 1
        %v694 = vrot.slane %v656, 1
        %v695 = vsel %vm692, %v693, %v694
        %697 = vmatprep.subr.mxu0 0.0
        %698 = vmatpush1.msra.mxu0 %v674
        %699 = vmatprep.subr.mxu0 0.0
        %700 = vmatpush1.msra.mxu0 %v675
        %701 = vmatprep.subr.mxu0 0.0
        %702 = vmatpush1.msra.mxu0 %v676
        %703 = vmatprep.subr.mxu0 0.0
        %704 = vmatpush1.msra.mxu0 %v677
        %705 = vmatprep.subr.mxu0 0.0
        %706 = vmatpush1.msra.mxu0 %v678
        %707 = vmatprep.subr.mxu0 0.0
        %708 = vmatpush1.msra.mxu0 %v679
        %709 = vmatprep.subr.mxu0 0.0
        %710 = vmatpush1.msra.mxu0 %v680
        %711 = vmatprep.subr.mxu0 0.0
        %712 = vmatpush1.msra.mxu0 %v681
        %713 = vmatprep.subr.mxu0 0.0
        %714 = vmatpush1.msra.mxu0 %v682
        %715 = vmatprep.subr.mxu0 0.0
        %716 = vmatpush1.msra.mxu0 %v683
        %717 = vmatprep.subr.mxu0 0.0
        %718 = vmatpush1.msra.mxu0 %v684
        %719 = vmatprep.subr.mxu0 0.0
        %720 = vmatpush1.msra.mxu0 %v685
        %721 = vmatprep.subr.mxu0 0.0
        %722 = vmatpush1.msra.mxu0 %v686
        %723 = vmatprep.subr.mxu0 0.0
        %724 = vmatpush1.msra.mxu0 %v687
        %725 = vmatprep.subr.mxu0 0.0
        %726 = vmatpush1.msra.mxu0 %v688
        %727 = vmatprep.subr.mxu0 0.0
        %728 = vmatpush1.msra.mxu0 %v689
        %729 = vmatprep.subr.mxu0 0.0
        %730 = vmatpush1.msra.mxu0 0.0
        %731 = vmatprep.subr.mxu0 0.0
        %732 = vmatpush1.msra.mxu0 0.0
        %733 = vmatprep.subr.mxu0 0.0
        %734 = vmatpush1.msra.mxu0 0.0
        %735 = vmatprep.subr.mxu0 0.0
        %736 = vmatpush1.msra.mxu0 0.0
        %737 = vmatprep.subr.mxu0 0.0
        %738 = vmatpush1.msra.mxu0 0.0
        %739 = vmatprep.subr.mxu0 0.0
        %740 = vmatpush1.msra.mxu0 0.0
        %741 = vmatprep.subr.mxu0 0.0
        %742 = vmatpush1.msra.mxu0 0.0
        %743 = vmatprep.subr.mxu0 0.0
        %744 = vmatpush1.msra.mxu0 0.0
        %745 = vmatprep.subr.mxu0 0.0
        %746 = vmatpush1.msra.mxu0 0.0
        %747 = vmatprep.subr.mxu0 0.0
        %748 = vmatpush1.msra.mxu0 0.0
        %749 = vmatprep.subr.mxu0 0.0
        %750 = vmatpush1.msra.mxu0 0.0
        %751 = vmatprep.subr.mxu0 0.0
        %752 = vmatpush1.msra.mxu0 0.0
        %753 = vmatprep.subr.mxu0 0.0
        %754 = vmatpush1.msra.mxu0 0.0
        %755 = vmatprep.subr.mxu0 0.0
        %756 = vmatpush1.msra.mxu0 0.0
        %757 = vmatprep.subr.mxu0 0.0
        %758 = vmatpush1.msra.mxu0 0.0
        %759 = vmatprep.subr.mxu0 0.0
        %760 = vmatpush1.msra.mxu0 0.0
        %761 = vmatprep.mubr.f32.mxu0 0.0
        %762 = vmatmul.mubr.f32.gmra.mrb[0].mxu0 %v695
        %v763 = vpop.f32.mrb[0].mxu0
        %v764 = vadd.f32 0.0, %v763
        %v765 = vpop.f32.mrb[0].mxu0
        %766 = vdwg.mxu0
        %767 = vmatprep.subr.mxu0 0.0
        %768 = vmatpush1.msra.mxu0 %v657
        %769 = vmatprep.subr.mxu0 0.0
        %770 = vmatpush1.msra.mxu0 %v658
        %771 = vmatprep.subr.mxu0 0.0
        %772 = vmatpush1.msra.mxu0 %v659
        %773 = vmatprep.subr.mxu0 0.0
        %774 = vmatpush1.msra.mxu0 %v660
        %775 = vmatprep.subr.mxu0 0.0
        %776 = vmatpush1.msra.mxu0 %v661
        %777 = vmatprep.subr.mxu0 0.0
        %778 = vmatpush1.msra.mxu0 %v662
        %779 = vmatprep.subr.mxu0 0.0
        %780 = vmatpush1.msra.mxu0 %v663
        %781 = vmatprep.subr.mxu0 0.0
        %782 = vmatpush1.msra.mxu0 %v664
        %783 = vmatprep.subr.mxu0 0.0
        %784 = vmatpush1.msra.mxu0 %v665
        %785 = vmatprep.subr.mxu0 0.0
        %786 = vmatpush1.msra.mxu0 %v666
        %787 = vmatprep.subr.mxu0 0.0
        %788 = vmatpush1.msra.mxu0 %v667
        %789 = vmatprep.subr.mxu0 0.0
        %790 = vmatpush1.msra.mxu0 %v668
        %791 = vmatprep.subr.mxu0 0.0
        %792 = vmatpush1.msra.mxu0 %v669
        %793 = vmatprep.subr.mxu0 0.0
        %794 = vmatpush1.msra.mxu0 %v670
        %795 = vmatprep.subr.mxu0 0.0
        %796 = vmatpush1.msra.mxu0 %v671
        %797 = vmatprep.subr.mxu0 0.0
        %798 = vmatpush1.msra.mxu0 %v672
        %799 = vmatprep.subr.mxu0 0.0
        %800 = vmatpush1.msra.mxu0 0.0
        %801 = vmatprep.subr.mxu0 0.0
        %802 = vmatpush1.msra.mxu0 0.0
        %803 = vmatprep.subr.mxu0 0.0
        %804 = vmatpush1.msra.mxu0 0.0
        %805 = vmatprep.subr.mxu0 0.0
        %806 = vmatpush1.msra.mxu0 0.0
        %807 = vmatprep.subr.mxu0 0.0
        %808 = vmatpush1.msra.mxu0 0.0
        %809 = vmatprep.subr.mxu0 0.0
        %810 = vmatpush1.msra.mxu0 0.0
        %811 = vmatprep.subr.mxu0 0.0
        %812 = vmatpush1.msra.mxu0 0.0
        %813 = vmatprep.subr.mxu0 0.0
        %814 = vmatpush1.msra.mxu0 0.0
        %815 = vmatprep.subr.mxu0 0.0
        %816 = vmatpush1.msra.mxu0 0.0
        %817 = vmatprep.subr.mxu0 0.0
        %818 = vmatpush1.msra.mxu0 0.0
        %819 = vmatprep.subr.mxu0 0.0
        %820 = vmatpush1.msra.mxu0 0.0
        %821 = vmatprep.subr.mxu0 0.0
        %822 = vmatpush1.msra.mxu0 0.0
        %823 = vmatprep.subr.mxu0 0.0
        %824 = vmatpush1.msra.mxu0 0.0
        %825 = vmatprep.subr.mxu0 0.0
        %826 = vmatpush1.msra.mxu0 0.0
        %827 = vmatprep.subr.mxu0 0.0
        %828 = vmatpush1.msra.mxu0 0.0
        %829 = vmatprep.subr.mxu0 0.0
        %830 = vmatpush1.msra.mxu0 0.0
        %831 = vmatprep.mubr.f32.mxu0 0.0
        %832 = vmatmul.mubr.f32.gmra.mrb[0].mxu0 %v655
        %v833 = vpop.f32.mrb[0].mxu0
        %v834 = vadd.f32 %v764, %v833
        %v835 = vpop.f32.mrb[0].mxu0
        %836 = vdwg.mxu0
        %v837 = vld [vmem:[%s5] sm:$0x1]
        %v839 = vlaneseq
        %v840 = vshrl.u32 %v839, 7
        %v841 = vsub.s32 0, %v840
        %v842 = vrot.slane %v837, %v841
        %v844 = vadd.f32 %v834, %v842
        %v845 = vmax.f32 %v844, 0.0
        %v846 = vld [vmem:[%s6] sm:$0xff]
        %v847 = vld [vmem:[%s6 + $0x8] sm:$0xff]
        %v848 = vld [vmem:[%s6 + $0x10] sm:$0xff]
        %v849 = vld [vmem:[%s6 + $0x18] sm:$0xff]
        %v850 = vld [vmem:[%s6 + $0x20] sm:$0xff]
        %v851 = vld [vmem:[%s6 + $0x28] sm:$0xff]
        %v852 = vld [vmem:[%s6 + $0x30] sm:$0xff]
        %v853 = vld [vmem:[%s6 + $0x38] sm:$0xff]
        %v854 = vld [vmem:[%s6 + $0x40] sm:$0xff]
        %v855 = vld [vmem:[%s6 + $0x48] sm:$0xff]
        %v856 = vld [vmem:[%s6 + $0x50] sm:$0xff]
        %v857 = vld [vmem:[%s6 + $0x58] sm:$0xff]
        %v858 = vld [vmem:[%s6 + $0x60] sm:$0xff]
        %v859 = vld [vmem:[%s6 + $0x68] sm:$0xff]
        %v860 = vld [vmem:[%s6 + $0x70] sm:$0xff]
        %v861 = vld [vmem:[%s6 + $0x78] sm:$0xff]
        %v862 = vld [vmem:[%s7] sm:$0x1]
        %v864 = vlaneseq
        %v865 = vshrl.u32 %v864, 7
        %v866 = vsub.s32 0, %v865
        %v867 = vrot.slane %v862, %v866
        %869 = vmatprep.subr.mxu0 0.0
        %870 = vmatpush1.msra.mxu0 %v846
        %871 = vmatprep.subr.mxu0 0.0
        %872 = vmatpush1.msra.mxu0 %v847
        %873 = vmatprep.subr.mxu0 0.0
        %874 = vmatpush1.msra.mxu0 %v848
        %875 = vmatprep.subr.mxu0 0.0
        %876 = vmatpush1.msra.mxu0 %v849
        %877 = vmatprep.subr.mxu0 0.0
        %878 = vmatpush1.msra.mxu0 %v850
        %879 = vmatprep.subr.mxu0 0.0
        %880 = vmatpush1.msra.mxu0 %v851
        %881 = vmatprep.subr.mxu0 0.0
        %882 = vmatpush1.msra.mxu0 %v852
        %883 = vmatprep.subr.mxu0 0.0
        %884 = vmatpush1.msra.mxu0 %v853
        %885 = vmatprep.subr.mxu0 0.0
        %886 = vmatpush1.msra.mxu0 %v854
        %887 = vmatprep.subr.mxu0 0.0
        %888 = vmatpush1.msra.mxu0 %v855
        %889 = vmatprep.subr.mxu0 0.0
        %890 = vmatpush1.msra.mxu0 %v856
        %891 = vmatprep.subr.mxu0 0.0
        %892 = vmatpush1.msra.mxu0 %v857
        %893 = vmatprep.subr.mxu0 0.0
        %894 = vmatpush1.msra.mxu0 %v858
        %895 = vmatprep.subr.mxu0 0.0
        %896 = vmatpush1.msra.mxu0 %v859
        %897 = vmatprep.subr.mxu0 0.0
        %898 = vmatpush1.msra.mxu0 %v860
        %899 = vmatprep.subr.mxu0 0.0
        %900 = vmatpush1.msra.mxu0 %v861
        %901 = vmatprep.subr.mxu0 0.0
        %902 = vmatpush1.msra.mxu0 0.0
        %903 = vmatprep.subr.mxu0 0.0
        %904 = vmatpush1.msra.mxu0 0.0
        %905 = vmatprep.subr.mxu0 0.0
        %906 = vmatpush1.msra.mxu0 0.0
        %907 = vmatprep.subr.mxu0 0.0
        %908 = vmatpush1.msra.mxu0 0.0
        %909 = vmatprep.subr.mxu0 0.0
        %910 = vmatpush1.msra.mxu0 0.0
        %911 = vmatprep.subr.mxu0 0.0
        %912 = vmatpush1.msra.mxu0 0.0
        %913 = vmatprep.subr.mxu0 0.0
        %914 = vmatpush1.msra.mxu0 0.0
        %915 = vmatprep.subr.mxu0 0.0
        %916 = vmatpush1.msra.mxu0 0.0
        %917 = vmatprep.subr.mxu0 0.0
        %918 = vmatpush1.msra.mxu0 0.0
        %919 = vmatprep.subr.mxu0 0.0
        %920 = vmatpush1.msra.mxu0 0.0
        %921 = vmatprep.subr.mxu0 0.0
        %922 = vmatpush1.msra.mxu0 0.0
        %923 = vmatprep.subr.mxu0 0.0
        %924 = vmatpush1.msra.mxu0 0.0
        %925 = vmatprep.subr.mxu0 0.0
        %926 = vmatpush1.msra.mxu0 0.0
        %927 = vmatprep.subr.mxu0 0.0
        %928 = vmatpush1.msra.mxu0 0.0
        %929 = vmatprep.subr.mxu0 0.0
        %930 = vmatpush1.msra.mxu0 0.0
        %931 = vmatprep.subr.mxu0 0.0
        %932 = vmatpush1.msra.mxu0 0.0
        %933 = vmatprep.mubr.f32.mxu0 0.0
        %934 = vmatmul.mubr.f32.gmra.mrb[0].mxu0 %v421
        %v935 = vpop.f32.mrb[0].mxu0
        %v936 = vadd.f32 %v867, %v935
        %v937 = vpop.f32.mrb[0].mxu0
        %938 = vdwg.mxu0
        %v939 = vadd.f32 %v845, %v936
        %v940 = vmax.f32 %v939, 0.0
        %941 = vst [vmem:[%s418] sm:$0xff] %v940
        %p942 = scmp.lt.s32.totalorder %s25, 1
        %s943 = scalar_select %p942, %s25, 1
        %p944 = scmp.lt.s32.totalorder %s26, 1
        %s945 = scalar_select %p944, %s26, 1
        %s946 = smul.addr %s943, 2
        %s947 = sadd.s32 %s945, %s946
        %s948 = smul.addr %s947, 8
        %s949 = scalar_lea.vmem %s8, %s948
        // Predicated region
        $region61: #{tcn_forward.4} parent=51 // pred_check
          %p950 = pneg %p241
        $region62: #{tcn_forward.4} parent=51 // pred_check_branch
          %952 = sbr.rel (%p950) target = $region64
        $region63: #{tcn_forward.4} parent=51 // pred_region
          _
        $region64: #{tcn_forward.4} parent=51 // pred_fallthru
          _
      $region52: #{tcn_forward.4} parent=5 // pred_fallthru
        _
      %p953 = scmp.le.s32.totalorder 2, %s16
      // Predicated region
      $region65: #{tcn_forward.4} parent=5 // pred_check
        %p954 = pneg %p953
      $region66: #{tcn_forward.4} parent=5 // pred_check_branch
        %956 = sbr.rel (%p954) target = $region68
      $region67: #{tcn_forward.4} parent=5 // pred_region
        %s957 = ssub.s32 %s16, 2
        // Predicated region
        $region69: #{tcn_forward.4} parent=67 // pred_check
          %p958 = pneg %p247
        $region70: #{tcn_forward.4} parent=67 // pred_check_branch
          %960 = sbr.rel (%p958) target = $region72
        $region71: #{tcn_forward.4} parent=67 // pred_region
          %p961 = scmp.lt.s32.totalorder %s27, 1
          %s962 = scalar_select %p961, %s27, 1
          %p963 = scmp.lt.s32.totalorder %s28, 1
          %s964 = scalar_select %p963, %s28, 1
          %s965 = smul.addr %s962, 2
          %s966 = sadd.s32 %s964, %s965
          %s967 = smul.addr %s966, 8
          %s968 = scalar_lea.vmem %s8, %s967
        $region72: #{tcn_forward.4} parent=67 // pred_fallthru
          _
      $region68: #{tcn_forward.4} parent=5 // pred_fallthru
        _
    $region6: #{tcn_forward.4} parent=1 // loop_footer
      %s20 = sadd.s32 1, %s16
    $region7: #{tcn_forward.4} parent=1 // loop_footer_branch
      %15 = sbr.rel target = $region3
    $region8: #{tcn_forward.4} parent=1 // loop_exit
      _
    %969 = vsyncpa [#allocation3], 1
    %s970 = scalar_lea.sflag [#allocation3], 1
    %971 = vsyncpa %s970, 1
    %972 = vsyncpa [#allocation5], 1

// kernel: tcn_forward.5
$region0: #{tcn_forward.5}
  #allocation0 [shape = 'u32[]', space=smem, size = 0x4, offset = 0x4, fixed_abs, tag = 'smem constant byte address 0x4 - core index']
  #allocation1 [shape = 'u32[144,128]{1,0:T(1,128)}', space=vmem, size = 0x12000, scoped, tag = 'internal scratch']
  %s0 = inlined_call_operand.vmem [shape: f32[2,16,128], index: 0, kind: input, shape index: {}, may-alias: {0,1}]
  %s1 = inlined_call_operand.vmem [shape: f32[2,16,128], index: 1, kind: input, shape index: {}, may-alias: {0,1}]
  %s2 = inlined_call_operand.vmem [shape: f32[2,128,128], index: 2, kind: input, shape index: {}]
  %s3 = inlined_call_operand.vmem [shape: f32[1,128], index: 3, kind: input, shape index: {}]
  %s4 = inlined_call_operand.vmem [shape: f32[2,128,128], index: 4, kind: input, shape index: {}]
  %s5 = inlined_call_operand.vmem [shape: f32[1,128], index: 5, kind: input, shape index: {}]
  %s6 = inlined_call_operand.vmem [shape: f32[1,128,128], index: 6, kind: input, shape index: {}]
  %s7 = inlined_call_operand.vmem [shape: f32[1,128], index: 7, kind: input, shape index: {}]
  %s8 = inlined_call_operand.vmem [shape: f32[2,16,128], index: 8, kind: output, shape index: {}]
  %s9 = sld [smem:[#allocation0]]
  $region65: #{tcn_forward.5} parent=0
    _
  %s11 = ssub.s32 1, %s9
  %s12 = scalar_select 0, %s11, %s9
  loop: start=0, step=1, limit=6
  $region2: #{tcn_forward.5} parent=0 // loop_pre_header
    _
  $region3: #{tcn_forward.5} parent=0 // loop_header
    %s14 = sphi 0, %s18
    %p15 = scmp.ge.s32.totalorder %s14, 6
    %s21 = sphi 0, %s33
    %s22 = sphi 0, %s29
    %s23 = sphi 0, %s21
    %s24 = sphi 0, %s22
    %s25 = sphi 0, %s23
    %s26 = sphi 0, %s24
    %s44 = sphi 0, %s46
    %s47 = sphi 0, %s44
    %s48 = sphi 0, %s47
    %s64 = sphi 0, %s48
    %s72 = sphi 0, %s74
    %s75 = sphi 0, %s72
    %s76 = sphi 0, %s75
    %s92 = sphi 0, %s76
    %s96 = sphi 0, %s96
    %s98 = sphi 0, %s96
    %s99 = sphi 0, %s98
    %s113 = sphi 0, %s99
    %s117 = sphi 0, %s117
    %s119 = sphi 0, %s117
    %s120 = sphi 0, %s119
    %s134 = sphi 0, %s120
    %s138 = sphi 0, %s138
    %s140 = sphi 0, %s138
    %s141 = sphi 0, %s140
    %s155 = sphi 0, %s141
    %s159 = sphi 0, %s159
    %s161 = sphi 0, %s159
    %s162 = sphi 0, %s161
    %s176 = sphi 0, %s162
    %s180 = sphi 0, %s180
    %s182 = sphi 0, %s180
    %s183 = sphi 0, %s182
    %s197 = sphi 0, %s183
    %s201 = sphi 0, %s201
    %s203 = sphi 0, %s201
    %s204 = sphi 0, %s203
    %s218 = sphi 0, %s204
    %s226 = sphi 0, %s228
    %s229 = sphi 0, %s226
    %s230 = sphi 0, %s229
    %s246 = sphi 0, %s230
  $region4: #{tcn_forward.5} parent=0 // loop_header_branch
    %17 = sbr.rel (%p15) target = $region8
  $region5: #{tcn_forward.5} parent=0 // loop_body
    %s19 = ssub.s32 %s14, 1
    %s20 = ssub.s32 %s14, 2
    %s27 = sadd.s32 1, %s22
    %p28 = scmp.ge.s32.totalorder %s27, 2
    %s29 = scalar_select %p28, 0, %s27
    %s30 = sadd.s32 1, %s21
    %s31 = scalar_select %p28, %s30, %s21
    %p32 = scmp.ge.s32.totalorder %s31, 2
    %s33 = scalar_select %p32, 0, %s31
    %s34 = sadd.s32 %s22, 4294967295
    %p35 = scmp.gt.s32.totalorder %s34, 0
    %s36 = scalar_select %p35, %s34, 0
    %s37 = sadd.s32 %s29, 4294967295
    %p38 = scmp.gt.s32.totalorder %s37, 0
    %s39 = scalar_select %p38, %s37, 0
    %s40 = ssub.s32 %s21, %s33
    %s41 = ssub.s32 %s36, %s39
    %s42 = sor.u32 %s40, %s41
    %p43 = scmp.eq.s32.totalorder %s42, 0
    %s45 = sadd.s32 %s44, 1
    %s46 = scalar_select %p43, %s44, %s45
    %p49 = pneg %p43
    %p50 = scmp.eq.s32.totalorder %s14, 3
    %p51 = por %p49, %p50
    %p52 = scmp.ne.s32.totalorder %s44, %s47
    %p53 = scmp.eq.s32.totalorder %s14, 0
    %p54 = por %p52, %p53
    %p55 = scmp.ne.s32.totalorder %s44, %s47
    %p56 = scmp.eq.s32.totalorder %s19, 3
    %p57 = por %p55, %p56
    %p58 = scmp.ne.s32.totalorder %s47, %s48
    %p59 = scmp.eq.s32.totalorder %s19, 0
    %p60 = por %p58, %p59
    %p61 = scmp.ne.s32.totalorder %s47, %s48
    %p62 = scmp.eq.s32.totalorder %s20, 3
    %p63 = por %p61, %p62
    %p65 = scmp.ne.s32.totalorder %s48, %s64
    %p66 = scmp.eq.s32.totalorder %s20, 0
    %p67 = por %p65, %p66
    %s68 = ssub.s32 %s21, %s33
    %s69 = ssub.s32 %s22, %s29
    %s70 = sor.u32 %s68, %s69
    %p71 = scmp.eq.s32.totalorder %s70, 0
    %s73 = sadd.s32 %s72, 1
    %s74 = scalar_select %p71, %s72, %s73
    %p77 = pneg %p71
    %p78 = scmp.eq.s32.totalorder %s14, 3
    %p79 = por %p77, %p78
    %p80 = scmp.ne.s32.totalorder %s72, %s75
    %p81 = scmp.eq.s32.totalorder %s14, 0
    %p82 = por %p80, %p81
    %p83 = scmp.ne.s32.totalorder %s72, %s75
    %p84 = scmp.eq.s32.totalorder %s19, 3
    %p85 = por %p83, %p84
    %p86 = scmp.ne.s32.totalorder %s75, %s76
    %p87 = scmp.eq.s32.totalorder %s19, 0
    %p88 = por %p86, %p87
    %p89 = scmp.ne.s32.totalorder %s75, %s76
    %p90 = scmp.eq.s32.totalorder %s20, 3
    %p91 = por %p89, %p90
    %p93 = scmp.ne.s32.totalorder %s76, %s92
    %p94 = scmp.eq.s32.totalorder %s20, 0
    %p95 = por %p93, %p94
    %s97 = sadd.s32 %s96, 1
    %p100 = scmp.eq.s32.totalorder %s14, 3
    %p101 = scmp.ne.s32.totalorder %s96, %s98
    %p102 = scmp.eq.s32.totalorder %s14, 0
    %p103 = por %p101, %p102
    %p104 = scmp.ne.s32.totalorder %s96, %s98
    %p105 = scmp.eq.s32.totalorder %s19, 3
    %p106 = por %p104, %p105
    %p107 = scmp.ne.s32.totalorder %s98, %s99
    %p108 = scmp.eq.s32.totalorder %s19, 0
    %p109 = por %p107, %p108
    %p110 = scmp.ne.s32.totalorder %s98, %s99
    %p111 = scmp.eq.s32.totalorder %s20, 3
    %p112 = por %p110, %p111
    %p114 = scmp.ne.s32.totalorder %s99, %s113
    %p115 = scmp.eq.s32.totalorder %s20, 0
    %p116 = por %p114, %p115
    %s118 = sadd.s32 %s117, 1
    %p121 = scmp.eq.s32.totalorder %s14, 3
    %p122 = scmp.ne.s32.totalorder %s117, %s119
    %p123 = scmp.eq.s32.totalorder %s14, 0
    %p124 = por %p122, %p123
    %p125 = scmp.ne.s32.totalorder %s117, %s119
    %p126 = scmp.eq.s32.totalorder %s19, 3
    %p127 = por %p125, %p126
    %p128 = scmp.ne.s32.totalorder %s119, %s120
    %p129 = scmp.eq.s32.totalorder %s19, 0
    %p130 = por %p128, %p129
    %p131 = scmp.ne.s32.totalorder %s119, %s120
    %p132 = scmp.eq.s32.totalorder %s20, 3
    %p133 = por %p131, %p132
    %p135 = scmp.ne.s32.totalorder %s120, %s134
    %p136 = scmp.eq.s32.totalorder %s20, 0
    %p137 = por %p135, %p136
    %s139 = sadd.s32 %s138, 1
    %p142 = scmp.eq.s32.totalorder %s14, 3
    %p143 = scmp.ne.s32.totalorder %s138, %s140
    %p144 = scmp.eq.s32.totalorder %s14, 0
    %p145 = por %p143, %p144
    %p146 = scmp.ne.s32.totalorder %s138, %s140
    %p147 = scmp.eq.s32.totalorder %s19, 3
    %p148 = por %p146, %p147
    %p149 = scmp.ne.s32.totalorder %s140, %s141
    %p150 = scmp.eq.s32.totalorder %s19, 0
    %p151 = por %p149, %p150
    %p152 = scmp.ne.s32.totalorder %s140, %s141
    %p153 = scmp.eq.s32.totalorder %s20, 3
    %p154 = por %p152, %p153
    %p156 = scmp.ne.s32.totalorder %s141, %s155
    %p157 = scmp.eq.s32.totalorder %s20, 0
    %p158 = por %p156, %p157
    %s160 = sadd.s32 %s159, 1
    %p163 = scmp.eq.s32.totalorder %s14, 3
    %p164 = scmp.ne.s32.totalorder %s159, %s161
    %p165 = scmp.eq.s32.totalorder %s14, 0
    %p166 = por %p164, %p165
    %p167 = scmp.ne.s32.totalorder %s159, %s161
    %p168 = scmp.eq.s32.totalorder %s19, 3
    %p169 = por %p167, %p168
    %p170 = scmp.ne.s32.totalorder %s161, %s162
    %p171 = scmp.eq.s32.totalorder %s19, 0
    %p172 = por %p170, %p171
    %p173 = scmp.ne.s32.totalorder %s161, %s162
    %p174 = scmp.eq.s32.totalorder %s20, 3
    %p175 = por %p173, %p174
    %p177 = scmp.ne.s32.totalorder %s162, %s176
    %p178 = scmp.eq.s32.totalorder %s20, 0
    %p179 = por %p177, %p178
    %s181 = sadd.s32 %s180, 1
    %p184 = scmp.eq.s32.totalorder %s14, 3
    %p185 = scmp.ne.s32.totalorder %s180, %s182
    %p186 = scmp.eq.s32.totalorder %s14, 0
    %p187 = por %p185, %p186
    %p188 = scmp.ne.s32.totalorder %s180, %s182
    %p189 = scmp.eq.s32.totalorder %s19, 3
    %p190 = por %p188, %p189
    %p191 = scmp.ne.s32.totalorder %s182, %s183
    %p192 = scmp.eq.s32.totalorder %s19, 0
    %p193 = por %p191, %p192
    %p194 = scmp.ne.s32.totalorder %s182, %s183
    %p195 = scmp.eq.s32.totalorder %s20, 3
    %p196 = por %p194, %p195
    %p198 = scmp.ne.s32.totalorder %s183, %s197
    %p199 = scmp.eq.s32.totalorder %s20, 0
    %p200 = por %p198, %p199
    %s202 = sadd.s32 %s201, 1
    %p205 = scmp.eq.s32.totalorder %s14, 3
    %p206 = scmp.ne.s32.totalorder %s201, %s203
    %p207 = scmp.eq.s32.totalorder %s14, 0
    %p208 = por %p206, %p207
    %p209 = scmp.ne.s32.totalorder %s201, %s203
    %p210 = scmp.eq.s32.totalorder %s19, 3
    %p211 = por %p209, %p210
    %p212 = scmp.ne.s32.totalorder %s203, %s204
    %p213 = scmp.eq.s32.totalorder %s19, 0
    %p214 = por %p212, %p213
    %p215 = scmp.ne.s32.totalorder %s203, %s204
    %p216 = scmp.eq.s32.totalorder %s20, 3
    %p217 = por %p215, %p216
    %p219 = scmp.ne.s32.totalorder %s204, %s218
    %p220 = scmp.eq.s32.totalorder %s20, 0
    %p221 = por %p219, %p220
    %s222 = ssub.s32 %s21, %s33
    %s223 = ssub.s32 %s22, %s29
    %s224 = sor.u32 %s222, %s223
    %p225 = scmp.eq.s32.totalorder %s224, 0
    %s227 = sadd.s32 %s226, 1
    %s228 = scalar_select %p225, %s226, %s227
    %p231 = pneg %p225
    %p232 = scmp.eq.s32.totalorder %s14, 3
    %p233 = por %p231, %p232
    %p234 = scmp.ne.s32.totalorder %s226, %s229
    %p235 = scmp.eq.s32.totalorder %s14, 0
    %p236 = por %p234, %p235
    %p237 = scmp.ne.s32.totalorder %s226, %s229
    %p238 = scmp.eq.s32.totalorder %s19, 3
    %p239 = por %p237, %p238
    %p240 = scmp.ne.s32.totalorder %s229, %s230
    %p241 = scmp.eq.s32.totalorder %s19, 0
    %p242 = por %p240, %p241
    %p243 = scmp.ne.s32.totalorder %s229, %s230
    %p244 = scmp.eq.s32.totalorder %s20, 3
    %p245 = por %p243, %p244
    %p247 = scmp.ne.s32.totalorder %s230, %s246
    %p248 = scmp.eq.s32.totalorder %s20, 0
    %p249 = por %p247, %p248
    %p250 = scmp.le.s32.totalorder 1, %s14
    %p251 = scmp.lt.s32.totalorder %s14, 5
    %p252 = pnand %p250, %p251
    %p253 = pneg %p252
    // Predicated region
    $region9: #{tcn_forward.5} parent=5 // pred_check
      _
    $region10: #{tcn_forward.5} parent=5 // pred_check_branch
      %255 = sbr.rel (%p252) target = $region12
    $region11: #{tcn_forward.5} parent=5 // pred_region
      %s256 = ssub.s32 %s14, 1
      // Predicated region
      $region13: #{tcn_forward.5} parent=11 // pred_check
        %p257 = pneg %p109
      $region14: #{tcn_forward.5} parent=11 // pred_check_branch
        %259 = sbr.rel (%p257) target = $region16
      $region15: #{tcn_forward.5} parent=11 // pred_region
        _
      $region16: #{tcn_forward.5} parent=11 // pred_fallthru
        _
      // Predicated region
      $region17: #{tcn_forward.5} parent=11 // pred_check
        %p260 = pneg %p130
      $region18: #{tcn_forward.5} parent=11 // pred_check_branch
        %262 = sbr.rel (%p260) target = $region20
      $region19: #{tcn_forward.5} parent=11 // pred_region
        _
      $region20: #{tcn_forward.5} parent=11 // pred_fallthru
        _
      // Predicated region
      $region21: #{tcn_forward.5} parent=11 // pred_check
        %p263 = pneg %p151
      $region22: #{tcn_forward.5} parent=11 // pred_check_branch
        %265 = sbr.rel (%p263) target = $region24
      $region23: #{tcn_forward.5} parent=11 // pred_region
        _
      $region24: #{tcn_forward.5} parent=11 // pred_fallthru
        _
      // Predicated region
      $region25: #{tcn_forward.5} parent=11 // pred_check
        %p266 = pneg %p172
      $region26: #{tcn_forward.5} parent=11 // pred_check_branch
        %268 = sbr.rel (%p266) target = $region28
      $region27: #{tcn_forward.5} parent=11 // pred_region
        _
      $region28: #{tcn_forward.5} parent=11 // pred_fallthru
        _
      // Predicated region
      $region29: #{tcn_forward.5} parent=11 // pred_check
        %p269 = pneg %p193
      $region30: #{tcn_forward.5} parent=11 // pred_check_branch
        %271 = sbr.rel (%p269) target = $region32
      $region31: #{tcn_forward.5} parent=11 // pred_region
        _
      $region32: #{tcn_forward.5} parent=11 // pred_fallthru
        _
      // Predicated region
      $region33: #{tcn_forward.5} parent=11 // pred_check
        %p272 = pneg %p214
      $region34: #{tcn_forward.5} parent=11 // pred_check_branch
        %274 = sbr.rel (%p272) target = $region36
      $region35: #{tcn_forward.5} parent=11 // pred_region
        _
      $region36: #{tcn_forward.5} parent=11 // pred_fallthru
        _
    $region12: #{tcn_forward.5} parent=5 // pred_fallthru
      _
    %p275 = scmp.lt.s32.totalorder %s14, 4
    // Predicated region
    $region37: #{tcn_forward.5} parent=5 // pred_check
      %p276 = pneg %p275
    $region38: #{tcn_forward.5} parent=5 // pred_check_branch
      %278 = sbr.rel (%p276) target = $region40
    $region39: #{tcn_forward.5} parent=5 // pred_region
      // Predicated region
      $region41: #{tcn_forward.5} parent=39 // pred_check
        %p279 = pneg %p54
      $region42: #{tcn_forward.5} parent=39 // pred_check_branch
        %281 = sbr.rel (%p279) target = $region44
      $region43: #{tcn_forward.5} parent=39 // pred_region
        %s282 = sadd.s32 %s22, 4294967295
        %p283 = scmp.gt.s32.totalorder %s282, 0
        %s284 = scalar_select %p283, %s282, 0
        %p285 = scmp.lt.s32.totalorder %s21, 1
        %s286 = scalar_select %p285, %s21, 1
        %p287 = scmp.lt.s32.totalorder %s284, 1
        %s288 = scalar_select %p287, %s284, 1
        %s289 = smul.addr %s286, 2
        %s290 = sadd.s32 %s288, %s289
        %s291 = smul.addr %s290, 8
        %s292 = scalar_lea.vmem %s0, %s291
        %s293 = sadd.s32 %s22, 4294967295
        %p294 = scmp.gt.s32.totalorder %s293, 0
        %s295 = scalar_select %p294, %s293, 0
      $region44: #{tcn_forward.5} parent=39 // pred_fallthru
        _
      // Predicated region
      $region45: #{tcn_forward.5} parent=39 // pred_check
        %p296 = pneg %p82
      $region46: #{tcn_forward.5} parent=39 // pred_check_branch
        %298 = sbr.rel (%p296) target = $region48
      $region47: #{tcn_forward.5} parent=39 // pred_region
        %p299 = scmp.lt.s32.totalorder %s21, 1
        %s300 = scalar_select %p299, %s21, 1
        %p301 = scmp.lt.s32.totalorder %s22, 1
        %s302 = scalar_select %p301, %s22, 1
        %s303 = smul.addr %s300, 2
        %s304 = sadd.s32 %s302, %s303
        %s305 = smul.addr %s304, 8
        %s306 = scalar_lea.vmem %s1, %s305
      $region48: #{tcn_forward.5} parent=39 // pred_fallthru
        _
    $region40: #{tcn_forward.5} parent=5 // pred_fallthru
      _
    %p307 = scmp.le.s32.totalorder 1, %s14
    %p308 = scmp.lt.s32.totalorder %s14, 5
    %p309 = pnand %p307, %p308
    %p310 = pneg %p309
    // Predicated region
    $region49: #{tcn_forward.5} parent=5 // pred_check
      _
    $region50: #{tcn_forward.5} parent=5 // pred_check_branch
      %312 = sbr.rel (%p309) target = $region52
    $region51: #{tcn_forward.5} parent=5 // pred_region
      %s313 = ssub.s32 %s14, 1
      %s314 = sadd.s32 %s24, 4294967295
      %p315 = scmp.gt.s32.totalorder %s314, 0
      %s316 = scalar_select %p315, %s314, 0
      %p317 = scmp.lt.s32.totalorder %s23, 1
      %s318 = scalar_select %p317, %s23, 1
      %p319 = scmp.lt.s32.totalorder %s316, 1
      %s320 = scalar_select %p319, %s316, 1
      %s321 = smul.addr %s318, 2
      %s322 = sadd.s32 %s320, %s321
      %s323 = smul.addr %s322, 8
      %s324 = scalar_lea.vmem %s0, %s323
      %p325 = pneg %p60
      %p326 = pneg %p57
      %p327 = scmp.lt.s32.totalorder %s23, 1
      %s328 = scalar_select %p327, %s23, 1
      %p329 = scmp.lt.s32.totalorder %s24, 1
      %s330 = scalar_select %p329, %s24, 1
      %s331 = smul.addr %s328, 2
      %s332 = sadd.s32 %s330, %s331
      %s333 = smul.addr %s332, 8
      %s334 = scalar_lea.vmem %s1, %s333
      %p335 = pneg %p88
      %p336 = pneg %p85
      %p337 = pneg %p109
      %p338 = pneg %p106
      %p339 = pneg %p130
      %p340 = pneg %p127
      %p341 = pneg %p151
      %p342 = pneg %p148
      %p343 = pneg %p172
      %p344 = pneg %p169
      %p345 = pneg %p193
      %p346 = pneg %p190
      %p347 = pneg %p214
      %p348 = pneg %p211
      %p349 = pneg %p242
      %p350 = pneg %p239
      %p351 = scmp.lt.s32.totalorder %s23, 1
      %s352 = scalar_select %p351, %s23, 1
      %p353 = scmp.lt.s32.totalorder %s24, 1
      %s354 = scalar_select %p353, %s24, 1
      %s355 = smul.addr %s352, 2
      %s356 = sadd.s32 %s354, %s355
      %s357 = smul.addr %s356, 8
      %s358 = scalar_lea.vmem %s8, %s357
      %s359 = sadd.s32 %s24, 4294967295
      %p360 = scmp.gt.s32.totalorder %s359, 0
      %s361 = scalar_select %p360, %s359, 0
      %p362 = scmp.lt.s32.totalorder %s23, 1
      %s363 = scalar_select %p362, %s23, 1
      %p364 = scmp.lt.s32.totalorder %s361, 1
      %s365 = scalar_select %p364, %s361, 1
      %s366 = smul.addr %s363, 2
      %s367 = sadd.s32 %s365, %s366
      %s368 = smul.addr %s367, 8
      %s369 = scalar_lea.vmem %s0, %s368
      %s370 = sadd.s32 %s24, 4294967295
      %p371 = scmp.gt.s32.totalorder %s370, 0
      %s372 = scalar_select %p371, %s370, 0
      %p373 = scmp.lt.s32.totalorder %s23, 1
      %s374 = scalar_select %p373, %s23, 1
      %p375 = scmp.lt.s32.totalorder %s24, 1
      %s376 = scalar_select %p375, %s24, 1
      %s377 = smul.addr %s374, 2
      %s378 = sadd.s32 %s376, %s377
      %s379 = smul.addr %s378, 8
      %s380 = scalar_lea.vmem %s1, %s379
      %p381 = scmp.lt.s32.totalorder %s23, 1
      %s382 = scalar_select %p381, %s23, 1
      %p383 = scmp.lt.s32.totalorder %s24, 1
      %s384 = scalar_select %p383, %s24, 1
      %s385 = smul.addr %s382, 2
      %s386 = sadd.s32 %s384, %s385
      %s387 = smul.addr %s386, 8
      %s388 = scalar_lea.vmem %s8, %s387
      %s389 = smul.u32 %s24, 8
      %v390 = vld [vmem:[%s369] sm:$0xff]
      %v391 = vld [vmem:[%s380] sm:$0xff]
      %v392 = vlaneseq
      %v393 = vshrl.u32 %v392, 7
      %v394 = vadd.s32 %v393, 8
      %s395 = ssub.s32 %s389, 8
      %v396 = vstv %s395
      %v397 = vadd.s32 %v393, %v396
      %v398 = vadd.s32 %v394, %v396
      %vm399 = vcmp.ge.s32.totalorder %v397, 0
      %vm400 = vcmp.ge.s32.totalorder %v398, 0
      %v401 = vsel %vm399, 1, 0
      %v402 = vsel %vm400, 1, 0
      %vm403 = vcmp.eq.s32.totalorder %v401, 1
      %vm404 = vcmp.eq.s32.totalorder %v402, 1
      %v405 = vsel %vm403, %v390, 0.0
      %v406 = vsel %vm404, %v391, 0.0
      %v407 = vld [vmem:[%s2] sm:$0xff]
      %v408 = vld [vmem:[%s2 + $0x8] sm:$0xff]
      %v409 = vld [vmem:[%s2 + $0x10] sm:$0xff]
      %v410 = vld [vmem:[%s2 + $0x18] sm:$0xff]
      %v411 = vld [vmem:[%s2 + $0x20] sm:$0xff]
      %v412 = vld [vmem:[%s2 + $0x28] sm:$0xff]
      %v413 = vld [vmem:[%s2 + $0x30] sm:$0xff]
      %v414 = vld [vmem:[%s2 + $0x38] sm:$0xff]
      %v415 = vld [vmem:[%s2 + $0x40] sm:$0xff]
      %v416 = vld [vmem:[%s2 + $0x48] sm:$0xff]
      %v417 = vld [vmem:[%s2 + $0x50] sm:$0xff]
      %v418 = vld [vmem:[%s2 + $0x58] sm:$0xff]
      %v419 = vld [vmem:[%s2 + $0x60] sm:$0xff]
      %v420 = vld [vmem:[%s2 + $0x68] sm:$0xff]
      %v421 = vld [vmem:[%s2 + $0x70] sm:$0xff]
      %v422 = vld [vmem:[%s2 + $0x78] sm:$0xff]
      %s423 = scalar_lea.vmem %s2, 128
      %v424 = vld [vmem:[%s423] sm:$0xff]
      %v425 = vld [vmem:[%s423 + $0x8] sm:$0xff]
      %v426 = vld [vmem:[%s423 + $0x10] sm:$0xff]
      %v427 = vld [vmem:[%s423 + $0x18] sm:$0xff]
      %v428 = vld [vmem:[%s423 + $0x20] sm:$0xff]
      %v429 = vld [vmem:[%s423 + $0x28] sm:$0xff]
      %v430 = vld [vmem:[%s423 + $0x30] sm:$0xff]
      %v431 = vld [vmem:[%s423 + $0x38] sm:$0xff]
      %v432 = vld [vmem:[%s423 + $0x40] sm:$0xff]
      %v433 = vld [vmem:[%s423 + $0x48] sm:$0xff]
      %v434 = vld [vmem:[%s423 + $0x50] sm:$0xff]
      %v435 = vld [vmem:[%s423 + $0x58] sm:$0xff]
      %v436 = vld [vmem:[%s423 + $0x60] sm:$0xff]
      %v437 = vld [vmem:[%s423 + $0x68] sm:$0xff]
      %v438 = vld [vmem:[%s423 + $0x70] sm:$0xff]
      %v439 = vld [vmem:[%s423 + $0x78] sm:$0xff]
      %vm442 = vcmask 1041408
      %v443 = vrot.slane %v405, 6
      %v444 = vrot.slane %v406, 6
      %v445 = vsel %vm442, %v443, %v444
      %448 = vmatprep.subr.mxu0 0.0
      %449 = vmatpush1.msra.mxu0 %v424
      %450 = vmatprep.subr.mxu0 0.0
      %451 = vmatpush1.msra.mxu0 %v425
      %452 = vmatprep.subr.mxu0 0.0
      %453 = vmatpush1.msra.mxu0 %v426
      %454 = vmatprep.subr.mxu0 0.0
      %455 = vmatpush1.msra.mxu0 %v427
      %456 = vmatprep.subr.mxu0 0.0
      %457 = vmatpush1.msra.mxu0 %v428
      %458 = vmatprep.subr.mxu0 0.0
      %459 = vmatpush1.msra.mxu0 %v429
      %460 = vmatprep.subr.mxu0 0.0
      %461 = vmatpush1.msra.mxu0 %v430
      %462 = vmatprep.subr.mxu0 0.0
      %463 = vmatpush1.msra.mxu0 %v431
      %464 = vmatprep.subr.mxu0 0.0
      %465 = vmatpush1.msra.mxu0 %v432
      %466 = vmatprep.subr.mxu0 0.0
      %467 = vmatpush1.msra.mxu0 %v433
      %468 = vmatprep.subr.mxu0 0.0
      %469 = vmatpush1.msra.mxu0 %v434
      %470 = vmatprep.subr.mxu0 0.0
      %471 = vmatpush1.msra.mxu0 %v435
      %472 = vmatprep.subr.mxu0 0.0
      %473 = vmatpush1.msra.mxu0 %v436
      %474 = vmatprep.subr.mxu0 0.0
      %475 = vmatpush1.msra.mxu0 %v437
      %476 = vmatprep.subr.mxu0 0.0
      %477 = vmatpush1.msra.mxu0 %v438
      %478 = vmatprep.subr.mxu0 0.0
      %479 = vmatpush1.msra.mxu0 %v439
      %480 = vmatprep.subr.mxu0 0.0
      %481 = vmatpush1.msra.mxu0 0.0
      %482 = vmatprep.subr.mxu0 0.0
      %483 = vmatpush1.msra.mxu0 0.0
      %484 = vmatprep.subr.mxu0 0.0
      %485 = vmatpush1.msra.mxu0 0.0
      %486 = vmatprep.subr.mxu0 0.0
      %487 = vmatpush1.msra.mxu0 0.0
      %488 = vmatprep.subr.mxu0 0.0
      %489 = vmatpush1.msra.mxu0 0.0
      %490 = vmatprep.subr.mxu0 0.0
      %491 = vmatpush1.msra.mxu0 0.0
      %492 = vmatprep.subr.mxu0 0.0
      %493 = vmatpush1.msra.mxu0 0.0
      %494 = vmatprep.subr.mxu0 0.0
      %495 = vmatpush1.msra.mxu0 0.0
      %496 = vmatprep.subr.mxu0 0.0
      %497 = vmatpush1.msra.mxu0 0.0
      %498 = vmatprep.subr.mxu0 0.0
      %499 = vmatpush1.msra.mxu0 0.0
      %500 = vmatprep.subr.mxu0 0.0
      %501 = vmatpush1.msra.mxu0 0.0
      %502 = vmatprep.subr.mxu0 0.0
      %503 = vmatpush1.msra.mxu0 0.0
      %504 = vmatprep.subr.mxu0 0.0
      %505 = vmatpush1.msra.mxu0 0.0
      %506 = vmatprep.subr.mxu0 0.0
      %507 = vmatpush1.msra.mxu0 0.0
      %508 = vmatprep.subr.mxu0 0.0
      %509 = vmatpush1.msra.mxu0 0.0
      %510 = vmatprep.subr.mxu0 0.0
      %511 = vmatpush1.msra.mxu0 0.0
      %512 = vmatprep.mubr.f32.mxu0 0.0
      %513 = vmatmul.mubr.f32.gmra.mrb[0].mxu0 %v445
      %v514 = vpop.f32.mrb[0].mxu0
      %v515 = vadd.f32 0.0, %v514
      %v516 = vpop.f32.mrb[0].mxu0
      %517 = vmatprep.mubr.f32.mxu0 0.0
      %518 = vmatmul.mubr.f32.gmra.mrb[0].mxu0 %v444
      %v519 = vpop.f32.mrb[0].mxu0
      %v520 = vadd.f32 0.0, %v519
      %v521 = vpop.f32.mrb[0].mxu0
      %522 = vdwg.mxu0
      %vm523 = vcmask 1043456
      %v524 = vrot.slane %v405, 4
      %v525 = vrot.slane %v406, 4
      %v526 = vsel %vm523, %v524, %v525
      %529 = vmatprep.subr.mxu0 0.0
      %530 = vmatpush1.msra.mxu0 %v407
      %531 = vmatprep.subr.mxu0 0.0
      %532 = vmatpush1.msra.mxu0 %v408
      %533 = vmatprep.subr.mxu0 0.0
      %534 = vmatpush1.msra.mxu0 %v409
      %535 = vmatprep.subr.mxu0 0.0
      %536 = vmatpush1.msra.mxu0 %v410
      %537 = vmatprep.subr.mxu0 0.0
      %538 = vmatpush1.msra.mxu0 %v411
      %539 = vmatprep.subr.mxu0 0.0
      %540 = vmatpush1.msra.mxu0 %v412
      %541 = vmatprep.subr.mxu0 0.0
      %542 = vmatpush1.msra.mxu0 %v413
      %543 = vmatprep.subr.mxu0 0.0
      %544 = vmatpush1.msra.mxu0 %v414
      %545 = vmatprep.subr.mxu0 0.0
      %546 = vmatpush1.msra.mxu0 %v415
      %547 = vmatprep.subr.mxu0 0.0
      %548 = vmatpush1.msra.mxu0 %v416
      %549 = vmatprep.subr.mxu0 0.0
      %550 = vmatpush1.msra.mxu0 %v417
      %551 = vmatprep.subr.mxu0 0.0
      %552 = vmatpush1.msra.mxu0 %v418
      %553 = vmatprep.subr.mxu0 0.0
      %554 = vmatpush1.msra.mxu0 %v419
      %555 = vmatprep.subr.mxu0 0.0
      %556 = vmatpush1.msra.mxu0 %v420
      %557 = vmatprep.subr.mxu0 0.0
      %558 = vmatpush1.msra.mxu0 %v421
      %559 = vmatprep.subr.mxu0 0.0
      %560 = vmatpush1.msra.mxu0 %v422
      %561 = vmatprep.subr.mxu0 0.0
      %562 = vmatpush1.msra.mxu0 0.0
      %563 = vmatprep.subr.mxu0 0.0
      %564 = vmatpush1.msra.mxu0 0.0
      %565 = vmatprep.subr.mxu0 0.0
      %566 = vmatpush1.msra.mxu0 0.0
      %567 = vmatprep.subr.mxu0 0.0
      %568 = vmatpush1.msra.mxu0 0.0
      %569 = vmatprep.subr.mxu0 0.0
      %570 = vmatpush1.msra.mxu0 0.0
      %571 = vmatprep.subr.mxu0 0.0
      %572 = vmatpush1.msra.mxu0 0.0
      %573 = vmatprep.subr.mxu0 0.0
      %574 = vmatpush1.msra.mxu0 0.0
      %575 = vmatprep.subr.mxu0 0.0
      %576 = vmatpush1.msra.mxu0 0.0
      %577 = vmatprep.subr.mxu0 0.0
      %578 = vmatpush1.msra.mxu0 0.0
      %579 = vmatprep.subr.mxu0 0.0
      %580 = vmatpush1.msra.mxu0 0.0
      %581 = vmatprep.subr.mxu0 0.0
      %582 = vmatpush1.msra.mxu0 0.0
      %583 = vmatprep.subr.mxu0 0.0
      %584 = vmatpush1.msra.mxu0 0.0
      %585 = vmatprep.subr.mxu0 0.0
      %586 = vmatpush1.msra.mxu0 0.0
      %587 = vmatprep.subr.mxu0 0.0
      %588 = vmatpush1.msra.mxu0 0.0
      %589 = vmatprep.subr.mxu0 0.0
      %590 = vmatpush1.msra.mxu0 0.0
      %591 = vmatprep.subr.mxu0 0.0
      %592 = vmatpush1.msra.mxu0 0.0
      %593 = vmatprep.mubr.f32.mxu0 0.0
      %594 = vmatmul.mubr.f32.gmra.mrb[0].mxu0 %v526
      %v595 = vpop.f32.mrb[0].mxu0
      %v596 = vadd.f32 %v515, %v595
      %v597 = vpop.f32.mrb[0].mxu0
      %598 = vmatprep.mubr.f32.mxu0 0.0
      %599 = vmatmul.mubr.f32.gmra.mrb[0].mxu0 %v525
      %v600 = vpop.f32.mrb[0].mxu0
      %v601 = vadd.f32 %v520, %v600
      %v602 = vpop.f32.mrb[0].mxu0
      %603 = vdwg.mxu0
      %v604 = vld [vmem:[%s3] sm:$0x1]
      %v606 = vlaneseq
      %v607 = vshrl.u32 %v606, 7
      %v608 = vsub.s32 0, %v607
      %v609 = vrot.slane %v604, %v608
      %v611 = vadd.f32 %v596, %v609
      %v612 = vadd.f32 %v601, %v609
      %v613 = vmax.f32 %v611, 0.0
      %v614 = vmax.f32 %v612, 0.0
      %s615 = ssub.s32 %s389, 2
      %v616 = vstv %s615
      %v617 = vadd.s32 %v393, %v616
      %v618 = vadd.s32 %v394, %v616
      %vm619 = vcmp.ge.s32.totalorder %v617, 0
      %vm620 = vcmp.ge.s32.totalorder %v618, 0
      %v621 = vsel %vm619, 1, 0
      %v622 = vsel %vm620, 1, 0
      %vm623 = vcmp.eq.s32.totalorder %v621, 1
      %vm624 = vcmp.eq.s32.totalorder %v622, 1
      %v625 = vsel %vm623, %v613, 0.0
      %v626 = vsel %vm624, %v614, 0.0
      %v627 = vld [vmem:[%s4] sm:$0xff]
      %v628 = vld [vmem:[%s4 + $0x8] sm:$0xff]
      %v629 = vld [vmem:[%s4 + $0x10] sm:$0xff]
      %v630 = vld [vmem:[%s4 + $0x18] sm:$0xff]
      %v631 = vld [vmem:[%s4 + $0x20] sm:$0xff]
      %v632 = vld [vmem:[%s4 + $0x28] sm:$0xff]
      %v633 = vld [vmem:[%s4 + $0x30] sm:$0xff]
      %v634 = vld [vmem:[%s4 + $0x38] sm:$0xff]
      %v635 = vld [vmem:[%s4 + $0x40] sm:$0xff]
      %v636 = vld [vmem:[%s4 + $0x48] sm:$0xff]
      %v637 = vld [vmem:[%s4 + $0x50] sm:$0xff]
      %v638 = vld [vmem:[%s4 + $0x58] sm:$0xff]
      %v639 = vld [vmem:[%s4 + $0x60] sm:$0xff]
      %v640 = vld [vmem:[%s4 + $0x68] sm:$0xff]
      %v641 = vld [vmem:[%s4 + $0x70] sm:$0xff]
      %v642 = vld [vmem:[%s4 + $0x78] sm:$0xff]
      %s643 = scalar_lea.vmem %s4, 128
      %v644 = vld [vmem:[%s643] sm:$0xff]
      %v645 = vld [vmem:[%s643 + $0x8] sm:$0xff]
      %v646 = vld [vmem:[%s643 + $0x10] sm:$0xff]
      %v647 = vld [vmem:[%s643 + $0x18] sm:$0xff]
      %v648 = vld [vmem:[%s643 + $0x20] sm:$0xff]
      %v649 = vld [vmem:[%s643 + $0x28] sm:$0xff]
      %v650 = vld [vmem:[%s643 + $0x30] sm:$0xff]
      %v651 = vld [vmem:[%s643 + $0x38] sm:$0xff]
      %v652 = vld [vmem:[%s643 + $0x40] sm:$0xff]
      %v653 = vld [vmem:[%s643 + $0x48] sm:$0xff]
      %v654 = vld [vmem:[%s643 + $0x50] sm:$0xff]
      %v655 = vld [vmem:[%s643 + $0x58] sm:$0xff]
      %v656 = vld [vmem:[%s643 + $0x60] sm:$0xff]
      %v657 = vld [vmem:[%s643 + $0x68] sm:$0xff]
      %v658 = vld [vmem:[%s643 + $0x70] sm:$0xff]
      %v659 = vld [vmem:[%s643 + $0x78] sm:$0xff]
      %vm662 = vcmask 1045504
      %v663 = vrot.slane %v625, 2
      %v664 = vrot.slane %v626, 2
      %v665 = vsel %vm662, %v663, %v664
      %667 = vmatprep.subr.mxu0 0.0
      %668 = vmatpush1.msra.mxu0 %v644
      %669 = vmatprep.subr.mxu0 0.0
      %670 = vmatpush1.msra.mxu0 %v645
      %671 = vmatprep.subr.mxu0 0.0
      %672 = vmatpush1.msra.mxu0 %v646
      %673 = vmatprep.subr.mxu0 0.0
      %674 = vmatpush1.msra.mxu0 %v647
      %675 = vmatprep.subr.mxu0 0.0
      %676 = vmatpush1.msra.mxu0 %v648
      %677 = vmatprep.subr.mxu0 0.0
      %678 = vmatpush1.msra.mxu0 %v649
      %679 = vmatprep.subr.mxu0 0.0
      %680 = vmatpush1.msra.mxu0 %v650
      %681 = vmatprep.subr.mxu0 0.0
      %682 = vmatpush1.msra.mxu0 %v651
      %683 = vmatprep.subr.mxu0 0.0
      %684 = vmatpush1.msra.mxu0 %v652
      %685 = vmatprep.subr.mxu0 0.0
      %686 = vmatpush1.msra.mxu0 %v653
      %687 = vmatprep.subr.mxu0 0.0
      %688 = vmatpush1.msra.mxu0 %v654
      %689 = vmatprep.subr.mxu0 0.0
      %690 = vmatpush1.msra.mxu0 %v655
      %691 = vmatprep.subr.mxu0 0.0
      %692 = vmatpush1.msra.mxu0 %v656
      %693 = vmatprep.subr.mxu0 0.0
      %694 = vmatpush1.msra.mxu0 %v657
      %695 = vmatprep.subr.mxu0 0.0
      %696 = vmatpush1.msra.mxu0 %v658
      %697 = vmatprep.subr.mxu0 0.0
      %698 = vmatpush1.msra.mxu0 %v659
      %699 = vmatprep.subr.mxu0 0.0
      %700 = vmatpush1.msra.mxu0 0.0
      %701 = vmatprep.subr.mxu0 0.0
      %702 = vmatpush1.msra.mxu0 0.0
      %703 = vmatprep.subr.mxu0 0.0
      %704 = vmatpush1.msra.mxu0 0.0
      %705 = vmatprep.subr.mxu0 0.0
      %706 = vmatpush1.msra.mxu0 0.0
      %707 = vmatprep.subr.mxu0 0.0
      %708 = vmatpush1.msra.mxu0 0.0
      %709 = vmatprep.subr.mxu0 0.0
      %710 = vmatpush1.msra.mxu0 0.0
      %711 = vmatprep.subr.mxu0 0.0
      %712 = vmatpush1.msra.mxu0 0.0
      %713 = vmatprep.subr.mxu0 0.0
      %714 = vmatpush1.msra.mxu0 0.0
      %715 = vmatprep.subr.mxu0 0.0
      %716 = vmatpush1.msra.mxu0 0.0
      %717 = vmatprep.subr.mxu0 0.0
      %718 = vmatpush1.msra.mxu0 0.0
      %719 = vmatprep.subr.mxu0 0.0
      %720 = vmatpush1.msra.mxu0 0.0
      %721 = vmatprep.subr.mxu0 0.0
      %722 = vmatpush1.msra.mxu0 0.0
      %723 = vmatprep.subr.mxu0 0.0
      %724 = vmatpush1.msra.mxu0 0.0
      %725 = vmatprep.subr.mxu0 0.0
      %726 = vmatpush1.msra.mxu0 0.0
      %727 = vmatprep.subr.mxu0 0.0
      %728 = vmatpush1.msra.mxu0 0.0
      %729 = vmatprep.subr.mxu0 0.0
      %730 = vmatpush1.msra.mxu0 0.0
      %731 = vmatprep.mubr.f32.mxu0 0.0
      %732 = vmatmul.mubr.f32.gmra.mrb[0].mxu0 %v665
      %v733 = vpop.f32.mrb[0].mxu0
      %v734 = vadd.f32 0.0, %v733
      %v735 = vpop.f32.mrb[0].mxu0
      %736 = vdwg.mxu0
      %737 = vmatprep.subr.mxu0 0.0
      %738 = vmatpush1.msra.mxu0 %v627
      %739 = vmatprep.subr.mxu0 0.0
      %740 = vmatpush1.msra.mxu0 %v628
      %741 = vmatprep.subr.mxu0 0.0
      %742 = vmatpush1.msra.mxu0 %v629
      %743 = vmatprep.subr.mxu0 0.0
      %744 = vmatpush1.msra.mxu0 %v630
      %745 = vmatprep.subr.mxu0 0.0
      %746 = vmatpush1.msra.mxu0 %v631
      %747 = vmatprep.subr.mxu0 0.0
      %748 = vmatpush1.msra.mxu0 %v632
      %749 = vmatprep.subr.mxu0 0.0
      %750 = vmatpush1.msra.mxu0 %v633
      %751 = vmatprep.subr.mxu0 0.0
      %752 = vmatpush1.msra.mxu0 %v634
      %753 = vmatprep.subr.mxu0 0.0
      %754 = vmatpush1.msra.mxu0 %v635
      %755 = vmatprep.subr.mxu0 0.0
      %756 = vmatpush1.msra.mxu0 %v636
      %757 = vmatprep.subr.mxu0 0.0
      %758 = vmatpush1.msra.mxu0 %v637
      %759 = vmatprep.subr.mxu0 0.0
      %760 = vmatpush1.msra.mxu0 %v638
      %761 = vmatprep.subr.mxu0 0.0
      %762 = vmatpush1.msra.mxu0 %v639
      %763 = vmatprep.subr.mxu0 0.0
      %764 = vmatpush1.msra.mxu0 %v640
      %765 = vmatprep.subr.mxu0 0.0
      %766 = vmatpush1.msra.mxu0 %v641
      %767 = vmatprep.subr.mxu0 0.0
      %768 = vmatpush1.msra.mxu0 %v642
      %769 = vmatprep.subr.mxu0 0.0
      %770 = vmatpush1.msra.mxu0 0.0
      %771 = vmatprep.subr.mxu0 0.0
      %772 = vmatpush1.msra.mxu0 0.0
      %773 = vmatprep.subr.mxu0 0.0
      %774 = vmatpush1.msra.mxu0 0.0
      %775 = vmatprep.subr.mxu0 0.0
      %776 = vmatpush1.msra.mxu0 0.0
      %777 = vmatprep.subr.mxu0 0.0
      %778 = vmatpush1.msra.mxu0 0.0
      %779 = vmatprep.subr.mxu0 0.0
      %780 = vmatpush1.msra.mxu0 0.0
      %781 = vmatprep.subr.mxu0 0.0
      %782 = vmatpush1.msra.mxu0 0.0
      %783 = vmatprep.subr.mxu0 0.0
      %784 = vmatpush1.msra.mxu0 0.0
      %785 = vmatprep.subr.mxu0 0.0
      %786 = vmatpush1.msra.mxu0 0.0
      %787 = vmatprep.subr.mxu0 0.0
      %788 = vmatpush1.msra.mxu0 0.0
      %789 = vmatprep.subr.mxu0 0.0
      %790 = vmatpush1.msra.mxu0 0.0
      %791 = vmatprep.subr.mxu0 0.0
      %792 = vmatpush1.msra.mxu0 0.0
      %793 = vmatprep.subr.mxu0 0.0
      %794 = vmatpush1.msra.mxu0 0.0
      %795 = vmatprep.subr.mxu0 0.0
      %796 = vmatpush1.msra.mxu0 0.0
      %797 = vmatprep.subr.mxu0 0.0
      %798 = vmatpush1.msra.mxu0 0.0
      %799 = vmatprep.subr.mxu0 0.0
      %800 = vmatpush1.msra.mxu0 0.0
      %801 = vmatprep.mubr.f32.mxu0 0.0
      %802 = vmatmul.mubr.f32.gmra.mrb[0].mxu0 %v625
      %v803 = vpop.f32.mrb[0].mxu0
      %v804 = vadd.f32 %v734, %v803
      %v805 = vpop.f32.mrb[0].mxu0
      %806 = vdwg.mxu0
      %v807 = vld [vmem:[%s5] sm:$0x1]
      %v809 = vlaneseq
      %v810 = vshrl.u32 %v809, 7
      %v811 = vsub.s32 0, %v810
      %v812 = vrot.slane %v807, %v811
      %v814 = vadd.f32 %v804, %v812
      %v815 = vmax.f32 %v814, 0.0
      %v816 = vld [vmem:[%s6] sm:$0xff]
      %v817 = vld [vmem:[%s6 + $0x8] sm:$0xff]
      %v818 = vld [vmem:[%s6 + $0x10] sm:$0xff]
      %v819 = vld [vmem:[%s6 + $0x18] sm:$0xff]
      %v820 = vld [vmem:[%s6 + $0x20] sm:$0xff]
      %v821 = vld [vmem:[%s6 + $0x28] sm:$0xff]
      %v822 = vld [vmem:[%s6 + $0x30] sm:$0xff]
      %v823 = vld [vmem:[%s6 + $0x38] sm:$0xff]
      %v824 = vld [vmem:[%s6 + $0x40] sm:$0xff]
      %v825 = vld [vmem:[%s6 + $0x48] sm:$0xff]
      %v826 = vld [vmem:[%s6 + $0x50] sm:$0xff]
      %v827 = vld [vmem:[%s6 + $0x58] sm:$0xff]
      %v828 = vld [vmem:[%s6 + $0x60] sm:$0xff]
      %v829 = vld [vmem:[%s6 + $0x68] sm:$0xff]
      %v830 = vld [vmem:[%s6 + $0x70] sm:$0xff]
      %v831 = vld [vmem:[%s6 + $0x78] sm:$0xff]
      %v832 = vld [vmem:[%s7] sm:$0x1]
      %v834 = vlaneseq
      %v835 = vshrl.u32 %v834, 7
      %v836 = vsub.s32 0, %v835
      %v837 = vrot.slane %v832, %v836
      %839 = vmatprep.subr.mxu0 0.0
      %840 = vmatpush1.msra.mxu0 %v816
      %841 = vmatprep.subr.mxu0 0.0
      %842 = vmatpush1.msra.mxu0 %v817
      %843 = vmatprep.subr.mxu0 0.0
      %844 = vmatpush1.msra.mxu0 %v818
      %845 = vmatprep.subr.mxu0 0.0
      %846 = vmatpush1.msra.mxu0 %v819
      %847 = vmatprep.subr.mxu0 0.0
      %848 = vmatpush1.msra.mxu0 %v820
      %849 = vmatprep.subr.mxu0 0.0
      %850 = vmatpush1.msra.mxu0 %v821
      %851 = vmatprep.subr.mxu0 0.0
      %852 = vmatpush1.msra.mxu0 %v822
      %853 = vmatprep.subr.mxu0 0.0
      %854 = vmatpush1.msra.mxu0 %v823
      %855 = vmatprep.subr.mxu0 0.0
      %856 = vmatpush1.msra.mxu0 %v824
      %857 = vmatprep.subr.mxu0 0.0
      %858 = vmatpush1.msra.mxu0 %v825
      %859 = vmatprep.subr.mxu0 0.0
      %860 = vmatpush1.msra.mxu0 %v826
      %861 = vmatprep.subr.mxu0 0.0
      %862 = vmatpush1.msra.mxu0 %v827
      %863 = vmatprep.subr.mxu0 0.0
      %864 = vmatpush1.msra.mxu0 %v828
      %865 = vmatprep.subr.mxu0 0.0
      %866 = vmatpush1.msra.mxu0 %v829
      %867 = vmatprep.subr.mxu0 0.0
      %868 = vmatpush1.msra.mxu0 %v830
      %869 = vmatprep.subr.mxu0 0.0
      %870 = vmatpush1.msra.mxu0 %v831
      %871 = vmatprep.subr.mxu0 0.0
      %872 = vmatpush1.msra.mxu0 0.0
      %873 = vmatprep.subr.mxu0 0.0
      %874 = vmatpush1.msra.mxu0 0.0
      %875 = vmatprep.subr.mxu0 0.0
      %876 = vmatpush1.msra.mxu0 0.0
      %877 = vmatprep.subr.mxu0 0.0
      %878 = vmatpush1.msra.mxu0 0.0
      %879 = vmatprep.subr.mxu0 0.0
      %880 = vmatpush1.msra.mxu0 0.0
      %881 = vmatprep.subr.mxu0 0.0
      %882 = vmatpush1.msra.mxu0 0.0
      %883 = vmatprep.subr.mxu0 0.0
      %884 = vmatpush1.msra.mxu0 0.0
      %885 = vmatprep.subr.mxu0 0.0
      %886 = vmatpush1.msra.mxu0 0.0
      %887 = vmatprep.subr.mxu0 0.0
      %888 = vmatpush1.msra.mxu0 0.0
      %889 = vmatprep.subr.mxu0 0.0
      %890 = vmatpush1.msra.mxu0 0.0
      %891 = vmatprep.subr.mxu0 0.0
      %892 = vmatpush1.msra.mxu0 0.0
      %893 = vmatprep.subr.mxu0 0.0
      %894 = vmatpush1.msra.mxu0 0.0
      %895 = vmatprep.subr.mxu0 0.0
      %896 = vmatpush1.msra.mxu0 0.0
      %897 = vmatprep.subr.mxu0 0.0
      %898 = vmatpush1.msra.mxu0 0.0
      %899 = vmatprep.subr.mxu0 0.0
      %900 = vmatpush1.msra.mxu0 0.0
      %901 = vmatprep.subr.mxu0 0.0
      %902 = vmatpush1.msra.mxu0 0.0
      %903 = vmatprep.mubr.f32.mxu0 0.0
      %904 = vmatmul.mubr.f32.gmra.mrb[0].mxu0 %v391
      %v905 = vpop.f32.mrb[0].mxu0
      %v906 = vadd.f32 %v837, %v905
      %v907 = vpop.f32.mrb[0].mxu0
      %908 = vdwg.mxu0
      %v909 = vadd.f32 %v815, %v906
      %v910 = vmax.f32 %v909, 0.0
      %911 = vst [vmem:[%s388] sm:$0xff] %v910
      %p912 = scmp.lt.s32.totalorder %s23, 1
      %s913 = scalar_select %p912, %s23, 1
      %p914 = scmp.lt.s32.totalorder %s24, 1
      %s915 = scalar_select %p914, %s24, 1
      %s916 = smul.addr %s913, 2
      %s917 = sadd.s32 %s915, %s916
      %s918 = smul.addr %s917, 8
      %s919 = scalar_lea.vmem %s8, %s918
      // Predicated region
      $region53: #{tcn_forward.5} parent=51 // pred_check
        %p920 = pneg %p239
      $region54: #{tcn_forward.5} parent=51 // pred_check_branch
        %922 = sbr.rel (%p920) target = $region56
      $region55: #{tcn_forward.5} parent=51 // pred_region
        _
      $region56: #{tcn_forward.5} parent=51 // pred_fallthru
        _
    $region52: #{tcn_forward.5} parent=5 // pred_fallthru
      _
    %p923 = scmp.le.s32.totalorder 2, %s14
    // Predicated region
    $region57: #{tcn_forward.5} parent=5 // pred_check
      %p924 = pneg %p923
    $region58: #{tcn_forward.5} parent=5 // pred_check_branch
      %926 = sbr.rel (%p924) target = $region60
    $region59: #{tcn_forward.5} parent=5 // pred_region
      %s927 = ssub.s32 %s14, 2
      // Predicated region
      $region61: #{tcn_forward.5} parent=59 // pred_check
        %p928 = pneg %p245
      $region62: #{tcn_forward.5} parent=59 // pred_check_branch
        %930 = sbr.rel (%p928) target = $region64
      $region63: #{tcn_forward.5} parent=59 // pred_region
        %p931 = scmp.lt.s32.totalorder %s25, 1
        %s932 = scalar_select %p931, %s25, 1
        %p933 = scmp.lt.s32.totalorder %s26, 1
        %s934 = scalar_select %p933, %s26, 1
        %s935 = smul.addr %s932, 2
        %s936 = sadd.s32 %s934, %s935
        %s937 = smul.addr %s936, 8
        %s938 = scalar_lea.vmem %s8, %s937
      $region64: #{tcn_forward.5} parent=59 // pred_fallthru
        _
    $region60: #{tcn_forward.5} parent=5 // pred_fallthru
      _
  $region6: #{tcn_forward.5} parent=0 // loop_footer
    %s18 = sadd.s32 1, %s14
  $region7: #{tcn_forward.5} parent=0 // loop_footer_branch
    %13 = sbr.rel target = $region3
  $region8: #{tcn_forward.5} parent=0 // loop_exit
    _

// kernel: tcn_forward.6
$region0: #{tcn_forward.6}
  #allocation0 [shape = 'u32[]', space=smem, size = 0x4, offset = 0x4, fixed_abs, tag = 'smem constant byte address 0x4 - core index']
  #allocation1 [shape = 'u32[144,128]{1,0:T(1,128)}', space=vmem, size = 0x12000, scoped, tag = 'internal scratch']
  %s0 = inlined_call_operand.vmem [shape: f32[2,16,128], index: 0, kind: input, shape index: {}, may-alias: {0,1}]
  %s1 = inlined_call_operand.vmem [shape: f32[2,16,128], index: 1, kind: input, shape index: {}, may-alias: {0,1}]
  %s2 = inlined_call_operand.vmem [shape: f32[2,128,128], index: 2, kind: input, shape index: {}]
  %s3 = inlined_call_operand.vmem [shape: f32[1,128], index: 3, kind: input, shape index: {}]
  %s4 = inlined_call_operand.vmem [shape: f32[2,128,128], index: 4, kind: input, shape index: {}]
  %s5 = inlined_call_operand.vmem [shape: f32[1,128], index: 5, kind: input, shape index: {}]
  %s6 = inlined_call_operand.vmem [shape: f32[2,8,128], index: 6, kind: output, shape index: {}]
  %s7 = sld [smem:[#allocation0]]
  $region57: #{tcn_forward.6} parent=0
    _
  %s9 = ssub.s32 1, %s7
  %s10 = scalar_select 0, %s9, %s7
  loop: start=0, step=1, limit=4
  $region2: #{tcn_forward.6} parent=0 // loop_pre_header
    _
  $region3: #{tcn_forward.6} parent=0 // loop_header
    %s12 = sphi 0, %s16
    %p13 = scmp.ge.s32.totalorder %s12, 4
    %s19 = sphi 0, %s31
    %s20 = sphi 0, %s27
    %s21 = sphi 0, %s19
    %s22 = sphi 0, %s20
    %s23 = sphi 0, %s21
    %s24 = sphi 0, %s22
    %s40 = sphi 0, %s42
    %s43 = sphi 0, %s40
    %s44 = sphi 0, %s43
    %s60 = sphi 0, %s44
    %s70 = sphi 0, %s72
    %s73 = sphi 0, %s70
    %s74 = sphi 0, %s73
    %s90 = sphi 0, %s74
    %s94 = sphi 0, %s94
    %s96 = sphi 0, %s94
    %s97 = sphi 0, %s96
    %s111 = sphi 0, %s97
    %s115 = sphi 0, %s115
    %s117 = sphi 0, %s115
    %s118 = sphi 0, %s117
    %s132 = sphi 0, %s118
    %s136 = sphi 0, %s136
    %s138 = sphi 0, %s136
    %s139 = sphi 0, %s138
    %s153 = sphi 0, %s139
    %s157 = sphi 0, %s157
    %s159 = sphi 0, %s157
    %s160 = sphi 0, %s159
    %s174 = sphi 0, %s160
    %s182 = sphi 0, %s184
    %s185 = sphi 0, %s182
    %s186 = sphi 0, %s185
    %s202 = sphi 0, %s186
  $region4: #{tcn_forward.6} parent=0 // loop_header_branch
    %15 = sbr.rel (%p13) target = $region8
  $region5: #{tcn_forward.6} parent=0 // loop_body
    %s17 = ssub.s32 %s12, 1
    %s18 = ssub.s32 %s12, 2
    %s25 = sadd.s32 1, %s20
    %p26 = scmp.ge.s32.totalorder %s25, 1
    %s27 = scalar_select %p26, 0, %s25
    %s28 = sadd.s32 1, %s19
    %s29 = scalar_select %p26, %s28, %s19
    %p30 = scmp.ge.s32.totalorder %s29, 2
    %s31 = scalar_select %p30, 0, %s29
    %p32 = scmp.gt.s32.totalorder %s20, 0
    %s33 = scalar_select %p32, %s20, 0
    %p34 = scmp.gt.s32.totalorder %s27, 0
    %s35 = scalar_select %p34, %s27, 0
    %s36 = ssub.s32 %s19, %s31
    %s37 = ssub.s32 %s33, %s35
    %s38 = sor.u32 %s36, %s37
    %p39 = scmp.eq.s32.totalorder %s38, 0
    %s41 = sadd.s32 %s40, 1
    %s42 = scalar_select %p39, %s40, %s41
    %p45 = pneg %p39
    %p46 = scmp.eq.s32.totalorder %s12, 1
    %p47 = por %p45, %p46
    %p48 = scmp.ne.s32.totalorder %s40, %s43
    %p49 = scmp.eq.s32.totalorder %s12, 0
    %p50 = por %p48, %p49
    %p51 = scmp.ne.s32.totalorder %s40, %s43
    %p52 = scmp.eq.s32.totalorder %s17, 1
    %p53 = por %p51, %p52
    %p54 = scmp.ne.s32.totalorder %s43, %s44
    %p55 = scmp.eq.s32.totalorder %s17, 0
    %p56 = por %p54, %p55
    %p57 = scmp.ne.s32.totalorder %s43, %s44
    %p58 = scmp.eq.s32.totalorder %s18, 1
    %p59 = por %p57, %p58
    %p61 = scmp.ne.s32.totalorder %s44, %s60
    %p62 = scmp.eq.s32.totalorder %s18, 0
    %p63 = por %p61, %p62
    %s64 = sadd.s32 %s20, 1
    %s65 = sadd.s32 %s27, 1
    %s66 = ssub.s32 %s19, %s31
    %s67 = ssub.s32 %s64, %s65
    %s68 = sor.u32 %s66, %s67
    %p69 = scmp.eq.s32.totalorder %s68, 0
    %s71 = sadd.s32 %s70, 1
    %s72 = scalar_select %p69, %s70, %s71
    %p75 = pneg %p69
    %p76 = scmp.eq.s32.totalorder %s12, 1
    %p77 = por %p75, %p76
    %p78 = scmp.ne.s32.totalorder %s70, %s73
    %p79 = scmp.eq.s32.totalorder %s12, 0
    %p80 = por %p78, %p79
    %p81 = scmp.ne.s32.totalorder %s70, %s73
    %p82 = scmp.eq.s32.totalorder %s17, 1
    %p83 = por %p81, %p82
    %p84 = scmp.ne.s32.totalorder %s73, %s74
    %p85 = scmp.eq.s32.totalorder %s17, 0
    %p86 = por %p84, %p85
    %p87 = scmp.ne.s32.totalorder %s73, %s74
    %p88 = scmp.eq.s32.totalorder %s18, 1
    %p89 = por %p87, %p88
    %p91 = scmp.ne.s32.totalorder %s74, %s90
    %p92 = scmp.eq.s32.totalorder %s18, 0
    %p93 = por %p91, %p92
    %s95 = sadd.s32 %s94, 1
    %p98 = scmp.eq.s32.totalorder %s12, 1
    %p99 = scmp.ne.s32.totalorder %s94, %s96
    %p100 = scmp.eq.s32.totalorder %s12, 0
    %p101 = por %p99, %p100
    %p102 = scmp.ne.s32.totalorder %s94, %s96
    %p103 = scmp.eq.s32.totalorder %s17, 1
    %p104 = por %p102, %p103
    %p105 = scmp.ne.s32.totalorder %s96, %s97
    %p106 = scmp.eq.s32.totalorder %s17, 0
    %p107 = por %p105, %p106
    %p108 = scmp.ne.s32.totalorder %s96, %s97
    %p109 = scmp.eq.s32.totalorder %s18, 1
    %p110 = por %p108, %p109
    %p112 = scmp.ne.s32.totalorder %s97, %s111
    %p113 = scmp.eq.s32.totalorder %s18, 0
    %p114 = por %p112, %p113
    %s116 = sadd.s32 %s115, 1
    %p119 = scmp.eq.s32.totalorder %s12, 1
    %p120 = scmp.ne.s32.totalorder %s115, %s117
    %p121 = scmp.eq.s32.totalorder %s12, 0
    %p122 = por %p120, %p121
    %p123 = scmp.ne.s32.totalorder %s115, %s117
    %p124 = scmp.eq.s32.totalorder %s17, 1
    %p125 = por %p123, %p124
    %p126 = scmp.ne.s32.totalorder %s117, %s118
    %p127 = scmp.eq.s32.totalorder %s17, 0
    %p128 = por %p126, %p127
    %p129 = scmp.ne.s32.totalorder %s117, %s118
    %p130 = scmp.eq.s32.totalorder %s18, 1
    %p131 = por %p129, %p130
    %p133 = scmp.ne.s32.totalorder %s118, %s132
    %p134 = scmp.eq.s32.totalorder %s18, 0
    %p135 = por %p133, %p134
    %s137 = sadd.s32 %s136, 1
    %p140 = scmp.eq.s32.totalorder %s12, 1
    %p141 = scmp.ne.s32.totalorder %s136, %s138
    %p142 = scmp.eq.s32.totalorder %s12, 0
    %p143 = por %p141, %p142
    %p144 = scmp.ne.s32.totalorder %s136, %s138
    %p145 = scmp.eq.s32.totalorder %s17, 1
    %p146 = por %p144, %p145
    %p147 = scmp.ne.s32.totalorder %s138, %s139
    %p148 = scmp.eq.s32.totalorder %s17, 0
    %p149 = por %p147, %p148
    %p150 = scmp.ne.s32.totalorder %s138, %s139
    %p151 = scmp.eq.s32.totalorder %s18, 1
    %p152 = por %p150, %p151
    %p154 = scmp.ne.s32.totalorder %s139, %s153
    %p155 = scmp.eq.s32.totalorder %s18, 0
    %p156 = por %p154, %p155
    %s158 = sadd.s32 %s157, 1
    %p161 = scmp.eq.s32.totalorder %s12, 1
    %p162 = scmp.ne.s32.totalorder %s157, %s159
    %p163 = scmp.eq.s32.totalorder %s12, 0
    %p164 = por %p162, %p163
    %p165 = scmp.ne.s32.totalorder %s157, %s159
    %p166 = scmp.eq.s32.totalorder %s17, 1
    %p167 = por %p165, %p166
    %p168 = scmp.ne.s32.totalorder %s159, %s160
    %p169 = scmp.eq.s32.totalorder %s17, 0
    %p170 = por %p168, %p169
    %p171 = scmp.ne.s32.totalorder %s159, %s160
    %p172 = scmp.eq.s32.totalorder %s18, 1
    %p173 = por %p171, %p172
    %p175 = scmp.ne.s32.totalorder %s160, %s174
    %p176 = scmp.eq.s32.totalorder %s18, 0
    %p177 = por %p175, %p176
    %s178 = ssub.s32 %s19, %s31
    %s179 = ssub.s32 %s20, %s27
    %s180 = sor.u32 %s178, %s179
    %p181 = scmp.eq.s32.totalorder %s180, 0
    %s183 = sadd.s32 %s182, 1
    %s184 = scalar_select %p181, %s182, %s183
    %p187 = pneg %p181
    %p188 = scmp.eq.s32.totalorder %s12, 1
    %p189 = por %p187, %p188
    %p190 = scmp.ne.s32.totalorder %s182, %s185
    %p191 = scmp.eq.s32.totalorder %s12, 0
    %p192 = por %p190, %p191
    %p193 = scmp.ne.s32.totalorder %s182, %s185
    %p194 = scmp.eq.s32.totalorder %s17, 1
    %p195 = por %p193, %p194
    %p196 = scmp.ne.s32.totalorder %s185, %s186
    %p197 = scmp.eq.s32.totalorder %s17, 0
    %p198 = por %p196, %p197
    %p199 = scmp.ne.s32.totalorder %s185, %s186
    %p200 = scmp.eq.s32.totalorder %s18, 1
    %p201 = por %p199, %p200
    %p203 = scmp.ne.s32.totalorder %s186, %s202
    %p204 = scmp.eq.s32.totalorder %s18, 0
    %p205 = por %p203, %p204
    %p206 = scmp.le.s32.totalorder 1, %s12
    %p207 = scmp.lt.s32.totalorder %s12, 3
    %p208 = pnand %p206, %p207
    %p209 = pneg %p208
    // Predicated region
    $region9: #{tcn_forward.6} parent=5 // pred_check
      _
    $region10: #{tcn_forward.6} parent=5 // pred_check_branch
      %211 = sbr.rel (%p208) target = $region12
    $region11: #{tcn_forward.6} parent=5 // pred_region
      %s212 = ssub.s32 %s12, 1
      // Predicated region
      $region13: #{tcn_forward.6} parent=11 // pred_check
        %p213 = pneg %p107
      $region14: #{tcn_forward.6} parent=11 // pred_check_branch
        %215 = sbr.rel (%p213) target = $region16
      $region15: #{tcn_forward.6} parent=11 // pred_region
        _
      $region16: #{tcn_forward.6} parent=11 // pred_fallthru
        _
      // Predicated region
      $region17: #{tcn_forward.6} parent=11 // pred_check
        %p216 = pneg %p128
      $region18: #{tcn_forward.6} parent=11 // pred_check_branch
        %218 = sbr.rel (%p216) target = $region20
      $region19: #{tcn_forward.6} parent=11 // pred_region
        _
      $region20: #{tcn_forward.6} parent=11 // pred_fallthru
        _
      // Predicated region
      $region21: #{tcn_forward.6} parent=11 // pred_check
        %p219 = pneg %p149
      $region22: #{tcn_forward.6} parent=11 // pred_check_branch
        %221 = sbr.rel (%p219) target = $region24
      $region23: #{tcn_forward.6} parent=11 // pred_region
        _
      $region24: #{tcn_forward.6} parent=11 // pred_fallthru
        _
      // Predicated region
      $region25: #{tcn_forward.6} parent=11 // pred_check
        %p222 = pneg %p170
      $region26: #{tcn_forward.6} parent=11 // pred_check_branch
        %224 = sbr.rel (%p222) target = $region28
      $region27: #{tcn_forward.6} parent=11 // pred_region
        _
      $region28: #{tcn_forward.6} parent=11 // pred_fallthru
        _
    $region12: #{tcn_forward.6} parent=5 // pred_fallthru
      _
    %p225 = scmp.lt.s32.totalorder %s12, 2
    // Predicated region
    $region29: #{tcn_forward.6} parent=5 // pred_check
      %p226 = pneg %p225
    $region30: #{tcn_forward.6} parent=5 // pred_check_branch
      %228 = sbr.rel (%p226) target = $region32
    $region31: #{tcn_forward.6} parent=5 // pred_region
      // Predicated region
      $region33: #{tcn_forward.6} parent=31 // pred_check
        %p229 = pneg %p50
      $region34: #{tcn_forward.6} parent=31 // pred_check_branch
        %231 = sbr.rel (%p229) target = $region36
      $region35: #{tcn_forward.6} parent=31 // pred_region
        %p232 = scmp.gt.s32.totalorder %s20, 0
        %s233 = scalar_select %p232, %s20, 0
        %p234 = scmp.lt.s32.totalorder %s19, 1
        %s235 = scalar_select %p234, %s19, 1
        %p236 = scmp.lt.s32.totalorder %s233, 1
        %s237 = scalar_select %p236, %s233, 1
        %s238 = smul.addr %s235, 2
        %s239 = sadd.s32 %s237, %s238
        %s240 = smul.addr %s239, 8
        %s241 = scalar_lea.vmem %s0, %s240
        %p242 = scmp.gt.s32.totalorder %s20, 0
        %s243 = scalar_select %p242, %s20, 0
      $region36: #{tcn_forward.6} parent=31 // pred_fallthru
        _
      // Predicated region
      $region37: #{tcn_forward.6} parent=31 // pred_check
        %p244 = pneg %p80
      $region38: #{tcn_forward.6} parent=31 // pred_check_branch
        %246 = sbr.rel (%p244) target = $region40
      $region39: #{tcn_forward.6} parent=31 // pred_region
        %s247 = sadd.s32 %s20, 1
        %p248 = scmp.lt.s32.totalorder %s19, 1
        %s249 = scalar_select %p248, %s19, 1
        %p250 = scmp.lt.s32.totalorder %s247, 1
        %s251 = scalar_select %p250, %s247, 1
        %s252 = smul.addr %s249, 2
        %s253 = sadd.s32 %s251, %s252
        %s254 = smul.addr %s253, 8
        %s255 = scalar_lea.vmem %s1, %s254
        %s256 = sadd.s32 %s20, 1
      $region40: #{tcn_forward.6} parent=31 // pred_fallthru
        _
    $region32: #{tcn_forward.6} parent=5 // pred_fallthru
      _
    %p257 = scmp.le.s32.totalorder 1, %s12
    %p258 = scmp.lt.s32.totalorder %s12, 3
    %p259 = pnand %p257, %p258
    %p260 = pneg %p259
    // Predicated region
    $region41: #{tcn_forward.6} parent=5 // pred_check
      _
    $region42: #{tcn_forward.6} parent=5 // pred_check_branch
      %262 = sbr.rel (%p259) target = $region44
    $region43: #{tcn_forward.6} parent=5 // pred_region
      %s263 = ssub.s32 %s12, 1
      %p264 = scmp.gt.s32.totalorder %s22, 0
      %s265 = scalar_select %p264, %s22, 0
      %p266 = scmp.lt.s32.totalorder %s21, 1
      %s267 = scalar_select %p266, %s21, 1
      %p268 = scmp.lt.s32.totalorder %s265, 1
      %s269 = scalar_select %p268, %s265, 1
      %s270 = smul.addr %s267, 2
      %s271 = sadd.s32 %s269, %s270
      %s272 = smul.addr %s271, 8
      %s273 = scalar_lea.vmem %s0, %s272
      %p274 = pneg %p56
      %p275 = pneg %p53
      %s276 = sadd.s32 %s22, 1
      %p277 = scmp.lt.s32.totalorder %s21, 1
      %s278 = scalar_select %p277, %s21, 1
      %p279 = scmp.lt.s32.totalorder %s276, 1
      %s280 = scalar_select %p279, %s276, 1
      %s281 = smul.addr %s278, 2
      %s282 = sadd.s32 %s280, %s281
      %s283 = smul.addr %s282, 8
      %s284 = scalar_lea.vmem %s1, %s283
      %p285 = pneg %p86
      %p286 = pneg %p83
      %p287 = pneg %p107
      %p288 = pneg %p104
      %p289 = pneg %p128
      %p290 = pneg %p125
      %p291 = pneg %p149
      %p292 = pneg %p146
      %p293 = pneg %p170
      %p294 = pneg %p167
      %p295 = pneg %p198
      %p296 = pneg %p195
      %p297 = scmp.lt.s32.totalorder %s21, 1
      %s298 = scalar_select %p297, %s21, 1
      %p299 = scmp.lt.s32.totalorder %s22, 0
      %s300 = scalar_select %p299, %s22, 0
      %s301 = sadd.s32 %s300, %s298
      %s302 = smul.addr %s301, 8
      %s303 = scalar_lea.vmem %s6, %s302
      %p304 = scmp.gt.s32.totalorder %s22, 0
      %s305 = scalar_select %p304, %s22, 0
      %p306 = scmp.lt.s32.totalorder %s21, 1
      %s307 = scalar_select %p306, %s21, 1
      %p308 = scmp.lt.s32.totalorder %s305, 1
      %s309 = scalar_select %p308, %s305, 1
      %s310 = smul.addr %s307, 2
      %s311 = sadd.s32 %s309, %s310
      %s312 = smul.addr %s311, 8
      %s313 = scalar_lea.vmem %s0, %s312
      %p314 = scmp.gt.s32.totalorder %s22, 0
      %s315 = scalar_select %p314, %s22, 0
      %s316 = sadd.s32 %s22, 1
      %p317 = scmp.lt.s32.totalorder %s21, 1
      %s318 = scalar_select %p317, %s21, 1
      %p319 = scmp.lt.s32.totalorder %s316, 1
      %s320 = scalar_select %p319, %s316, 1
      %s321 = smul.addr %s318, 2
      %s322 = sadd.s32 %s320, %s321
      %s323 = smul.addr %s322, 8
      %s324 = scalar_lea.vmem %s1, %s323
      %s325 = sadd.s32 %s22, 1
      %p326 = scmp.lt.s32.totalorder %s21, 1
      %s327 = scalar_select %p326, %s21, 1
      %p328 = scmp.lt.s32.totalorder %s22, 0
      %s329 = scalar_select %p328, %s22, 0
      %s330 = sadd.s32 %s329, %s327
      %s331 = smul.addr %s330, 8
      %s332 = scalar_lea.vmem %s6, %s331
      %s333 = sadd.s32 %s22, 1
      %s334 = smul.u32 %s333, 8
      %v335 = vld [vmem:[%s313] sm:$0xff]
      %v336 = vld [vmem:[%s324] sm:$0xff]
      %v337 = vlaneseq
      %v338 = vshrl.u32 %v337, 7
      %v339 = vadd.s32 %v338, 8
      %s340 = ssub.s32 %s334, 8
      %v341 = vstv %s340
      %v342 = vadd.s32 %v338, %v341
      %v343 = vadd.s32 %v339, %v341
      %vm344 = vcmp.ge.s32.totalorder %v342, 0
      %vm345 = vcmp.ge.s32.totalorder %v343, 0
      %v346 = vsel %vm344, 1, 0
      %v347 = vsel %vm345, 1, 0
      %vm348 = vcmp.eq.s32.totalorder %v346, 1
      %vm349 = vcmp.eq.s32.totalorder %v347, 1
      %v350 = vsel %vm348, %v335, 0.0
      %v351 = vsel %vm349, %v336, 0.0
      %v352 = vld [vmem:[%s2] sm:$0xff]
      %v353 = vld [vmem:[%s2 + $0x8] sm:$0xff]
      %v354 = vld [vmem:[%s2 + $0x10] sm:$0xff]
      %v355 = vld [vmem:[%s2 + $0x18] sm:$0xff]
      %v356 = vld [vmem:[%s2 + $0x20] sm:$0xff]
      %v357 = vld [vmem:[%s2 + $0x28] sm:$0xff]
      %v358 = vld [vmem:[%s2 + $0x30] sm:$0xff]
      %v359 = vld [vmem:[%s2 + $0x38] sm:$0xff]
      %v360 = vld [vmem:[%s2 + $0x40] sm:$0xff]
      %v361 = vld [vmem:[%s2 + $0x48] sm:$0xff]
      %v362 = vld [vmem:[%s2 + $0x50] sm:$0xff]
      %v363 = vld [vmem:[%s2 + $0x58] sm:$0xff]
      %v364 = vld [vmem:[%s2 + $0x60] sm:$0xff]
      %v365 = vld [vmem:[%s2 + $0x68] sm:$0xff]
      %v366 = vld [vmem:[%s2 + $0x70] sm:$0xff]
      %v367 = vld [vmem:[%s2 + $0x78] sm:$0xff]
      %s368 = scalar_lea.vmem %s2, 128
      %v369 = vld [vmem:[%s368] sm:$0xff]
      %v370 = vld [vmem:[%s368 + $0x8] sm:$0xff]
      %v371 = vld [vmem:[%s368 + $0x10] sm:$0xff]
      %v372 = vld [vmem:[%s368 + $0x18] sm:$0xff]
      %v373 = vld [vmem:[%s368 + $0x20] sm:$0xff]
      %v374 = vld [vmem:[%s368 + $0x28] sm:$0xff]
      %v375 = vld [vmem:[%s368 + $0x30] sm:$0xff]
      %v376 = vld [vmem:[%s368 + $0x38] sm:$0xff]
      %v377 = vld [vmem:[%s368 + $0x40] sm:$0xff]
      %v378 = vld [vmem:[%s368 + $0x48] sm:$0xff]
      %v379 = vld [vmem:[%s368 + $0x50] sm:$0xff]
      %v380 = vld [vmem:[%s368 + $0x58] sm:$0xff]
      %v381 = vld [vmem:[%s368 + $0x60] sm:$0xff]
      %v382 = vld [vmem:[%s368 + $0x68] sm:$0xff]
      %v383 = vld [vmem:[%s368 + $0x70] sm:$0xff]
      %v384 = vld [vmem:[%s368 + $0x78] sm:$0xff]
      %vm387 = vcmask 1043456
      %v388 = vrot.slane %v350, 4
      %v389 = vrot.slane %v351, 4
      %v390 = vsel %vm387, %v388, %v389
      %393 = vmatprep.subr.mxu0 0.0
      %394 = vmatpush1.msra.mxu0 %v369
      %395 = vmatprep.subr.mxu0 0.0
      %396 = vmatpush1.msra.mxu0 %v370
      %397 = vmatprep.subr.mxu0 0.0
      %398 = vmatpush1.msra.mxu0 %v371
      %399 = vmatprep.subr.mxu0 0.0
      %400 = vmatpush1.msra.mxu0 %v372
      %401 = vmatprep.subr.mxu0 0.0
      %402 = vmatpush1.msra.mxu0 %v373
      %403 = vmatprep.subr.mxu0 0.0
      %404 = vmatpush1.msra.mxu0 %v374
      %405 = vmatprep.subr.mxu0 0.0
      %406 = vmatpush1.msra.mxu0 %v375
      %407 = vmatprep.subr.mxu0 0.0
      %408 = vmatpush1.msra.mxu0 %v376
      %409 = vmatprep.subr.mxu0 0.0
      %410 = vmatpush1.msra.mxu0 %v377
      %411 = vmatprep.subr.mxu0 0.0
      %412 = vmatpush1.msra.mxu0 %v378
      %413 = vmatprep.subr.mxu0 0.0
      %414 = vmatpush1.msra.mxu0 %v379
      %415 = vmatprep.subr.mxu0 0.0
      %416 = vmatpush1.msra.mxu0 %v380
      %417 = vmatprep.subr.mxu0 0.0
      %418 = vmatpush1.msra.mxu0 %v381
      %419 = vmatprep.subr.mxu0 0.0
      %420 = vmatpush1.msra.mxu0 %v382
      %421 = vmatprep.subr.mxu0 0.0
      %422 = vmatpush1.msra.mxu0 %v383
      %423 = vmatprep.subr.mxu0 0.0
      %424 = vmatpush1.msra.mxu0 %v384
      %425 = vmatprep.subr.mxu0 0.0
      %426 = vmatpush1.msra.mxu0 0.0
      %427 = vmatprep.subr.mxu0 0.0
      %428 = vmatpush1.msra.mxu0 0.0
      %429 = vmatprep.subr.mxu0 0.0
      %430 = vmatpush1.msra.mxu0 0.0
      %431 = vmatprep.subr.mxu0 0.0
      %432 = vmatpush1.msra.mxu0 0.0
      %433 = vmatprep.subr.mxu0 0.0
      %434 = vmatpush1.msra.mxu0 0.0
      %435 = vmatprep.subr.mxu0 0.0
      %436 = vmatpush1.msra.mxu0 0.0
      %437 = vmatprep.subr.mxu0 0.0
      %438 = vmatpush1.msra.mxu0 0.0
      %439 = vmatprep.subr.mxu0 0.0
      %440 = vmatpush1.msra.mxu0 0.0
      %441 = vmatprep.subr.mxu0 0.0
      %442 = vmatpush1.msra.mxu0 0.0
      %443 = vmatprep.subr.mxu0 0.0
      %444 = vmatpush1.msra.mxu0 0.0
      %445 = vmatprep.subr.mxu0 0.0
      %446 = vmatpush1.msra.mxu0 0.0
      %447 = vmatprep.subr.mxu0 0.0
      %448 = vmatpush1.msra.mxu0 0.0
      %449 = vmatprep.subr.mxu0 0.0
      %450 = vmatpush1.msra.mxu0 0.0
      %451 = vmatprep.subr.mxu0 0.0
      %452 = vmatpush1.msra.mxu0 0.0
      %453 = vmatprep.subr.mxu0 0.0
      %454 = vmatpush1.msra.mxu0 0.0
      %455 = vmatprep.subr.mxu0 0.0
      %456 = vmatpush1.msra.mxu0 0.0
      %457 = vmatprep.mubr.f32.mxu0 0.0
      %458 = vmatmul.mubr.f32.gmra.mrb[0].mxu0 %v390
      %v459 = vpop.f32.mrb[0].mxu0
      %v460 = vadd.f32 0.0, %v459
      %v461 = vpop.f32.mrb[0].mxu0
      %462 = vmatprep.mubr.f32.mxu0 0.0
      %463 = vmatmul.mubr.f32.gmra.mrb[0].mxu0 %v389
      %v464 = vpop.f32.mrb[0].mxu0
      %v465 = vadd.f32 0.0, %v464
      %v466 = vpop.f32.mrb[0].mxu0
      %467 = vdwg.mxu0
      %468 = vmatprep.subr.mxu0 0.0
      %469 = vmatpush1.msra.mxu0 %v352
      %470 = vmatprep.subr.mxu0 0.0
      %471 = vmatpush1.msra.mxu0 %v353
      %472 = vmatprep.subr.mxu0 0.0
      %473 = vmatpush1.msra.mxu0 %v354
      %474 = vmatprep.subr.mxu0 0.0
      %475 = vmatpush1.msra.mxu0 %v355
      %476 = vmatprep.subr.mxu0 0.0
      %477 = vmatpush1.msra.mxu0 %v356
      %478 = vmatprep.subr.mxu0 0.0
      %479 = vmatpush1.msra.mxu0 %v357
      %480 = vmatprep.subr.mxu0 0.0
      %481 = vmatpush1.msra.mxu0 %v358
      %482 = vmatprep.subr.mxu0 0.0
      %483 = vmatpush1.msra.mxu0 %v359
      %484 = vmatprep.subr.mxu0 0.0
      %485 = vmatpush1.msra.mxu0 %v360
      %486 = vmatprep.subr.mxu0 0.0
      %487 = vmatpush1.msra.mxu0 %v361
      %488 = vmatprep.subr.mxu0 0.0
      %489 = vmatpush1.msra.mxu0 %v362
      %490 = vmatprep.subr.mxu0 0.0
      %491 = vmatpush1.msra.mxu0 %v363
      %492 = vmatprep.subr.mxu0 0.0
      %493 = vmatpush1.msra.mxu0 %v364
      %494 = vmatprep.subr.mxu0 0.0
      %495 = vmatpush1.msra.mxu0 %v365
      %496 = vmatprep.subr.mxu0 0.0
      %497 = vmatpush1.msra.mxu0 %v366
      %498 = vmatprep.subr.mxu0 0.0
      %499 = vmatpush1.msra.mxu0 %v367
      %500 = vmatprep.subr.mxu0 0.0
      %501 = vmatpush1.msra.mxu0 0.0
      %502 = vmatprep.subr.mxu0 0.0
      %503 = vmatpush1.msra.mxu0 0.0
      %504 = vmatprep.subr.mxu0 0.0
      %505 = vmatpush1.msra.mxu0 0.0
      %506 = vmatprep.subr.mxu0 0.0
      %507 = vmatpush1.msra.mxu0 0.0
      %508 = vmatprep.subr.mxu0 0.0
      %509 = vmatpush1.msra.mxu0 0.0
      %510 = vmatprep.subr.mxu0 0.0
      %511 = vmatpush1.msra.mxu0 0.0
      %512 = vmatprep.subr.mxu0 0.0
      %513 = vmatpush1.msra.mxu0 0.0
      %514 = vmatprep.subr.mxu0 0.0
      %515 = vmatpush1.msra.mxu0 0.0
      %516 = vmatprep.subr.mxu0 0.0
      %517 = vmatpush1.msra.mxu0 0.0
      %518 = vmatprep.subr.mxu0 0.0
      %519 = vmatpush1.msra.mxu0 0.0
      %520 = vmatprep.subr.mxu0 0.0
      %521 = vmatpush1.msra.mxu0 0.0
      %522 = vmatprep.subr.mxu0 0.0
      %523 = vmatpush1.msra.mxu0 0.0
      %524 = vmatprep.subr.mxu0 0.0
      %525 = vmatpush1.msra.mxu0 0.0
      %526 = vmatprep.subr.mxu0 0.0
      %527 = vmatpush1.msra.mxu0 0.0
      %528 = vmatprep.subr.mxu0 0.0
      %529 = vmatpush1.msra.mxu0 0.0
      %530 = vmatprep.subr.mxu0 0.0
      %531 = vmatpush1.msra.mxu0 0.0
      %532 = vmatprep.mubr.f32.mxu0 0.0
      %533 = vmatmul.mubr.f32.gmra.mrb[0].mxu0 %v350
      %v534 = vpop.f32.mrb[0].mxu0
      %v535 = vadd.f32 %v460, %v534
      %v536 = vpop.f32.mrb[0].mxu0
      %537 = vmatprep.mubr.f32.mxu0 0.0
      %538 = vmatmul.mubr.f32.gmra.mrb[0].mxu0 %v351
      %v539 = vpop.f32.mrb[0].mxu0
      %v540 = vadd.f32 %v465, %v539
      %v541 = vpop.f32.mrb[0].mxu0
      %542 = vdwg.mxu0
      %v543 = vld [vmem:[%s3] sm:$0x1]
      %v545 = vlaneseq
      %v546 = vshrl.u32 %v545, 7
      %v547 = vsub.s32 0, %v546
      %v548 = vrot.slane %v543, %v547
      %v550 = vadd.f32 %v535, %v548
      %v551 = vadd.f32 %v540, %v548
      %v552 = vmax.f32 %v550, 0.0
      %v553 = vmax.f32 %v551, 0.0
      %s554 = ssub.s32 %s334, 4
      %v555 = vstv %s554
      %v556 = vadd.s32 %v338, %v555
      %v557 = vadd.s32 %v339, %v555
      %vm558 = vcmp.ge.s32.totalorder %v556, 0
      %vm559 = vcmp.ge.s32.totalorder %v557, 0
      %v560 = vsel %vm558, 1, 0
      %v561 = vsel %vm559, 1, 0
      %vm562 = vcmp.eq.s32.totalorder %v560, 1
      %vm563 = vcmp.eq.s32.totalorder %v561, 1
      %v564 = vsel %vm562, %v552, 0.0
      %v565 = vsel %vm563, %v553, 0.0
      %v566 = vld [vmem:[%s4] sm:$0xff]
      %v567 = vld [vmem:[%s4 + $0x8] sm:$0xff]
      %v568 = vld [vmem:[%s4 + $0x10] sm:$0xff]
      %v569 = vld [vmem:[%s4 + $0x18] sm:$0xff]
      %v570 = vld [vmem:[%s4 + $0x20] sm:$0xff]
      %v571 = vld [vmem:[%s4 + $0x28] sm:$0xff]
      %v572 = vld [vmem:[%s4 + $0x30] sm:$0xff]
      %v573 = vld [vmem:[%s4 + $0x38] sm:$0xff]
      %v574 = vld [vmem:[%s4 + $0x40] sm:$0xff]
      %v575 = vld [vmem:[%s4 + $0x48] sm:$0xff]
      %v576 = vld [vmem:[%s4 + $0x50] sm:$0xff]
      %v577 = vld [vmem:[%s4 + $0x58] sm:$0xff]
      %v578 = vld [vmem:[%s4 + $0x60] sm:$0xff]
      %v579 = vld [vmem:[%s4 + $0x68] sm:$0xff]
      %v580 = vld [vmem:[%s4 + $0x70] sm:$0xff]
      %v581 = vld [vmem:[%s4 + $0x78] sm:$0xff]
      %s582 = scalar_lea.vmem %s4, 128
      %v583 = vld [vmem:[%s582] sm:$0xff]
      %v584 = vld [vmem:[%s582 + $0x8] sm:$0xff]
      %v585 = vld [vmem:[%s582 + $0x10] sm:$0xff]
      %v586 = vld [vmem:[%s582 + $0x18] sm:$0xff]
      %v587 = vld [vmem:[%s582 + $0x20] sm:$0xff]
      %v588 = vld [vmem:[%s582 + $0x28] sm:$0xff]
      %v589 = vld [vmem:[%s582 + $0x30] sm:$0xff]
      %v590 = vld [vmem:[%s582 + $0x38] sm:$0xff]
      %v591 = vld [vmem:[%s582 + $0x40] sm:$0xff]
      %v592 = vld [vmem:[%s582 + $0x48] sm:$0xff]
      %v593 = vld [vmem:[%s582 + $0x50] sm:$0xff]
      %v594 = vld [vmem:[%s582 + $0x58] sm:$0xff]
      %v595 = vld [vmem:[%s582 + $0x60] sm:$0xff]
      %v596 = vld [vmem:[%s582 + $0x68] sm:$0xff]
      %v597 = vld [vmem:[%s582 + $0x70] sm:$0xff]
      %v598 = vld [vmem:[%s582 + $0x78] sm:$0xff]
      %v601 = vrot.slane %v564, 4
      %v602 = vrot.slane %v565, 4
      %v603 = vsel %vm387, %v601, %v602
      %605 = vmatprep.subr.mxu0 0.0
      %606 = vmatpush1.msra.mxu0 %v583
      %607 = vmatprep.subr.mxu0 0.0
      %608 = vmatpush1.msra.mxu0 %v584
      %609 = vmatprep.subr.mxu0 0.0
      %610 = vmatpush1.msra.mxu0 %v585
      %611 = vmatprep.subr.mxu0 0.0
      %612 = vmatpush1.msra.mxu0 %v586
      %613 = vmatprep.subr.mxu0 0.0
      %614 = vmatpush1.msra.mxu0 %v587
      %615 = vmatprep.subr.mxu0 0.0
      %616 = vmatpush1.msra.mxu0 %v588
      %617 = vmatprep.subr.mxu0 0.0
      %618 = vmatpush1.msra.mxu0 %v589
      %619 = vmatprep.subr.mxu0 0.0
      %620 = vmatpush1.msra.mxu0 %v590
      %621 = vmatprep.subr.mxu0 0.0
      %622 = vmatpush1.msra.mxu0 %v591
      %623 = vmatprep.subr.mxu0 0.0
      %624 = vmatpush1.msra.mxu0 %v592
      %625 = vmatprep.subr.mxu0 0.0
      %626 = vmatpush1.msra.mxu0 %v593
      %627 = vmatprep.subr.mxu0 0.0
      %628 = vmatpush1.msra.mxu0 %v594
      %629 = vmatprep.subr.mxu0 0.0
      %630 = vmatpush1.msra.mxu0 %v595
      %631 = vmatprep.subr.mxu0 0.0
      %632 = vmatpush1.msra.mxu0 %v596
      %633 = vmatprep.subr.mxu0 0.0
      %634 = vmatpush1.msra.mxu0 %v597
      %635 = vmatprep.subr.mxu0 0.0
      %636 = vmatpush1.msra.mxu0 %v598
      %637 = vmatprep.subr.mxu0 0.0
      %638 = vmatpush1.msra.mxu0 0.0
      %639 = vmatprep.subr.mxu0 0.0
      %640 = vmatpush1.msra.mxu0 0.0
      %641 = vmatprep.subr.mxu0 0.0
      %642 = vmatpush1.msra.mxu0 0.0
      %643 = vmatprep.subr.mxu0 0.0
      %644 = vmatpush1.msra.mxu0 0.0
      %645 = vmatprep.subr.mxu0 0.0
      %646 = vmatpush1.msra.mxu0 0.0
      %647 = vmatprep.subr.mxu0 0.0
      %648 = vmatpush1.msra.mxu0 0.0
      %649 = vmatprep.subr.mxu0 0.0
      %650 = vmatpush1.msra.mxu0 0.0
      %651 = vmatprep.subr.mxu0 0.0
      %652 = vmatpush1.msra.mxu0 0.0
      %653 = vmatprep.subr.mxu0 0.0
      %654 = vmatpush1.msra.mxu0 0.0
      %655 = vmatprep.subr.mxu0 0.0
      %656 = vmatpush1.msra.mxu0 0.0
      %657 = vmatprep.subr.mxu0 0.0
      %658 = vmatpush1.msra.mxu0 0.0
      %659 = vmatprep.subr.mxu0 0.0
      %660 = vmatpush1.msra.mxu0 0.0
      %661 = vmatprep.subr.mxu0 0.0
      %662 = vmatpush1.msra.mxu0 0.0
      %663 = vmatprep.subr.mxu0 0.0
      %664 = vmatpush1.msra.mxu0 0.0
      %665 = vmatprep.subr.mxu0 0.0
      %666 = vmatpush1.msra.mxu0 0.0
      %667 = vmatprep.subr.mxu0 0.0
      %668 = vmatpush1.msra.mxu0 0.0
      %669 = vmatprep.mubr.f32.mxu0 0.0
      %670 = vmatmul.mubr.f32.gmra.mrb[0].mxu0 %v603
      %v671 = vpop.f32.mrb[0].mxu0
      %v672 = vadd.f32 0.0, %v671
      %v673 = vpop.f32.mrb[0].mxu0
      %674 = vdwg.mxu0
      %675 = vmatprep.subr.mxu0 0.0
      %676 = vmatpush1.msra.mxu0 %v566
      %677 = vmatprep.subr.mxu0 0.0
      %678 = vmatpush1.msra.mxu0 %v567
      %679 = vmatprep.subr.mxu0 0.0
      %680 = vmatpush1.msra.mxu0 %v568
      %681 = vmatprep.subr.mxu0 0.0
      %682 = vmatpush1.msra.mxu0 %v569
      %683 = vmatprep.subr.mxu0 0.0
      %684 = vmatpush1.msra.mxu0 %v570
      %685 = vmatprep.subr.mxu0 0.0
      %686 = vmatpush1.msra.mxu0 %v571
      %687 = vmatprep.subr.mxu0 0.0
      %688 = vmatpush1.msra.mxu0 %v572
      %689 = vmatprep.subr.mxu0 0.0
      %690 = vmatpush1.msra.mxu0 %v573
      %691 = vmatprep.subr.mxu0 0.0
      %692 = vmatpush1.msra.mxu0 %v574
      %693 = vmatprep.subr.mxu0 0.0
      %694 = vmatpush1.msra.mxu0 %v575
      %695 = vmatprep.subr.mxu0 0.0
      %696 = vmatpush1.msra.mxu0 %v576
      %697 = vmatprep.subr.mxu0 0.0
      %698 = vmatpush1.msra.mxu0 %v577
      %699 = vmatprep.subr.mxu0 0.0
      %700 = vmatpush1.msra.mxu0 %v578
      %701 = vmatprep.subr.mxu0 0.0
      %702 = vmatpush1.msra.mxu0 %v579
      %703 = vmatprep.subr.mxu0 0.0
      %704 = vmatpush1.msra.mxu0 %v580
      %705 = vmatprep.subr.mxu0 0.0
      %706 = vmatpush1.msra.mxu0 %v581
      %707 = vmatprep.subr.mxu0 0.0
      %708 = vmatpush1.msra.mxu0 0.0
      %709 = vmatprep.subr.mxu0 0.0
      %710 = vmatpush1.msra.mxu0 0.0
      %711 = vmatprep.subr.mxu0 0.0
      %712 = vmatpush1.msra.mxu0 0.0
      %713 = vmatprep.subr.mxu0 0.0
      %714 = vmatpush1.msra.mxu0 0.0
      %715 = vmatprep.subr.mxu0 0.0
      %716 = vmatpush1.msra.mxu0 0.0
      %717 = vmatprep.subr.mxu0 0.0
      %718 = vmatpush1.msra.mxu0 0.0
      %719 = vmatprep.subr.mxu0 0.0
      %720 = vmatpush1.msra.mxu0 0.0
      %721 = vmatprep.subr.mxu0 0.0
      %722 = vmatpush1.msra.mxu0 0.0
      %723 = vmatprep.subr.mxu0 0.0
      %724 = vmatpush1.msra.mxu0 0.0
      %725 = vmatprep.subr.mxu0 0.0
      %726 = vmatpush1.msra.mxu0 0.0
      %727 = vmatprep.subr.mxu0 0.0
      %728 = vmatpush1.msra.mxu0 0.0
      %729 = vmatprep.subr.mxu0 0.0
      %730 = vmatpush1.msra.mxu0 0.0
      %731 = vmatprep.subr.mxu0 0.0
      %732 = vmatpush1.msra.mxu0 0.0
      %733 = vmatprep.subr.mxu0 0.0
      %734 = vmatpush1.msra.mxu0 0.0
      %735 = vmatprep.subr.mxu0 0.0
      %736 = vmatpush1.msra.mxu0 0.0
      %737 = vmatprep.subr.mxu0 0.0
      %738 = vmatpush1.msra.mxu0 0.0
      %739 = vmatprep.mubr.f32.mxu0 0.0
      %740 = vmatmul.mubr.f32.gmra.mrb[0].mxu0 %v564
      %v741 = vpop.f32.mrb[0].mxu0
      %v742 = vadd.f32 %v672, %v741
      %v743 = vpop.f32.mrb[0].mxu0
      %744 = vdwg.mxu0
      %v745 = vld [vmem:[%s5] sm:$0x1]
      %v747 = vlaneseq
      %v748 = vshrl.u32 %v747, 7
      %v749 = vsub.s32 0, %v748
      %v750 = vrot.slane %v745, %v749
      %v752 = vadd.f32 %v742, %v750
      %v753 = vmax.f32 %v752, 0.0
      %v754 = vadd.f32 %v753, %v336
      %v755 = vmax.f32 %v754, 0.0
      %756 = vst [vmem:[%s332] sm:$0xff] %v755
      %p757 = scmp.lt.s32.totalorder %s21, 1
      %s758 = scalar_select %p757, %s21, 1
      %p759 = scmp.lt.s32.totalorder %s22, 0
      %s760 = scalar_select %p759, %s22, 0
      %s761 = sadd.s32 %s760, %s758
      %s762 = smul.addr %s761, 8
      %s763 = scalar_lea.vmem %s6, %s762
      // Predicated region
      $region45: #{tcn_forward.6} parent=43 // pred_check
        %p764 = pneg %p195
      $region46: #{tcn_forward.6} parent=43 // pred_check_branch
        %766 = sbr.rel (%p764) target = $region48
      $region47: #{tcn_forward.6} parent=43 // pred_region
        _
      $region48: #{tcn_forward.6} parent=43 // pred_fallthru
        _
    $region44: #{tcn_forward.6} parent=5 // pred_fallthru
      _
    %p767 = scmp.le.s32.totalorder 2, %s12
    // Predicated region
    $region49: #{tcn_forward.6} parent=5 // pred_check
      %p768 = pneg %p767
    $region50: #{tcn_forward.6} parent=5 // pred_check_branch
      %770 = sbr.rel (%p768) target = $region52
    $region51: #{tcn_forward.6} parent=5 // pred_region
      %s771 = ssub.s32 %s12, 2
      // Predicated region
      $region53: #{tcn_forward.6} parent=51 // pred_check
        %p772 = pneg %p201
      $region54: #{tcn_forward.6} parent=51 // pred_check_branch
        %774 = sbr.rel (%p772) target = $region56
      $region55: #{tcn_forward.6} parent=51 // pred_region
        %p775 = scmp.lt.s32.totalorder %s23, 1
        %s776 = scalar_select %p775, %s23, 1
        %p777 = scmp.lt.s32.totalorder %s24, 0
        %s778 = scalar_select %p777, %s24, 0
        %s779 = sadd.s32 %s778, %s776
        %s780 = smul.addr %s779, 8
        %s781 = scalar_lea.vmem %s6, %s780
      $region56: #{tcn_forward.6} parent=51 // pred_fallthru
        _
    $region52: #{tcn_forward.6} parent=5 // pred_fallthru
      _
  $region6: #{tcn_forward.6} parent=0 // loop_footer
    %s16 = sadd.s32 1, %s12
  $region7: #{tcn_forward.6} parent=0 // loop_footer_branch
    %11 = sbr.rel target = $region3
  $region8: #{tcn_forward.6} parent=0 // loop_exit
    _

</llo_original>
